<compile_context>
chip_gen: v7x
topology: tpu7x:2x2x1
jax: 0.10.0
libtpu: 0.0.40
codegen_flags: <defaults>
</compile_context>

<pallas_src>
import functools

import jax
import jax.numpy as jnp
import numpy as np
from jax import lax
from jax.experimental import pallas as pl
from jax.experimental.pallas import tpu as pltpu

CONV_KERNEL_SIZE = 5
CONV_OUT_CHANNEL = 64
LSTM_FEATURE_SIZE = 64
WORD_EMBEDDING_SIZE = 64
N_TAGS = 45
TAG_PAD = 128                                             # lane-dense padded tag dimension
PAD = (CONV_KERNEL_SIZE - 1) // 2
LSTM_INPUT_SIZE = WORD_EMBEDDING_SIZE + CONV_OUT_CHANNEL  # 128


# ---------------------------------------------------------------------------
# Single fused kernel: conv/relu/max -> concat -> input GEMM -> BiLSTM -> linear
# ---------------------------------------------------------------------------
def fused_tagger_kernel(xpad_ref, wconv_ref, bconv_ref, emb_ref,
                        wih_ref, bih_ref, whhf_ref, whhb_ref,
                        wlin_ref, blin_ref,
                        out_ref, gin_ref, y_ref, *, B, T):
    N, Lp = xpad_ref.shape
    K, C = wconv_ref.shape
    L = Lp - (K - 1)
    H = LSTM_FEATURE_SIZE
    G = 4 * H                                             # gates per direction

    # ---- 1. char conv (1->C, k=5, input pre-padded) with running max over length --------------
    x = xpad_ref[...]                                     # [N, L + K - 1]
    w = wconv_ref[...]                                    # [K, C]
    # hoist the K sublane-broadcasts of the conv weight rows (broadcast_in_dim is not CSE'd)
    wb = [jnp.broadcast_to(w[k:k + 1, :], (N, C)) for k in range(K)]
    m = None
    for l in range(L):                                    # static unroll, L small
        s = x[:, l:l + 1] * wb[0]
        for k in range(1, K):
            s = s + x[:, l + k:l + k + 1] * wb[k]
        m = s if m is None else jnp.maximum(m, s)
    # bias-add + ReLU after the max: ReLU monotone, bias constant over L -> identical result
    feat = jnp.maximum(m + bconv_ref[...], 0.0)           # [N, C]

    # ---- 2. concat with word embeddings + hoisted input projection for BOTH directions --------
    xcat = jnp.concatenate([feat, emb_ref[...]], axis=1)  # [N, I=128]
    gin_ref[...] = (jnp.dot(xcat, wih_ref[...], preferred_element_type=jnp.float32)
                    + bih_ref[...])                       # [N, 8H]; cols 0:4H fwd, 4H:8H bwd

    # ---- 3. merged forward/backward recurrence, fully unrolled over T -------------------------
    h2 = jnp.zeros((2 * B, H), jnp.float32)               # rows 0:B = forward, B:2B = backward
    c2 = jnp.zeros((2 * B, H), jnp.float32)
    for t in range(T):                                    # static unroll (T compile-time constant)
        rf = t * B                                        # forward time step (row block)
        rb = (T - 1 - t) * B                              # backward time step (row block)
        gin_f = gin_ref[rf:rf + B, 0:G]
        gin_b = gin_ref[rb:rb + B, G:2 * G]
        # two independent recurrent matmuls issued back-to-back
        df = jnp.dot(h2[0:B, :], whhf_ref[...], preferred_element_type=jnp.float32)
        db = jnp.dot(h2[B:2 * B, :], whhb_ref[...], preferred_element_type=jnp.float32)
        g2 = jnp.concatenate([gin_f + df, gin_b + db], axis=0)   # [2B, 4H]
        sig = jax.nn.sigmoid(g2)                          # full-width EUP pass
        th = jnp.tanh(g2)                                 # full-width EUP pass
        i_ = sig[:, 0:H]                                  # PyTorch gate order: i, f, g, o
        f_ = sig[:, H:2 * H]
        gg = th[:, 2 * H:3 * H]
        o_ = sig[:, 3 * H:4 * H]
        c2 = f_ * c2 + i_ * gg
        h2 = o_ * jnp.tanh(c2)
        y_ref[rf:rf + B, 0:H] = h2[0:B, :]                # forward half of output block rf
        y_ref[rb:rb + B, H:2 * H] = h2[B:2 * B, :]        # backward half of output block rb

    # ---- 4. final linear epilogue (lane-dense: tags padded to TAG_PAD) ------------------------
    out_ref[...] = (jnp.dot(y_ref[...], wlin_ref[...], preferred_element_type=jnp.float32)
                    + blin_ref[...])


# ---------------------------------------------------------------------------
# Parameter packing (one-time prep) + forward wrapper
# ---------------------------------------------------------------------------
def pack_params(params):
    """Fuse per-direction input weights/biases and pad the tag dim for lane-dense output."""
    return {
        "w_conv": params["w_conv"],
        "b_conv": params["b_conv"],
        "embed": params["embed"],
        "wih_cat": jnp.concatenate([params["wih_f"], params["wih_b"]], axis=1),   # [I, 8H]
        "b_cat": jnp.concatenate([params["b_f"], params["b_b"]], axis=1),         # [1, 8H]
        "whh_f": params["whh_f"],
        "whh_b": params["whh_b"],
        "w_lin": jnp.pad(params["w_lin"], ((0, 0), (0, TAG_PAD - N_TAGS))),       # [2H, 128]
        "b_lin": jnp.pad(params["b_lin"], ((0, 0), (0, TAG_PAD - N_TAGS))),       # [1, 128]
    }


@functools.partial(jax.jit, static_argnames=("B", "T"))
def model_forward(packed, x_int_data, x_idx_data, B, T):
    N, L = x_int_data.shape
    H = LSTM_FEATURE_SIZE
    I = LSTM_INPUT_SIZE
    xpad = jnp.pad(x_int_data, ((0, 0), (PAD, PAD)))               # conv 'same' padding (glue)
    emb = jnp.take(packed["embed"], x_idx_data, axis=0)            # embedding gather (glue)

    kernel = functools.partial(fused_tagger_kernel, B=B, T=T)
    out_pad = pl.pallas_call(
        kernel,
        out_shape=jax.ShapeDtypeStruct((N, TAG_PAD), jnp.float32),
        grid=(1,),
        in_specs=[
            pl.BlockSpec((N, L + 2 * PAD), lambda i: (0, 0)),                    # xpad
            pl.BlockSpec((CONV_KERNEL_SIZE, CONV_OUT_CHANNEL), lambda i: (0, 0)),  # w_conv
            pl.BlockSpec((1, CONV_OUT_CHANNEL), lambda i: (0, 0)),               # b_conv
            pl.BlockSpec((N, WORD_EMBEDDING_SIZE), lambda i: (0, 0)),            # emb
            pl.BlockSpec((I, 8 * H), lambda i: (0, 0)),                          # wih_cat
            pl.BlockSpec((1, 8 * H), lambda i: (0, 0)),                          # b_cat
            pl.BlockSpec((H, 4 * H), lambda i: (0, 0)),                          # whh_f
            pl.BlockSpec((H, 4 * H), lambda i: (0, 0)),                          # whh_b
            pl.BlockSpec((2 * H, TAG_PAD), lambda i: (0, 0)),                    # w_lin (padded)
            pl.BlockSpec((1, TAG_PAD), lambda i: (0, 0)),                        # b_lin (padded)
        ],
        out_specs=pl.BlockSpec((N, TAG_PAD), lambda i: (0, 0)),
        scratch_shapes=[
            pltpu.VMEM((N, 8 * H), jnp.float32),     # gin: input-projected gates (both dirs)
            pltpu.VMEM((N, 2 * H), jnp.float32),     # y:   [fwd | bwd] hidden, time-major
        ],
        compiler_params=pltpu.CompilerParams(dimension_semantics=("arbitrary",)),
    )(xpad, packed["w_conv"], packed["b_conv"], emb,
      packed["wih_cat"], packed["b_cat"], packed["whh_f"], packed["whh_b"],
      packed["w_lin"], packed["b_lin"])
    return out_pad[:, :N_TAGS]


# ---------------------------------------------------------------------------
# Pure-JAX reference for sanity checking
# ---------------------------------------------------------------------------
def reference_forward(params, x_int_data, x_idx_data, B, T):
    N, L = x_int_data.shape
    H = LSTM_FEATURE_SIZE
    xp = jnp.pad(x_int_data, ((0, 0), (PAD, PAD)))
    conv = sum(xp[:, k:k + L][:, :, None] * params["w_conv"][k][None, None, :]
               for k in range(CONV_KERNEL_SIZE)) + params["b_conv"]
    feat = jnp.max(jax.nn.relu(conv), axis=1)
    emb = params["embed"][x_idx_data]
    x_tbi = jnp.concatenate([feat, emb], axis=1).reshape(T, B, -1)

    def run_dir(x_seq, wih, whh, bias):
        def step(carry, xt):
            h, c = carry
            g = xt @ wih + h @ whh + bias
            i = jax.nn.sigmoid(g[:, :H]); f = jax.nn.sigmoid(g[:, H:2 * H])
            gg = jnp.tanh(g[:, 2 * H:3 * H]); o = jax.nn.sigmoid(g[:, 3 * H:])
            c = f * c + i * gg
            h = o * jnp.tanh(c)
            return (h, c), h
        init = (jnp.zeros((B, H), jnp.float32), jnp.zeros((B, H), jnp.float32))
        _, ys = lax.scan(step, init, x_seq)
        return ys

    yf = run_dir(x_tbi, params["wih_f"], params["whh_f"], params["b_f"])
    yb = run_dir(x_tbi[::-1], params["wih_b"], params["whh_b"], params["b_b"])[::-1]
    h = jnp.concatenate([yf, yb], axis=-1).reshape(T * B, 2 * H)
    return h @ params["w_lin"] + params["b_lin"]


def init_params(key, vocab_size):
    I = LSTM_INPUT_SIZE
    H = LSTM_FEATURE_SIZE
    shapes = {
        "w_conv": (CONV_KERNEL_SIZE, CONV_OUT_CHANNEL),   # torch [64,1,5] stored as [k, C]
        "b_conv": (1, CONV_OUT_CHANNEL),
        "embed": (vocab_size + 1, WORD_EMBEDDING_SIZE),
        "wih_f": (I, 4 * H),                              # torch weight_ih_l0.T
        "whh_f": (H, 4 * H),
        "b_f": (1, 4 * H),                                # b_ih + b_hh combined
        "wih_b": (I, 4 * H),
        "whh_b": (H, 4 * H),
        "b_b": (1, 4 * H),
        "w_lin": (2 * H, N_TAGS),                         # torch linear.weight.T
        "b_lin": (1, N_TAGS),
    }
    params = {}
    for name, shape in shapes.items():
        key, sub = jax.random.split(key)
        params[name] = jax.random.uniform(sub, shape, jnp.float32, -0.1, 0.1)
    return params


if __name__ == "__main__":
    B, T, L = 2, 8, 16          # batch, (equal) sequence length, char-feature length
    N = B * T                   # packed token count (time-major)
    VOCAB = 50

    key = jax.random.PRNGKey(0)
    kp, kx, ki = jax.random.split(key, 3)
    params = init_params(kp, VOCAB)
    packed = pack_params(params)

    # packed data (time-major order), as the torch module receives via PackedSequence.data
    x_int_data = jax.random.normal(kx, (N, L), jnp.float32)
    x_idx_data = jax.random.randint(ki, (N,), 0, VOCAB + 1, jnp.int32)

    out = model_forward(packed, x_int_data, x_idx_data, B=B, T=T)
    out = jax.block_until_ready(out)

    ref = reference_forward(params, x_int_data, x_idx_data, B, T)
    np.testing.assert_allclose(np.asarray(out), np.asarray(ref), rtol=1e-4, atol=1e-4)
    assert out.shape == (N, N_TAGS) and out.dtype == jnp.float32

    print("KERNEL_OK")
</pallas_src>

<mosaic_0001>
module attributes {stable_mosaic.version = 11 : i64} {
  func.func @fused_tagger_kernel(%arg0: i32, %arg1: memref<16x20xf32, #tpu.memory_space<vmem>>, %arg2: memref<5x64xf32, #tpu.memory_space<vmem>>, %arg3: memref<1x64xf32, #tpu.memory_space<vmem>>, %arg4: memref<16x64xf32, #tpu.memory_space<vmem>>, %arg5: memref<128x512xf32, #tpu.memory_space<vmem>>, %arg6: memref<1x512xf32, #tpu.memory_space<vmem>>, %arg7: memref<64x256xf32, #tpu.memory_space<vmem>>, %arg8: memref<64x256xf32, #tpu.memory_space<vmem>>, %arg9: memref<128x128xf32, #tpu.memory_space<vmem>>, %arg10: memref<1x128xf32, #tpu.memory_space<vmem>>, %arg11: memref<16x128xf32, #tpu.memory_space<vmem>>, %arg12: memref<16x512xf32, #tpu.memory_space<vmem>>, %arg13: memref<16x128xf32, #tpu.memory_space<vmem>>) attributes {dimension_semantics = [#tpu.dimension_semantics<arbitrary>], iteration_bounds = array<i64: 1>, scalar_prefetch = 0 : i64, scratch_operands = 2 : i64, tpu.core_type = #tpu.core_type<tc>, window_params = [{pipeline_mode = #tpu.pipeline_mode<synchronous>, transform_indices = @transform_0, window_bounds = array<i64: 16, 20>}, {pipeline_mode = #tpu.pipeline_mode<synchronous>, transform_indices = @transform_1, window_bounds = array<i64: 5, 64>}, {pipeline_mode = #tpu.pipeline_mode<synchronous>, transform_indices = @transform_2, window_bounds = array<i64: 1, 64>}, {pipeline_mode = #tpu.pipeline_mode<synchronous>, transform_indices = @transform_3, window_bounds = array<i64: 16, 64>}, {pipeline_mode = #tpu.pipeline_mode<synchronous>, transform_indices = @transform_4, window_bounds = array<i64: 128, 512>}, {pipeline_mode = #tpu.pipeline_mode<synchronous>, transform_indices = @transform_5, window_bounds = array<i64: 1, 512>}, {pipeline_mode = #tpu.pipeline_mode<synchronous>, transform_indices = @transform_6, window_bounds = array<i64: 64, 256>}, {pipeline_mode = #tpu.pipeline_mode<synchronous>, transform_indices = @transform_7, window_bounds = array<i64: 64, 256>}, {pipeline_mode = #tpu.pipeline_mode<synchronous>, transform_indices = @transform_8, window_bounds = array<i64: 128, 128>}, {pipeline_mode = #tpu.pipeline_mode<synchronous>, transform_indices = @transform_9, window_bounds = array<i64: 1, 128>}, {pipeline_mode = #tpu.pipeline_mode<synchronous>, transform_indices = @transform_10, window_bounds = array<i64: 16, 128>}]} {
    %c0 = arith.constant 0 : index
    %c0_0 = arith.constant 0 : index
    %0 = vector.load %arg1[%c0, %c0_0] : memref<16x20xf32, #tpu.memory_space<vmem>>, vector<16x20xf32>
    %c0_1 = arith.constant 0 : index
    %c0_2 = arith.constant 0 : index
    %1 = vector.load %arg2[%c0_1, %c0_2] : memref<5x64xf32, #tpu.memory_space<vmem>>, vector<5x64xf32>
    %2 = vector.extract_strided_slice %1 {offsets = [0, 0], sizes = [1, 64], strides = [1, 1]} : vector<5x64xf32> to vector<1x64xf32>
    %3 = vector.shape_cast %2 : vector<1x64xf32> to vector<1x64xf32>
    %4 = vector.broadcast %3 : vector<1x64xf32> to vector<16x64xf32>
    %5 = vector.extract_strided_slice %1 {offsets = [1, 0], sizes = [1, 64], strides = [1, 1]} : vector<5x64xf32> to vector<1x64xf32>
    %6 = vector.shape_cast %5 : vector<1x64xf32> to vector<1x64xf32>
    %7 = vector.broadcast %6 : vector<1x64xf32> to vector<16x64xf32>
    %8 = vector.extract_strided_slice %1 {offsets = [2, 0], sizes = [1, 64], strides = [1, 1]} : vector<5x64xf32> to vector<1x64xf32>
    %9 = vector.shape_cast %8 : vector<1x64xf32> to vector<1x64xf32>
    %10 = vector.broadcast %9 : vector<1x64xf32> to vector<16x64xf32>
    %11 = vector.extract_strided_slice %1 {offsets = [3, 0], sizes = [1, 64], strides = [1, 1]} : vector<5x64xf32> to vector<1x64xf32>
    %12 = vector.shape_cast %11 : vector<1x64xf32> to vector<1x64xf32>
    %13 = vector.broadcast %12 : vector<1x64xf32> to vector<16x64xf32>
    %14 = vector.extract_strided_slice %1 {offsets = [4, 0], sizes = [1, 64], strides = [1, 1]} : vector<5x64xf32> to vector<1x64xf32>
    %15 = vector.shape_cast %14 : vector<1x64xf32> to vector<1x64xf32>
    %16 = vector.broadcast %15 : vector<1x64xf32> to vector<16x64xf32>
    %17 = vector.extract_strided_slice %0 {offsets = [0, 0], sizes = [16, 1], strides = [1, 1]} : vector<16x20xf32> to vector<16x1xf32>
    %18 = vector.broadcast %17 : vector<16x1xf32> to vector<16x64xf32>
    %19 = arith.mulf %18, %4 : vector<16x64xf32>
    %20 = vector.extract_strided_slice %0 {offsets = [0, 1], sizes = [16, 1], strides = [1, 1]} : vector<16x20xf32> to vector<16x1xf32>
    %21 = vector.broadcast %20 : vector<16x1xf32> to vector<16x64xf32>
    %22 = arith.mulf %21, %7 : vector<16x64xf32>
    %23 = arith.addf %19, %22 : vector<16x64xf32>
    %24 = vector.extract_strided_slice %0 {offsets = [0, 2], sizes = [16, 1], strides = [1, 1]} : vector<16x20xf32> to vector<16x1xf32>
    %25 = vector.broadcast %24 : vector<16x1xf32> to vector<16x64xf32>
    %26 = arith.mulf %25, %10 : vector<16x64xf32>
    %27 = arith.addf %23, %26 : vector<16x64xf32>
    %28 = vector.extract_strided_slice %0 {offsets = [0, 3], sizes = [16, 1], strides = [1, 1]} : vector<16x20xf32> to vector<16x1xf32>
    %29 = vector.broadcast %28 : vector<16x1xf32> to vector<16x64xf32>
    %30 = arith.mulf %29, %13 : vector<16x64xf32>
    %31 = arith.addf %27, %30 : vector<16x64xf32>
    %32 = vector.extract_strided_slice %0 {offsets = [0, 4], sizes = [16, 1], strides = [1, 1]} : vector<16x20xf32> to vector<16x1xf32>
    %33 = vector.broadcast %32 : vector<16x1xf32> to vector<16x64xf32>
    %34 = arith.mulf %33, %16 : vector<16x64xf32>
    %35 = arith.addf %31, %34 : vector<16x64xf32>
    %36 = vector.extract_strided_slice %0 {offsets = [0, 1], sizes = [16, 1], strides = [1, 1]} : vector<16x20xf32> to vector<16x1xf32>
    %37 = vector.broadcast %36 : vector<16x1xf32> to vector<16x64xf32>
    %38 = arith.mulf %37, %4 : vector<16x64xf32>
    %39 = vector.extract_strided_slice %0 {offsets = [0, 2], sizes = [16, 1], strides = [1, 1]} : vector<16x20xf32> to vector<16x1xf32>
    %40 = vector.broadcast %39 : vector<16x1xf32> to vector<16x64xf32>
    %41 = arith.mulf %40, %7 : vector<16x64xf32>
    %42 = arith.addf %38, %41 : vector<16x64xf32>
    %43 = vector.extract_strided_slice %0 {offsets = [0, 3], sizes = [16, 1], strides = [1, 1]} : vector<16x20xf32> to vector<16x1xf32>
    %44 = vector.broadcast %43 : vector<16x1xf32> to vector<16x64xf32>
    %45 = arith.mulf %44, %10 : vector<16x64xf32>
    %46 = arith.addf %42, %45 : vector<16x64xf32>
    %47 = vector.extract_strided_slice %0 {offsets = [0, 4], sizes = [16, 1], strides = [1, 1]} : vector<16x20xf32> to vector<16x1xf32>
    %48 = vector.broadcast %47 : vector<16x1xf32> to vector<16x64xf32>
    %49 = arith.mulf %48, %13 : vector<16x64xf32>
    %50 = arith.addf %46, %49 : vector<16x64xf32>
    %51 = vector.extract_strided_slice %0 {offsets = [0, 5], sizes = [16, 1], strides = [1, 1]} : vector<16x20xf32> to vector<16x1xf32>
    %52 = vector.broadcast %51 : vector<16x1xf32> to vector<16x64xf32>
    %53 = arith.mulf %52, %16 : vector<16x64xf32>
    %54 = arith.addf %50, %53 : vector<16x64xf32>
    %55 = arith.maximumf %35, %54 : vector<16x64xf32>
    %56 = vector.extract_strided_slice %0 {offsets = [0, 2], sizes = [16, 1], strides = [1, 1]} : vector<16x20xf32> to vector<16x1xf32>
    %57 = vector.broadcast %56 : vector<16x1xf32> to vector<16x64xf32>
    %58 = arith.mulf %57, %4 : vector<16x64xf32>
    %59 = vector.extract_strided_slice %0 {offsets = [0, 3], sizes = [16, 1], strides = [1, 1]} : vector<16x20xf32> to vector<16x1xf32>
    %60 = vector.broadcast %59 : vector<16x1xf32> to vector<16x64xf32>
    %61 = arith.mulf %60, %7 : vector<16x64xf32>
    %62 = arith.addf %58, %61 : vector<16x64xf32>
    %63 = vector.extract_strided_slice %0 {offsets = [0, 4], sizes = [16, 1], strides = [1, 1]} : vector<16x20xf32> to vector<16x1xf32>
    %64 = vector.broadcast %63 : vector<16x1xf32> to vector<16x64xf32>
    %65 = arith.mulf %64, %10 : vector<16x64xf32>
    %66 = arith.addf %62, %65 : vector<16x64xf32>
    %67 = vector.extract_strided_slice %0 {offsets = [0, 5], sizes = [16, 1], strides = [1, 1]} : vector<16x20xf32> to vector<16x1xf32>
    %68 = vector.broadcast %67 : vector<16x1xf32> to vector<16x64xf32>
    %69 = arith.mulf %68, %13 : vector<16x64xf32>
    %70 = arith.addf %66, %69 : vector<16x64xf32>
    %71 = vector.extract_strided_slice %0 {offsets = [0, 6], sizes = [16, 1], strides = [1, 1]} : vector<16x20xf32> to vector<16x1xf32>
    %72 = vector.broadcast %71 : vector<16x1xf32> to vector<16x64xf32>
    %73 = arith.mulf %72, %16 : vector<16x64xf32>
    %74 = arith.addf %70, %73 : vector<16x64xf32>
    %75 = arith.maximumf %55, %74 : vector<16x64xf32>
    %76 = vector.extract_strided_slice %0 {offsets = [0, 3], sizes = [16, 1], strides = [1, 1]} : vector<16x20xf32> to vector<16x1xf32>
    %77 = vector.broadcast %76 : vector<16x1xf32> to vector<16x64xf32>
    %78 = arith.mulf %77, %4 : vector<16x64xf32>
    %79 = vector.extract_strided_slice %0 {offsets = [0, 4], sizes = [16, 1], strides = [1, 1]} : vector<16x20xf32> to vector<16x1xf32>
    %80 = vector.broadcast %79 : vector<16x1xf32> to vector<16x64xf32>
    %81 = arith.mulf %80, %7 : vector<16x64xf32>
    %82 = arith.addf %78, %81 : vector<16x64xf32>
    %83 = vector.extract_strided_slice %0 {offsets = [0, 5], sizes = [16, 1], strides = [1, 1]} : vector<16x20xf32> to vector<16x1xf32>
    %84 = vector.broadcast %83 : vector<16x1xf32> to vector<16x64xf32>
    %85 = arith.mulf %84, %10 : vector<16x64xf32>
    %86 = arith.addf %82, %85 : vector<16x64xf32>
    %87 = vector.extract_strided_slice %0 {offsets = [0, 6], sizes = [16, 1], strides = [1, 1]} : vector<16x20xf32> to vector<16x1xf32>
    %88 = vector.broadcast %87 : vector<16x1xf32> to vector<16x64xf32>
    %89 = arith.mulf %88, %13 : vector<16x64xf32>
    %90 = arith.addf %86, %89 : vector<16x64xf32>
    %91 = vector.extract_strided_slice %0 {offsets = [0, 7], sizes = [16, 1], strides = [1, 1]} : vector<16x20xf32> to vector<16x1xf32>
    %92 = vector.broadcast %91 : vector<16x1xf32> to vector<16x64xf32>
    %93 = arith.mulf %92, %16 : vector<16x64xf32>
    %94 = arith.addf %90, %93 : vector<16x64xf32>
    %95 = arith.maximumf %75, %94 : vector<16x64xf32>
    %96 = vector.extract_strided_slice %0 {offsets = [0, 4], sizes = [16, 1], strides = [1, 1]} : vector<16x20xf32> to vector<16x1xf32>
    %97 = vector.broadcast %96 : vector<16x1xf32> to vector<16x64xf32>
    %98 = arith.mulf %97, %4 : vector<16x64xf32>
    %99 = vector.extract_strided_slice %0 {offsets = [0, 5], sizes = [16, 1], strides = [1, 1]} : vector<16x20xf32> to vector<16x1xf32>
    %100 = vector.broadcast %99 : vector<16x1xf32> to vector<16x64xf32>
    %101 = arith.mulf %100, %7 : vector<16x64xf32>
    %102 = arith.addf %98, %101 : vector<16x64xf32>
    %103 = vector.extract_strided_slice %0 {offsets = [0, 6], sizes = [16, 1], strides = [1, 1]} : vector<16x20xf32> to vector<16x1xf32>
    %104 = vector.broadcast %103 : vector<16x1xf32> to vector<16x64xf32>
    %105 = arith.mulf %104, %10 : vector<16x64xf32>
    %106 = arith.addf %102, %105 : vector<16x64xf32>
    %107 = vector.extract_strided_slice %0 {offsets = [0, 7], sizes = [16, 1], strides = [1, 1]} : vector<16x20xf32> to vector<16x1xf32>
    %108 = vector.broadcast %107 : vector<16x1xf32> to vector<16x64xf32>
    %109 = arith.mulf %108, %13 : vector<16x64xf32>
    %110 = arith.addf %106, %109 : vector<16x64xf32>
    %111 = vector.extract_strided_slice %0 {offsets = [0, 8], sizes = [16, 1], strides = [1, 1]} : vector<16x20xf32> to vector<16x1xf32>
    %112 = vector.broadcast %111 : vector<16x1xf32> to vector<16x64xf32>
    %113 = arith.mulf %112, %16 : vector<16x64xf32>
    %114 = arith.addf %110, %113 : vector<16x64xf32>
    %115 = arith.maximumf %95, %114 : vector<16x64xf32>
    %116 = vector.extract_strided_slice %0 {offsets = [0, 5], sizes = [16, 1], strides = [1, 1]} : vector<16x20xf32> to vector<16x1xf32>
    %117 = vector.broadcast %116 : vector<16x1xf32> to vector<16x64xf32>
    %118 = arith.mulf %117, %4 : vector<16x64xf32>
    %119 = vector.extract_strided_slice %0 {offsets = [0, 6], sizes = [16, 1], strides = [1, 1]} : vector<16x20xf32> to vector<16x1xf32>
    %120 = vector.broadcast %119 : vector<16x1xf32> to vector<16x64xf32>
    %121 = arith.mulf %120, %7 : vector<16x64xf32>
    %122 = arith.addf %118, %121 : vector<16x64xf32>
    %123 = vector.extract_strided_slice %0 {offsets = [0, 7], sizes = [16, 1], strides = [1, 1]} : vector<16x20xf32> to vector<16x1xf32>
    %124 = vector.broadcast %123 : vector<16x1xf32> to vector<16x64xf32>
    %125 = arith.mulf %124, %10 : vector<16x64xf32>
    %126 = arith.addf %122, %125 : vector<16x64xf32>
    %127 = vector.extract_strided_slice %0 {offsets = [0, 8], sizes = [16, 1], strides = [1, 1]} : vector<16x20xf32> to vector<16x1xf32>
    %128 = vector.broadcast %127 : vector<16x1xf32> to vector<16x64xf32>
    %129 = arith.mulf %128, %13 : vector<16x64xf32>
    %130 = arith.addf %126, %129 : vector<16x64xf32>
    %131 = vector.extract_strided_slice %0 {offsets = [0, 9], sizes = [16, 1], strides = [1, 1]} : vector<16x20xf32> to vector<16x1xf32>
    %132 = vector.broadcast %131 : vector<16x1xf32> to vector<16x64xf32>
    %133 = arith.mulf %132, %16 : vector<16x64xf32>
    %134 = arith.addf %130, %133 : vector<16x64xf32>
    %135 = arith.maximumf %115, %134 : vector<16x64xf32>
    %136 = vector.extract_strided_slice %0 {offsets = [0, 6], sizes = [16, 1], strides = [1, 1]} : vector<16x20xf32> to vector<16x1xf32>
    %137 = vector.broadcast %136 : vector<16x1xf32> to vector<16x64xf32>
    %138 = arith.mulf %137, %4 : vector<16x64xf32>
    %139 = vector.extract_strided_slice %0 {offsets = [0, 7], sizes = [16, 1], strides = [1, 1]} : vector<16x20xf32> to vector<16x1xf32>
    %140 = vector.broadcast %139 : vector<16x1xf32> to vector<16x64xf32>
    %141 = arith.mulf %140, %7 : vector<16x64xf32>
    %142 = arith.addf %138, %141 : vector<16x64xf32>
    %143 = vector.extract_strided_slice %0 {offsets = [0, 8], sizes = [16, 1], strides = [1, 1]} : vector<16x20xf32> to vector<16x1xf32>
    %144 = vector.broadcast %143 : vector<16x1xf32> to vector<16x64xf32>
    %145 = arith.mulf %144, %10 : vector<16x64xf32>
    %146 = arith.addf %142, %145 : vector<16x64xf32>
    %147 = vector.extract_strided_slice %0 {offsets = [0, 9], sizes = [16, 1], strides = [1, 1]} : vector<16x20xf32> to vector<16x1xf32>
    %148 = vector.broadcast %147 : vector<16x1xf32> to vector<16x64xf32>
    %149 = arith.mulf %148, %13 : vector<16x64xf32>
    %150 = arith.addf %146, %149 : vector<16x64xf32>
    %151 = vector.extract_strided_slice %0 {offsets = [0, 10], sizes = [16, 1], strides = [1, 1]} : vector<16x20xf32> to vector<16x1xf32>
    %152 = vector.broadcast %151 : vector<16x1xf32> to vector<16x64xf32>
    %153 = arith.mulf %152, %16 : vector<16x64xf32>
    %154 = arith.addf %150, %153 : vector<16x64xf32>
    %155 = arith.maximumf %135, %154 : vector<16x64xf32>
    %156 = vector.extract_strided_slice %0 {offsets = [0, 7], sizes = [16, 1], strides = [1, 1]} : vector<16x20xf32> to vector<16x1xf32>
    %157 = vector.broadcast %156 : vector<16x1xf32> to vector<16x64xf32>
    %158 = arith.mulf %157, %4 : vector<16x64xf32>
    %159 = vector.extract_strided_slice %0 {offsets = [0, 8], sizes = [16, 1], strides = [1, 1]} : vector<16x20xf32> to vector<16x1xf32>
    %160 = vector.broadcast %159 : vector<16x1xf32> to vector<16x64xf32>
    %161 = arith.mulf %160, %7 : vector<16x64xf32>
    %162 = arith.addf %158, %161 : vector<16x64xf32>
    %163 = vector.extract_strided_slice %0 {offsets = [0, 9], sizes = [16, 1], strides = [1, 1]} : vector<16x20xf32> to vector<16x1xf32>
    %164 = vector.broadcast %163 : vector<16x1xf32> to vector<16x64xf32>
    %165 = arith.mulf %164, %10 : vector<16x64xf32>
    %166 = arith.addf %162, %165 : vector<16x64xf32>
    %167 = vector.extract_strided_slice %0 {offsets = [0, 10], sizes = [16, 1], strides = [1, 1]} : vector<16x20xf32> to vector<16x1xf32>
    %168 = vector.broadcast %167 : vector<16x1xf32> to vector<16x64xf32>
    %169 = arith.mulf %168, %13 : vector<16x64xf32>
    %170 = arith.addf %166, %169 : vector<16x64xf32>
    %171 = vector.extract_strided_slice %0 {offsets = [0, 11], sizes = [16, 1], strides = [1, 1]} : vector<16x20xf32> to vector<16x1xf32>
    %172 = vector.broadcast %171 : vector<16x1xf32> to vector<16x64xf32>
    %173 = arith.mulf %172, %16 : vector<16x64xf32>
    %174 = arith.addf %170, %173 : vector<16x64xf32>
    %175 = arith.maximumf %155, %174 : vector<16x64xf32>
    %176 = vector.extract_strided_slice %0 {offsets = [0, 8], sizes = [16, 1], strides = [1, 1]} : vector<16x20xf32> to vector<16x1xf32>
    %177 = vector.broadcast %176 : vector<16x1xf32> to vector<16x64xf32>
    %178 = arith.mulf %177, %4 : vector<16x64xf32>
    %179 = vector.extract_strided_slice %0 {offsets = [0, 9], sizes = [16, 1], strides = [1, 1]} : vector<16x20xf32> to vector<16x1xf32>
    %180 = vector.broadcast %179 : vector<16x1xf32> to vector<16x64xf32>
    %181 = arith.mulf %180, %7 : vector<16x64xf32>
    %182 = arith.addf %178, %181 : vector<16x64xf32>
    %183 = vector.extract_strided_slice %0 {offsets = [0, 10], sizes = [16, 1], strides = [1, 1]} : vector<16x20xf32> to vector<16x1xf32>
    %184 = vector.broadcast %183 : vector<16x1xf32> to vector<16x64xf32>
    %185 = arith.mulf %184, %10 : vector<16x64xf32>
    %186 = arith.addf %182, %185 : vector<16x64xf32>
    %187 = vector.extract_strided_slice %0 {offsets = [0, 11], sizes = [16, 1], strides = [1, 1]} : vector<16x20xf32> to vector<16x1xf32>
    %188 = vector.broadcast %187 : vector<16x1xf32> to vector<16x64xf32>
    %189 = arith.mulf %188, %13 : vector<16x64xf32>
    %190 = arith.addf %186, %189 : vector<16x64xf32>
    %191 = vector.extract_strided_slice %0 {offsets = [0, 12], sizes = [16, 1], strides = [1, 1]} : vector<16x20xf32> to vector<16x1xf32>
    %192 = vector.broadcast %191 : vector<16x1xf32> to vector<16x64xf32>
    %193 = arith.mulf %192, %16 : vector<16x64xf32>
    %194 = arith.addf %190, %193 : vector<16x64xf32>
    %195 = arith.maximumf %175, %194 : vector<16x64xf32>
    %196 = vector.extract_strided_slice %0 {offsets = [0, 9], sizes = [16, 1], strides = [1, 1]} : vector<16x20xf32> to vector<16x1xf32>
    %197 = vector.broadcast %196 : vector<16x1xf32> to vector<16x64xf32>
    %198 = arith.mulf %197, %4 : vector<16x64xf32>
    %199 = vector.extract_strided_slice %0 {offsets = [0, 10], sizes = [16, 1], strides = [1, 1]} : vector<16x20xf32> to vector<16x1xf32>
    %200 = vector.broadcast %199 : vector<16x1xf32> to vector<16x64xf32>
    %201 = arith.mulf %200, %7 : vector<16x64xf32>
    %202 = arith.addf %198, %201 : vector<16x64xf32>
    %203 = vector.extract_strided_slice %0 {offsets = [0, 11], sizes = [16, 1], strides = [1, 1]} : vector<16x20xf32> to vector<16x1xf32>
    %204 = vector.broadcast %203 : vector<16x1xf32> to vector<16x64xf32>
    %205 = arith.mulf %204, %10 : vector<16x64xf32>
    %206 = arith.addf %202, %205 : vector<16x64xf32>
    %207 = vector.extract_strided_slice %0 {offsets = [0, 12], sizes = [16, 1], strides = [1, 1]} : vector<16x20xf32> to vector<16x1xf32>
    %208 = vector.broadcast %207 : vector<16x1xf32> to vector<16x64xf32>
    %209 = arith.mulf %208, %13 : vector<16x64xf32>
    %210 = arith.addf %206, %209 : vector<16x64xf32>
    %211 = vector.extract_strided_slice %0 {offsets = [0, 13], sizes = [16, 1], strides = [1, 1]} : vector<16x20xf32> to vector<16x1xf32>
    %212 = vector.broadcast %211 : vector<16x1xf32> to vector<16x64xf32>
    %213 = arith.mulf %212, %16 : vector<16x64xf32>
    %214 = arith.addf %210, %213 : vector<16x64xf32>
    %215 = arith.maximumf %195, %214 : vector<16x64xf32>
    %216 = vector.extract_strided_slice %0 {offsets = [0, 10], sizes = [16, 1], strides = [1, 1]} : vector<16x20xf32> to vector<16x1xf32>
    %217 = vector.broadcast %216 : vector<16x1xf32> to vector<16x64xf32>
    %218 = arith.mulf %217, %4 : vector<16x64xf32>
    %219 = vector.extract_strided_slice %0 {offsets = [0, 11], sizes = [16, 1], strides = [1, 1]} : vector<16x20xf32> to vector<16x1xf32>
    %220 = vector.broadcast %219 : vector<16x1xf32> to vector<16x64xf32>
    %221 = arith.mulf %220, %7 : vector<16x64xf32>
    %222 = arith.addf %218, %221 : vector<16x64xf32>
    %223 = vector.extract_strided_slice %0 {offsets = [0, 12], sizes = [16, 1], strides = [1, 1]} : vector<16x20xf32> to vector<16x1xf32>
    %224 = vector.broadcast %223 : vector<16x1xf32> to vector<16x64xf32>
    %225 = arith.mulf %224, %10 : vector<16x64xf32>
    %226 = arith.addf %222, %225 : vector<16x64xf32>
    %227 = vector.extract_strided_slice %0 {offsets = [0, 13], sizes = [16, 1], strides = [1, 1]} : vector<16x20xf32> to vector<16x1xf32>
    %228 = vector.broadcast %227 : vector<16x1xf32> to vector<16x64xf32>
    %229 = arith.mulf %228, %13 : vector<16x64xf32>
    %230 = arith.addf %226, %229 : vector<16x64xf32>
    %231 = vector.extract_strided_slice %0 {offsets = [0, 14], sizes = [16, 1], strides = [1, 1]} : vector<16x20xf32> to vector<16x1xf32>
    %232 = vector.broadcast %231 : vector<16x1xf32> to vector<16x64xf32>
    %233 = arith.mulf %232, %16 : vector<16x64xf32>
    %234 = arith.addf %230, %233 : vector<16x64xf32>
    %235 = arith.maximumf %215, %234 : vector<16x64xf32>
    %236 = vector.extract_strided_slice %0 {offsets = [0, 11], sizes = [16, 1], strides = [1, 1]} : vector<16x20xf32> to vector<16x1xf32>
    %237 = vector.broadcast %236 : vector<16x1xf32> to vector<16x64xf32>
    %238 = arith.mulf %237, %4 : vector<16x64xf32>
    %239 = vector.extract_strided_slice %0 {offsets = [0, 12], sizes = [16, 1], strides = [1, 1]} : vector<16x20xf32> to vector<16x1xf32>
    %240 = vector.broadcast %239 : vector<16x1xf32> to vector<16x64xf32>
    %241 = arith.mulf %240, %7 : vector<16x64xf32>
    %242 = arith.addf %238, %241 : vector<16x64xf32>
    %243 = vector.extract_strided_slice %0 {offsets = [0, 13], sizes = [16, 1], strides = [1, 1]} : vector<16x20xf32> to vector<16x1xf32>
    %244 = vector.broadcast %243 : vector<16x1xf32> to vector<16x64xf32>
    %245 = arith.mulf %244, %10 : vector<16x64xf32>
    %246 = arith.addf %242, %245 : vector<16x64xf32>
    %247 = vector.extract_strided_slice %0 {offsets = [0, 14], sizes = [16, 1], strides = [1, 1]} : vector<16x20xf32> to vector<16x1xf32>
    %248 = vector.broadcast %247 : vector<16x1xf32> to vector<16x64xf32>
    %249 = arith.mulf %248, %13 : vector<16x64xf32>
    %250 = arith.addf %246, %249 : vector<16x64xf32>
    %251 = vector.extract_strided_slice %0 {offsets = [0, 15], sizes = [16, 1], strides = [1, 1]} : vector<16x20xf32> to vector<16x1xf32>
    %252 = vector.broadcast %251 : vector<16x1xf32> to vector<16x64xf32>
    %253 = arith.mulf %252, %16 : vector<16x64xf32>
    %254 = arith.addf %250, %253 : vector<16x64xf32>
    %255 = arith.maximumf %235, %254 : vector<16x64xf32>
    %256 = vector.extract_strided_slice %0 {offsets = [0, 12], sizes = [16, 1], strides = [1, 1]} : vector<16x20xf32> to vector<16x1xf32>
    %257 = vector.broadcast %256 : vector<16x1xf32> to vector<16x64xf32>
    %258 = arith.mulf %257, %4 : vector<16x64xf32>
    %259 = vector.extract_strided_slice %0 {offsets = [0, 13], sizes = [16, 1], strides = [1, 1]} : vector<16x20xf32> to vector<16x1xf32>
    %260 = vector.broadcast %259 : vector<16x1xf32> to vector<16x64xf32>
    %261 = arith.mulf %260, %7 : vector<16x64xf32>
    %262 = arith.addf %258, %261 : vector<16x64xf32>
    %263 = vector.extract_strided_slice %0 {offsets = [0, 14], sizes = [16, 1], strides = [1, 1]} : vector<16x20xf32> to vector<16x1xf32>
    %264 = vector.broadcast %263 : vector<16x1xf32> to vector<16x64xf32>
    %265 = arith.mulf %264, %10 : vector<16x64xf32>
    %266 = arith.addf %262, %265 : vector<16x64xf32>
    %267 = vector.extract_strided_slice %0 {offsets = [0, 15], sizes = [16, 1], strides = [1, 1]} : vector<16x20xf32> to vector<16x1xf32>
    %268 = vector.broadcast %267 : vector<16x1xf32> to vector<16x64xf32>
    %269 = arith.mulf %268, %13 : vector<16x64xf32>
    %270 = arith.addf %266, %269 : vector<16x64xf32>
    %271 = vector.extract_strided_slice %0 {offsets = [0, 16], sizes = [16, 1], strides = [1, 1]} : vector<16x20xf32> to vector<16x1xf32>
    %272 = vector.broadcast %271 : vector<16x1xf32> to vector<16x64xf32>
    %273 = arith.mulf %272, %16 : vector<16x64xf32>
    %274 = arith.addf %270, %273 : vector<16x64xf32>
    %275 = arith.maximumf %255, %274 : vector<16x64xf32>
    %276 = vector.extract_strided_slice %0 {offsets = [0, 13], sizes = [16, 1], strides = [1, 1]} : vector<16x20xf32> to vector<16x1xf32>
    %277 = vector.broadcast %276 : vector<16x1xf32> to vector<16x64xf32>
    %278 = arith.mulf %277, %4 : vector<16x64xf32>
    %279 = vector.extract_strided_slice %0 {offsets = [0, 14], sizes = [16, 1], strides = [1, 1]} : vector<16x20xf32> to vector<16x1xf32>
    %280 = vector.broadcast %279 : vector<16x1xf32> to vector<16x64xf32>
    %281 = arith.mulf %280, %7 : vector<16x64xf32>
    %282 = arith.addf %278, %281 : vector<16x64xf32>
    %283 = vector.extract_strided_slice %0 {offsets = [0, 15], sizes = [16, 1], strides = [1, 1]} : vector<16x20xf32> to vector<16x1xf32>
    %284 = vector.broadcast %283 : vector<16x1xf32> to vector<16x64xf32>
    %285 = arith.mulf %284, %10 : vector<16x64xf32>
    %286 = arith.addf %282, %285 : vector<16x64xf32>
    %287 = vector.extract_strided_slice %0 {offsets = [0, 16], sizes = [16, 1], strides = [1, 1]} : vector<16x20xf32> to vector<16x1xf32>
    %288 = vector.broadcast %287 : vector<16x1xf32> to vector<16x64xf32>
    %289 = arith.mulf %288, %13 : vector<16x64xf32>
    %290 = arith.addf %286, %289 : vector<16x64xf32>
    %291 = vector.extract_strided_slice %0 {offsets = [0, 17], sizes = [16, 1], strides = [1, 1]} : vector<16x20xf32> to vector<16x1xf32>
    %292 = vector.broadcast %291 : vector<16x1xf32> to vector<16x64xf32>
    %293 = arith.mulf %292, %16 : vector<16x64xf32>
    %294 = arith.addf %290, %293 : vector<16x64xf32>
    %295 = arith.maximumf %275, %294 : vector<16x64xf32>
    %296 = vector.extract_strided_slice %0 {offsets = [0, 14], sizes = [16, 1], strides = [1, 1]} : vector<16x20xf32> to vector<16x1xf32>
    %297 = vector.broadcast %296 : vector<16x1xf32> to vector<16x64xf32>
    %298 = arith.mulf %297, %4 : vector<16x64xf32>
    %299 = vector.extract_strided_slice %0 {offsets = [0, 15], sizes = [16, 1], strides = [1, 1]} : vector<16x20xf32> to vector<16x1xf32>
    %300 = vector.broadcast %299 : vector<16x1xf32> to vector<16x64xf32>
    %301 = arith.mulf %300, %7 : vector<16x64xf32>
    %302 = arith.addf %298, %301 : vector<16x64xf32>
    %303 = vector.extract_strided_slice %0 {offsets = [0, 16], sizes = [16, 1], strides = [1, 1]} : vector<16x20xf32> to vector<16x1xf32>
    %304 = vector.broadcast %303 : vector<16x1xf32> to vector<16x64xf32>
    %305 = arith.mulf %304, %10 : vector<16x64xf32>
    %306 = arith.addf %302, %305 : vector<16x64xf32>
    %307 = vector.extract_strided_slice %0 {offsets = [0, 17], sizes = [16, 1], strides = [1, 1]} : vector<16x20xf32> to vector<16x1xf32>
    %308 = vector.broadcast %307 : vector<16x1xf32> to vector<16x64xf32>
    %309 = arith.mulf %308, %13 : vector<16x64xf32>
    %310 = arith.addf %306, %309 : vector<16x64xf32>
    %311 = vector.extract_strided_slice %0 {offsets = [0, 18], sizes = [16, 1], strides = [1, 1]} : vector<16x20xf32> to vector<16x1xf32>
    %312 = vector.broadcast %311 : vector<16x1xf32> to vector<16x64xf32>
    %313 = arith.mulf %312, %16 : vector<16x64xf32>
    %314 = arith.addf %310, %313 : vector<16x64xf32>
    %315 = arith.maximumf %295, %314 : vector<16x64xf32>
    %316 = vector.extract_strided_slice %0 {offsets = [0, 15], sizes = [16, 1], strides = [1, 1]} : vector<16x20xf32> to vector<16x1xf32>
    %317 = vector.broadcast %316 : vector<16x1xf32> to vector<16x64xf32>
    %318 = arith.mulf %317, %4 : vector<16x64xf32>
    %319 = vector.extract_strided_slice %0 {offsets = [0, 16], sizes = [16, 1], strides = [1, 1]} : vector<16x20xf32> to vector<16x1xf32>
    %320 = vector.broadcast %319 : vector<16x1xf32> to vector<16x64xf32>
    %321 = arith.mulf %320, %7 : vector<16x64xf32>
    %322 = arith.addf %318, %321 : vector<16x64xf32>
    %323 = vector.extract_strided_slice %0 {offsets = [0, 17], sizes = [16, 1], strides = [1, 1]} : vector<16x20xf32> to vector<16x1xf32>
    %324 = vector.broadcast %323 : vector<16x1xf32> to vector<16x64xf32>
    %325 = arith.mulf %324, %10 : vector<16x64xf32>
    %326 = arith.addf %322, %325 : vector<16x64xf32>
    %327 = vector.extract_strided_slice %0 {offsets = [0, 18], sizes = [16, 1], strides = [1, 1]} : vector<16x20xf32> to vector<16x1xf32>
    %328 = vector.broadcast %327 : vector<16x1xf32> to vector<16x64xf32>
    %329 = arith.mulf %328, %13 : vector<16x64xf32>
    %330 = arith.addf %326, %329 : vector<16x64xf32>
    %331 = vector.extract_strided_slice %0 {offsets = [0, 19], sizes = [16, 1], strides = [1, 1]} : vector<16x20xf32> to vector<16x1xf32>
    %332 = vector.broadcast %331 : vector<16x1xf32> to vector<16x64xf32>
    %333 = arith.mulf %332, %16 : vector<16x64xf32>
    %334 = arith.addf %330, %333 : vector<16x64xf32>
    %335 = arith.maximumf %315, %334 : vector<16x64xf32>
    %c0_3 = arith.constant 0 : index
    %c0_4 = arith.constant 0 : index
    %336 = vector.load %arg3[%c0_3, %c0_4] : memref<1x64xf32, #tpu.memory_space<vmem>>, vector<1x64xf32>
    %337 = vector.broadcast %336 : vector<1x64xf32> to vector<16x64xf32>
    %338 = arith.addf %335, %337 : vector<16x64xf32>
    %cst = arith.constant 0.000000e+00 : f32
    %339 = vector.broadcast %cst : f32 to vector<16x64xf32>
    %340 = arith.maximumf %338, %339 : vector<16x64xf32>
    %c0_5 = arith.constant 0 : index
    %c0_6 = arith.constant 0 : index
    %341 = vector.load %arg4[%c0_5, %c0_6] : memref<16x64xf32, #tpu.memory_space<vmem>>, vector<16x64xf32>
    %342 = tpu.concatenate %340, %341 in 1 : vector<16x64xf32>, vector<16x64xf32> -> vector<16x128xf32>
    %c0_7 = arith.constant 0 : index
    %c0_8 = arith.constant 0 : index
    %343 = vector.load %arg5[%c0_7, %c0_8] : memref<128x512xf32, #tpu.memory_space<vmem>>, vector<128x512xf32>
    %cst_9 = arith.constant dense<0.000000e+00> : vector<16x512xf32>
    %344 = tpu.matmul %342, %343, %cst_9 {dimension_numbers = #tpu.dot_dimension_numbers<[1], [0], [0], [1], [0, 0, 1, 1], [], []>} : vector<16x128xf32>, vector<128x512xf32>, vector<16x512xf32> -> vector<16x512xf32>
    %c0_10 = arith.constant 0 : index
    %c0_11 = arith.constant 0 : index
    %345 = vector.load %arg6[%c0_10, %c0_11] : memref<1x512xf32, #tpu.memory_space<vmem>>, vector<1x512xf32>
    %346 = vector.broadcast %345 : vector<1x512xf32> to vector<16x512xf32>
    %347 = arith.addf %344, %346 : vector<16x512xf32>
    %c0_12 = arith.constant 0 : index
    %c0_13 = arith.constant 0 : index
    %348 = vector.load %arg12[%c0_12, %c0_13] : memref<16x512xf32, #tpu.memory_space<vmem>>, vector<16x512xf32>
    tpu.vector_store %arg12[%c0_12, %c0_13], %347 {strides = array<i32>} : memref<16x512xf32, #tpu.memory_space<vmem>>, vector<16x512xf32>,
    %cst_14 = arith.constant 0.000000e+00 : f32
    %349 = vector.broadcast %cst_14 : f32 to vector<4x64xf32>
    %cst_15 = arith.constant 0.000000e+00 : f32
    %350 = vector.broadcast %cst_15 : f32 to vector<4x64xf32>
    %c0_16 = arith.constant 0 : index
    %c0_17 = arith.constant 0 : index
    %351 = vector.load %arg12[%c0_16, %c0_17] : memref<16x512xf32, #tpu.memory_space<vmem>>, vector<2x256xf32>
    %c14 = arith.constant 14 : index
    %c256 = arith.constant 256 : index
    %352 = vector.load %arg12[%c14, %c256] : memref<16x512xf32, #tpu.memory_space<vmem>>, vector<2x256xf32>
    %353 = vector.extract_strided_slice %349 {offsets = [0, 0], sizes = [2, 64], strides = [1, 1]} : vector<4x64xf32> to vector<2x64xf32>
    %c0_18 = arith.constant 0 : index
    %c0_19 = arith.constant 0 : index
    %354 = vector.load %arg7[%c0_18, %c0_19] : memref<64x256xf32, #tpu.memory_space<vmem>>, vector<64x256xf32>
    %cst_20 = arith.constant dense<0.000000e+00> : vector<2x256xf32>
    %355 = tpu.matmul %353, %354, %cst_20 {dimension_numbers = #tpu.dot_dimension_numbers<[1], [0], [0], [1], [0, 0, 1, 1], [], []>} : vector<2x64xf32>, vector<64x256xf32>, vector<2x256xf32> -> vector<2x256xf32>
    %356 = vector.extract_strided_slice %349 {offsets = [2, 0], sizes = [2, 64], strides = [1, 1]} : vector<4x64xf32> to vector<2x64xf32>
    %c0_21 = arith.constant 0 : index
    %c0_22 = arith.constant 0 : index
    %357 = vector.load %arg8[%c0_21, %c0_22] : memref<64x256xf32, #tpu.memory_space<vmem>>, vector<64x256xf32>
    %cst_23 = arith.constant dense<0.000000e+00> : vector<2x256xf32>
    %358 = tpu.matmul %356, %357, %cst_23 {dimension_numbers = #tpu.dot_dimension_numbers<[1], [0], [0], [1], [0, 0, 1, 1], [], []>} : vector<2x64xf32>, vector<64x256xf32>, vector<2x256xf32> -> vector<2x256xf32>
    %359 = arith.addf %351, %355 : vector<2x256xf32>
    %360 = arith.addf %352, %358 : vector<2x256xf32>
    %361 = tpu.concatenate %359, %360 in 0 : vector<2x256xf32>, vector<2x256xf32> -> vector<4x256xf32>
    %362 = arith.negf %361 : vector<4x256xf32>
    %363 = math.exp %362 : vector<4x256xf32>
    %cst_24 = arith.constant 1.000000e+00 : f32
    %364 = vector.broadcast %cst_24 : f32 to vector<4x256xf32>
    %365 = arith.addf %364, %363 : vector<4x256xf32>
    %366 = arith.divf %364, %365 : vector<4x256xf32>
    %367 = math.tanh %361 : vector<4x256xf32>
    %368 = vector.extract_strided_slice %366 {offsets = [0, 0], sizes = [4, 64], strides = [1, 1]} : vector<4x256xf32> to vector<4x64xf32>
    %369 = vector.extract_strided_slice %366 {offsets = [0, 64], sizes = [4, 64], strides = [1, 1]} : vector<4x256xf32> to vector<4x64xf32>
    %370 = vector.extract_strided_slice %367 {offsets = [0, 128], sizes = [4, 64], strides = [1, 1]} : vector<4x256xf32> to vector<4x64xf32>
    %371 = vector.extract_strided_slice %366 {offsets = [0, 192], sizes = [4, 64], strides = [1, 1]} : vector<4x256xf32> to vector<4x64xf32>
    %372 = arith.mulf %369, %350 : vector<4x64xf32>
    %373 = arith.mulf %368, %370 : vector<4x64xf32>
    %374 = arith.addf %372, %373 : vector<4x64xf32>
    %375 = math.tanh %374 : vector<4x64xf32>
    %376 = arith.mulf %371, %375 : vector<4x64xf32>
    %377 = vector.extract_strided_slice %376 {offsets = [0, 0], sizes = [2, 64], strides = [1, 1]} : vector<4x64xf32> to vector<2x64xf32>
    %c0_25 = arith.constant 0 : index
    %c0_26 = arith.constant 0 : index
    %378 = vector.load %arg13[%c0_25, %c0_26] : memref<16x128xf32, #tpu.memory_space<vmem>>, vector<2x64xf32>
    tpu.vector_store %arg13[%c0_25, %c0_26], %377 {strides = array<i32>} : memref<16x128xf32, #tpu.memory_space<vmem>>, vector<2x64xf32>,
    %379 = vector.extract_strided_slice %376 {offsets = [2, 0], sizes = [2, 64], strides = [1, 1]} : vector<4x64xf32> to vector<2x64xf32>
    %c14_27 = arith.constant 14 : index
    %c64 = arith.constant 64 : index
    %380 = vector.load %arg13[%c14_27, %c64] : memref<16x128xf32, #tpu.memory_space<vmem>>, vector<2x64xf32>
    tpu.vector_store %arg13[%c14_27, %c64], %379 {strides = array<i32>} : memref<16x128xf32, #tpu.memory_space<vmem>>, vector<2x64xf32>,
    %c2 = arith.constant 2 : index
    %c0_28 = arith.constant 0 : index
    %381 = vector.load %arg12[%c2, %c0_28] : memref<16x512xf32, #tpu.memory_space<vmem>>, vector<2x256xf32>
    %c12 = arith.constant 12 : index
    %c256_29 = arith.constant 256 : index
    %382 = vector.load %arg12[%c12, %c256_29] : memref<16x512xf32, #tpu.memory_space<vmem>>, vector<2x256xf32>
    %383 = vector.extract_strided_slice %376 {offsets = [0, 0], sizes = [2, 64], strides = [1, 1]} : vector<4x64xf32> to vector<2x64xf32>
    %c0_30 = arith.constant 0 : index
    %c0_31 = arith.constant 0 : index
    %384 = vector.load %arg7[%c0_30, %c0_31] : memref<64x256xf32, #tpu.memory_space<vmem>>, vector<64x256xf32>
    %cst_32 = arith.constant dense<0.000000e+00> : vector<2x256xf32>
    %385 = tpu.matmul %383, %384, %cst_32 {dimension_numbers = #tpu.dot_dimension_numbers<[1], [0], [0], [1], [0, 0, 1, 1], [], []>} : vector<2x64xf32>, vector<64x256xf32>, vector<2x256xf32> -> vector<2x256xf32>
    %386 = vector.extract_strided_slice %376 {offsets = [2, 0], sizes = [2, 64], strides = [1, 1]} : vector<4x64xf32> to vector<2x64xf32>
    %c0_33 = arith.constant 0 : index
    %c0_34 = arith.constant 0 : index
    %387 = vector.load %arg8[%c0_33, %c0_34] : memref<64x256xf32, #tpu.memory_space<vmem>>, vector<64x256xf32>
    %cst_35 = arith.constant dense<0.000000e+00> : vector<2x256xf32>
    %388 = tpu.matmul %386, %387, %cst_35 {dimension_numbers = #tpu.dot_dimension_numbers<[1], [0], [0], [1], [0, 0, 1, 1], [], []>} : vector<2x64xf32>, vector<64x256xf32>, vector<2x256xf32> -> vector<2x256xf32>
    %389 = arith.addf %381, %385 : vector<2x256xf32>
    %390 = arith.addf %382, %388 : vector<2x256xf32>
    %391 = tpu.concatenate %389, %390 in 0 : vector<2x256xf32>, vector<2x256xf32> -> vector<4x256xf32>
    %392 = arith.negf %391 : vector<4x256xf32>
    %393 = math.exp %392 : vector<4x256xf32>
    %cst_36 = arith.constant 1.000000e+00 : f32
    %394 = vector.broadcast %cst_36 : f32 to vector<4x256xf32>
    %395 = arith.addf %394, %393 : vector<4x256xf32>
    %396 = arith.divf %394, %395 : vector<4x256xf32>
    %397 = math.tanh %391 : vector<4x256xf32>
    %398 = vector.extract_strided_slice %396 {offsets = [0, 0], sizes = [4, 64], strides = [1, 1]} : vector<4x256xf32> to vector<4x64xf32>
    %399 = vector.extract_strided_slice %396 {offsets = [0, 64], sizes = [4, 64], strides = [1, 1]} : vector<4x256xf32> to vector<4x64xf32>
    %400 = vector.extract_strided_slice %397 {offsets = [0, 128], sizes = [4, 64], strides = [1, 1]} : vector<4x256xf32> to vector<4x64xf32>
    %401 = vector.extract_strided_slice %396 {offsets = [0, 192], sizes = [4, 64], strides = [1, 1]} : vector<4x256xf32> to vector<4x64xf32>
    %402 = arith.mulf %399, %374 : vector<4x64xf32>
    %403 = arith.mulf %398, %400 : vector<4x64xf32>
    %404 = arith.addf %402, %403 : vector<4x64xf32>
    %405 = math.tanh %404 : vector<4x64xf32>
    %406 = arith.mulf %401, %405 : vector<4x64xf32>
    %407 = vector.extract_strided_slice %406 {offsets = [0, 0], sizes = [2, 64], strides = [1, 1]} : vector<4x64xf32> to vector<2x64xf32>
    %c2_37 = arith.constant 2 : index
    %c0_38 = arith.constant 0 : index
    %408 = vector.load %arg13[%c2_37, %c0_38] : memref<16x128xf32, #tpu.memory_space<vmem>>, vector<2x64xf32>
    tpu.vector_store %arg13[%c2_37, %c0_38], %407 {strides = array<i32>} : memref<16x128xf32, #tpu.memory_space<vmem>>, vector<2x64xf32>,
    %409 = vector.extract_strided_slice %406 {offsets = [2, 0], sizes = [2, 64], strides = [1, 1]} : vector<4x64xf32> to vector<2x64xf32>
    %c12_39 = arith.constant 12 : index
    %c64_40 = arith.constant 64 : index
    %410 = vector.load %arg13[%c12_39, %c64_40] : memref<16x128xf32, #tpu.memory_space<vmem>>, vector<2x64xf32>
    tpu.vector_store %arg13[%c12_39, %c64_40], %409 {strides = array<i32>} : memref<16x128xf32, #tpu.memory_space<vmem>>, vector<2x64xf32>,
    %c4 = arith.constant 4 : index
    %c0_41 = arith.constant 0 : index
    %411 = vector.load %arg12[%c4, %c0_41] : memref<16x512xf32, #tpu.memory_space<vmem>>, vector<2x256xf32>
    %c10 = arith.constant 10 : index
    %c256_42 = arith.constant 256 : index
    %412 = vector.load %arg12[%c10, %c256_42] : memref<16x512xf32, #tpu.memory_space<vmem>>, vector<2x256xf32>
    %413 = vector.extract_strided_slice %406 {offsets = [0, 0], sizes = [2, 64], strides = [1, 1]} : vector<4x64xf32> to vector<2x64xf32>
    %c0_43 = arith.constant 0 : index
    %c0_44 = arith.constant 0 : index
    %414 = vector.load %arg7[%c0_43, %c0_44] : memref<64x256xf32, #tpu.memory_space<vmem>>, vector<64x256xf32>
    %cst_45 = arith.constant dense<0.000000e+00> : vector<2x256xf32>
    %415 = tpu.matmul %413, %414, %cst_45 {dimension_numbers = #tpu.dot_dimension_numbers<[1], [0], [0], [1], [0, 0, 1, 1], [], []>} : vector<2x64xf32>, vector<64x256xf32>, vector<2x256xf32> -> vector<2x256xf32>
    %416 = vector.extract_strided_slice %406 {offsets = [2, 0], sizes = [2, 64], strides = [1, 1]} : vector<4x64xf32> to vector<2x64xf32>
    %c0_46 = arith.constant 0 : index
    %c0_47 = arith.constant 0 : index
    %417 = vector.load %arg8[%c0_46, %c0_47] : memref<64x256xf32, #tpu.memory_space<vmem>>, vector<64x256xf32>
    %cst_48 = arith.constant dense<0.000000e+00> : vector<2x256xf32>
    %418 = tpu.matmul %416, %417, %cst_48 {dimension_numbers = #tpu.dot_dimension_numbers<[1], [0], [0], [1], [0, 0, 1, 1], [], []>} : vector<2x64xf32>, vector<64x256xf32>, vector<2x256xf32> -> vector<2x256xf32>
    %419 = arith.addf %411, %415 : vector<2x256xf32>
    %420 = arith.addf %412, %418 : vector<2x256xf32>
    %421 = tpu.concatenate %419, %420 in 0 : vector<2x256xf32>, vector<2x256xf32> -> vector<4x256xf32>
    %422 = arith.negf %421 : vector<4x256xf32>
    %423 = math.exp %422 : vector<4x256xf32>
    %cst_49 = arith.constant 1.000000e+00 : f32
    %424 = vector.broadcast %cst_49 : f32 to vector<4x256xf32>
    %425 = arith.addf %424, %423 : vector<4x256xf32>
    %426 = arith.divf %424, %425 : vector<4x256xf32>
    %427 = math.tanh %421 : vector<4x256xf32>
    %428 = vector.extract_strided_slice %426 {offsets = [0, 0], sizes = [4, 64], strides = [1, 1]} : vector<4x256xf32> to vector<4x64xf32>
    %429 = vector.extract_strided_slice %426 {offsets = [0, 64], sizes = [4, 64], strides = [1, 1]} : vector<4x256xf32> to vector<4x64xf32>
    %430 = vector.extract_strided_slice %427 {offsets = [0, 128], sizes = [4, 64], strides = [1, 1]} : vector<4x256xf32> to vector<4x64xf32>
    %431 = vector.extract_strided_slice %426 {offsets = [0, 192], sizes = [4, 64], strides = [1, 1]} : vector<4x256xf32> to vector<4x64xf32>
    %432 = arith.mulf %429, %404 : vector<4x64xf32>
    %433 = arith.mulf %428, %430 : vector<4x64xf32>
    %434 = arith.addf %432, %433 : vector<4x64xf32>
    %435 = math.tanh %434 : vector<4x64xf32>
    %436 = arith.mulf %431, %435 : vector<4x64xf32>
    %437 = vector.extract_strided_slice %436 {offsets = [0, 0], sizes = [2, 64], strides = [1, 1]} : vector<4x64xf32> to vector<2x64xf32>
    %c4_50 = arith.constant 4 : index
    %c0_51 = arith.constant 0 : index
    %438 = vector.load %arg13[%c4_50, %c0_51] : memref<16x128xf32, #tpu.memory_space<vmem>>, vector<2x64xf32>
    tpu.vector_store %arg13[%c4_50, %c0_51], %437 {strides = array<i32>} : memref<16x128xf32, #tpu.memory_space<vmem>>, vector<2x64xf32>,
    %439 = vector.extract_strided_slice %436 {offsets = [2, 0], sizes = [2, 64], strides = [1, 1]} : vector<4x64xf32> to vector<2x64xf32>
    %c10_52 = arith.constant 10 : index
    %c64_53 = arith.constant 64 : index
    %440 = vector.load %arg13[%c10_52, %c64_53] : memref<16x128xf32, #tpu.memory_space<vmem>>, vector<2x64xf32>
    tpu.vector_store %arg13[%c10_52, %c64_53], %439 {strides = array<i32>} : memref<16x128xf32, #tpu.memory_space<vmem>>, vector<2x64xf32>,
    %c6 = arith.constant 6 : index
    %c0_54 = arith.constant 0 : index
    %441 = vector.load %arg12[%c6, %c0_54] : memref<16x512xf32, #tpu.memory_space<vmem>>, vector<2x256xf32>
    %c8 = arith.constant 8 : index
    %c256_55 = arith.constant 256 : index
    %442 = vector.load %arg12[%c8, %c256_55] : memref<16x512xf32, #tpu.memory_space<vmem>>, vector<2x256xf32>
    %443 = vector.extract_strided_slice %436 {offsets = [0, 0], sizes = [2, 64], strides = [1, 1]} : vector<4x64xf32> to vector<2x64xf32>
    %c0_56 = arith.constant 0 : index
    %c0_57 = arith.constant 0 : index
    %444 = vector.load %arg7[%c0_56, %c0_57] : memref<64x256xf32, #tpu.memory_space<vmem>>, vector<64x256xf32>
    %cst_58 = arith.constant dense<0.000000e+00> : vector<2x256xf32>
    %445 = tpu.matmul %443, %444, %cst_58 {dimension_numbers = #tpu.dot_dimension_numbers<[1], [0], [0], [1], [0, 0, 1, 1], [], []>} : vector<2x64xf32>, vector<64x256xf32>, vector<2x256xf32> -> vector<2x256xf32>
    %446 = vector.extract_strided_slice %436 {offsets = [2, 0], sizes = [2, 64], strides = [1, 1]} : vector<4x64xf32> to vector<2x64xf32>
    %c0_59 = arith.constant 0 : index
    %c0_60 = arith.constant 0 : index
    %447 = vector.load %arg8[%c0_59, %c0_60] : memref<64x256xf32, #tpu.memory_space<vmem>>, vector<64x256xf32>
    %cst_61 = arith.constant dense<0.000000e+00> : vector<2x256xf32>
    %448 = tpu.matmul %446, %447, %cst_61 {dimension_numbers = #tpu.dot_dimension_numbers<[1], [0], [0], [1], [0, 0, 1, 1], [], []>} : vector<2x64xf32>, vector<64x256xf32>, vector<2x256xf32> -> vector<2x256xf32>
    %449 = arith.addf %441, %445 : vector<2x256xf32>
    %450 = arith.addf %442, %448 : vector<2x256xf32>
    %451 = tpu.concatenate %449, %450 in 0 : vector<2x256xf32>, vector<2x256xf32> -> vector<4x256xf32>
    %452 = arith.negf %451 : vector<4x256xf32>
    %453 = math.exp %452 : vector<4x256xf32>
    %cst_62 = arith.constant 1.000000e+00 : f32
    %454 = vector.broadcast %cst_62 : f32 to vector<4x256xf32>
    %455 = arith.addf %454, %453 : vector<4x256xf32>
    %456 = arith.divf %454, %455 : vector<4x256xf32>
    %457 = math.tanh %451 : vector<4x256xf32>
    %458 = vector.extract_strided_slice %456 {offsets = [0, 0], sizes = [4, 64], strides = [1, 1]} : vector<4x256xf32> to vector<4x64xf32>
    %459 = vector.extract_strided_slice %456 {offsets = [0, 64], sizes = [4, 64], strides = [1, 1]} : vector<4x256xf32> to vector<4x64xf32>
    %460 = vector.extract_strided_slice %457 {offsets = [0, 128], sizes = [4, 64], strides = [1, 1]} : vector<4x256xf32> to vector<4x64xf32>
    %461 = vector.extract_strided_slice %456 {offsets = [0, 192], sizes = [4, 64], strides = [1, 1]} : vector<4x256xf32> to vector<4x64xf32>
    %462 = arith.mulf %459, %434 : vector<4x64xf32>
    %463 = arith.mulf %458, %460 : vector<4x64xf32>
    %464 = arith.addf %462, %463 : vector<4x64xf32>
    %465 = math.tanh %464 : vector<4x64xf32>
    %466 = arith.mulf %461, %465 : vector<4x64xf32>
    %467 = vector.extract_strided_slice %466 {offsets = [0, 0], sizes = [2, 64], strides = [1, 1]} : vector<4x64xf32> to vector<2x64xf32>
    %c6_63 = arith.constant 6 : index
    %c0_64 = arith.constant 0 : index
    %468 = vector.load %arg13[%c6_63, %c0_64] : memref<16x128xf32, #tpu.memory_space<vmem>>, vector<2x64xf32>
    tpu.vector_store %arg13[%c6_63, %c0_64], %467 {strides = array<i32>} : memref<16x128xf32, #tpu.memory_space<vmem>>, vector<2x64xf32>,
    %469 = vector.extract_strided_slice %466 {offsets = [2, 0], sizes = [2, 64], strides = [1, 1]} : vector<4x64xf32> to vector<2x64xf32>
    %c8_65 = arith.constant 8 : index
    %c64_66 = arith.constant 64 : index
    %470 = vector.load %arg13[%c8_65, %c64_66] : memref<16x128xf32, #tpu.memory_space<vmem>>, vector<2x64xf32>
    tpu.vector_store %arg13[%c8_65, %c64_66], %469 {strides = array<i32>} : memref<16x128xf32, #tpu.memory_space<vmem>>, vector<2x64xf32>,
    %c8_67 = arith.constant 8 : index
    %c0_68 = arith.constant 0 : index
    %471 = vector.load %arg12[%c8_67, %c0_68] : memref<16x512xf32, #tpu.memory_space<vmem>>, vector<2x256xf32>
    %c6_69 = arith.constant 6 : index
    %c256_70 = arith.constant 256 : index
    %472 = vector.load %arg12[%c6_69, %c256_70] : memref<16x512xf32, #tpu.memory_space<vmem>>, vector<2x256xf32>
    %473 = vector.extract_strided_slice %466 {offsets = [0, 0], sizes = [2, 64], strides = [1, 1]} : vector<4x64xf32> to vector<2x64xf32>
    %c0_71 = arith.constant 0 : index
    %c0_72 = arith.constant 0 : index
    %474 = vector.load %arg7[%c0_71, %c0_72] : memref<64x256xf32, #tpu.memory_space<vmem>>, vector<64x256xf32>
    %cst_73 = arith.constant dense<0.000000e+00> : vector<2x256xf32>
    %475 = tpu.matmul %473, %474, %cst_73 {dimension_numbers = #tpu.dot_dimension_numbers<[1], [0], [0], [1], [0, 0, 1, 1], [], []>} : vector<2x64xf32>, vector<64x256xf32>, vector<2x256xf32> -> vector<2x256xf32>
    %476 = vector.extract_strided_slice %466 {offsets = [2, 0], sizes = [2, 64], strides = [1, 1]} : vector<4x64xf32> to vector<2x64xf32>
    %c0_74 = arith.constant 0 : index
    %c0_75 = arith.constant 0 : index
    %477 = vector.load %arg8[%c0_74, %c0_75] : memref<64x256xf32, #tpu.memory_space<vmem>>, vector<64x256xf32>
    %cst_76 = arith.constant dense<0.000000e+00> : vector<2x256xf32>
    %478 = tpu.matmul %476, %477, %cst_76 {dimension_numbers = #tpu.dot_dimension_numbers<[1], [0], [0], [1], [0, 0, 1, 1], [], []>} : vector<2x64xf32>, vector<64x256xf32>, vector<2x256xf32> -> vector<2x256xf32>
    %479 = arith.addf %471, %475 : vector<2x256xf32>
    %480 = arith.addf %472, %478 : vector<2x256xf32>
    %481 = tpu.concatenate %479, %480 in 0 : vector<2x256xf32>, vector<2x256xf32> -> vector<4x256xf32>
    %482 = arith.negf %481 : vector<4x256xf32>
    %483 = math.exp %482 : vector<4x256xf32>
    %cst_77 = arith.constant 1.000000e+00 : f32
    %484 = vector.broadcast %cst_77 : f32 to vector<4x256xf32>
    %485 = arith.addf %484, %483 : vector<4x256xf32>
    %486 = arith.divf %484, %485 : vector<4x256xf32>
    %487 = math.tanh %481 : vector<4x256xf32>
    %488 = vector.extract_strided_slice %486 {offsets = [0, 0], sizes = [4, 64], strides = [1, 1]} : vector<4x256xf32> to vector<4x64xf32>
    %489 = vector.extract_strided_slice %486 {offsets = [0, 64], sizes = [4, 64], strides = [1, 1]} : vector<4x256xf32> to vector<4x64xf32>
    %490 = vector.extract_strided_slice %487 {offsets = [0, 128], sizes = [4, 64], strides = [1, 1]} : vector<4x256xf32> to vector<4x64xf32>
    %491 = vector.extract_strided_slice %486 {offsets = [0, 192], sizes = [4, 64], strides = [1, 1]} : vector<4x256xf32> to vector<4x64xf32>
    %492 = arith.mulf %489, %464 : vector<4x64xf32>
    %493 = arith.mulf %488, %490 : vector<4x64xf32>
    %494 = arith.addf %492, %493 : vector<4x64xf32>
    %495 = math.tanh %494 : vector<4x64xf32>
    %496 = arith.mulf %491, %495 : vector<4x64xf32>
    %497 = vector.extract_strided_slice %496 {offsets = [0, 0], sizes = [2, 64], strides = [1, 1]} : vector<4x64xf32> to vector<2x64xf32>
    %c8_78 = arith.constant 8 : index
    %c0_79 = arith.constant 0 : index
    %498 = vector.load %arg13[%c8_78, %c0_79] : memref<16x128xf32, #tpu.memory_space<vmem>>, vector<2x64xf32>
    tpu.vector_store %arg13[%c8_78, %c0_79], %497 {strides = array<i32>} : memref<16x128xf32, #tpu.memory_space<vmem>>, vector<2x64xf32>,
    %499 = vector.extract_strided_slice %496 {offsets = [2, 0], sizes = [2, 64], strides = [1, 1]} : vector<4x64xf32> to vector<2x64xf32>
    %c6_80 = arith.constant 6 : index
    %c64_81 = arith.constant 64 : index
    %500 = vector.load %arg13[%c6_80, %c64_81] : memref<16x128xf32, #tpu.memory_space<vmem>>, vector<2x64xf32>
    tpu.vector_store %arg13[%c6_80, %c64_81], %499 {strides = array<i32>} : memref<16x128xf32, #tpu.memory_space<vmem>>, vector<2x64xf32>,
    %c10_82 = arith.constant 10 : index
    %c0_83 = arith.constant 0 : index
    %501 = vector.load %arg12[%c10_82, %c0_83] : memref<16x512xf32, #tpu.memory_space<vmem>>, vector<2x256xf32>
    %c4_84 = arith.constant 4 : index
    %c256_85 = arith.constant 256 : index
    %502 = vector.load %arg12[%c4_84, %c256_85] : memref<16x512xf32, #tpu.memory_space<vmem>>, vector<2x256xf32>
    %503 = vector.extract_strided_slice %496 {offsets = [0, 0], sizes = [2, 64], strides = [1, 1]} : vector<4x64xf32> to vector<2x64xf32>
    %c0_86 = arith.constant 0 : index
    %c0_87 = arith.constant 0 : index
    %504 = vector.load %arg7[%c0_86, %c0_87] : memref<64x256xf32, #tpu.memory_space<vmem>>, vector<64x256xf32>
    %cst_88 = arith.constant dense<0.000000e+00> : vector<2x256xf32>
    %505 = tpu.matmul %503, %504, %cst_88 {dimension_numbers = #tpu.dot_dimension_numbers<[1], [0], [0], [1], [0, 0, 1, 1], [], []>} : vector<2x64xf32>, vector<64x256xf32>, vector<2x256xf32> -> vector<2x256xf32>
    %506 = vector.extract_strided_slice %496 {offsets = [2, 0], sizes = [2, 64], strides = [1, 1]} : vector<4x64xf32> to vector<2x64xf32>
    %c0_89 = arith.constant 0 : index
    %c0_90 = arith.constant 0 : index
    %507 = vector.load %arg8[%c0_89, %c0_90] : memref<64x256xf32, #tpu.memory_space<vmem>>, vector<64x256xf32>
    %cst_91 = arith.constant dense<0.000000e+00> : vector<2x256xf32>
    %508 = tpu.matmul %506, %507, %cst_91 {dimension_numbers = #tpu.dot_dimension_numbers<[1], [0], [0], [1], [0, 0, 1, 1], [], []>} : vector<2x64xf32>, vector<64x256xf32>, vector<2x256xf32> -> vector<2x256xf32>
    %509 = arith.addf %501, %505 : vector<2x256xf32>
    %510 = arith.addf %502, %508 : vector<2x256xf32>
    %511 = tpu.concatenate %509, %510 in 0 : vector<2x256xf32>, vector<2x256xf32> -> vector<4x256xf32>
    %512 = arith.negf %511 : vector<4x256xf32>
    %513 = math.exp %512 : vector<4x256xf32>
    %cst_92 = arith.constant 1.000000e+00 : f32
    %514 = vector.broadcast %cst_92 : f32 to vector<4x256xf32>
    %515 = arith.addf %514, %513 : vector<4x256xf32>
    %516 = arith.divf %514, %515 : vector<4x256xf32>
    %517 = math.tanh %511 : vector<4x256xf32>
    %518 = vector.extract_strided_slice %516 {offsets = [0, 0], sizes = [4, 64], strides = [1, 1]} : vector<4x256xf32> to vector<4x64xf32>
    %519 = vector.extract_strided_slice %516 {offsets = [0, 64], sizes = [4, 64], strides = [1, 1]} : vector<4x256xf32> to vector<4x64xf32>
    %520 = vector.extract_strided_slice %517 {offsets = [0, 128], sizes = [4, 64], strides = [1, 1]} : vector<4x256xf32> to vector<4x64xf32>
    %521 = vector.extract_strided_slice %516 {offsets = [0, 192], sizes = [4, 64], strides = [1, 1]} : vector<4x256xf32> to vector<4x64xf32>
    %522 = arith.mulf %519, %494 : vector<4x64xf32>
    %523 = arith.mulf %518, %520 : vector<4x64xf32>
    %524 = arith.addf %522, %523 : vector<4x64xf32>
    %525 = math.tanh %524 : vector<4x64xf32>
    %526 = arith.mulf %521, %525 : vector<4x64xf32>
    %527 = vector.extract_strided_slice %526 {offsets = [0, 0], sizes = [2, 64], strides = [1, 1]} : vector<4x64xf32> to vector<2x64xf32>
    %c10_93 = arith.constant 10 : index
    %c0_94 = arith.constant 0 : index
    %528 = vector.load %arg13[%c10_93, %c0_94] : memref<16x128xf32, #tpu.memory_space<vmem>>, vector<2x64xf32>
    tpu.vector_store %arg13[%c10_93, %c0_94], %527 {strides = array<i32>} : memref<16x128xf32, #tpu.memory_space<vmem>>, vector<2x64xf32>,
    %529 = vector.extract_strided_slice %526 {offsets = [2, 0], sizes = [2, 64], strides = [1, 1]} : vector<4x64xf32> to vector<2x64xf32>
    %c4_95 = arith.constant 4 : index
    %c64_96 = arith.constant 64 : index
    %530 = vector.load %arg13[%c4_95, %c64_96] : memref<16x128xf32, #tpu.memory_space<vmem>>, vector<2x64xf32>
    tpu.vector_store %arg13[%c4_95, %c64_96], %529 {strides = array<i32>} : memref<16x128xf32, #tpu.memory_space<vmem>>, vector<2x64xf32>,
    %c12_97 = arith.constant 12 : index
    %c0_98 = arith.constant 0 : index
    %531 = vector.load %arg12[%c12_97, %c0_98] : memref<16x512xf32, #tpu.memory_space<vmem>>, vector<2x256xf32>
    %c2_99 = arith.constant 2 : index
    %c256_100 = arith.constant 256 : index
    %532 = vector.load %arg12[%c2_99, %c256_100] : memref<16x512xf32, #tpu.memory_space<vmem>>, vector<2x256xf32>
    %533 = vector.extract_strided_slice %526 {offsets = [0, 0], sizes = [2, 64], strides = [1, 1]} : vector<4x64xf32> to vector<2x64xf32>
    %c0_101 = arith.constant 0 : index
    %c0_102 = arith.constant 0 : index
    %534 = vector.load %arg7[%c0_101, %c0_102] : memref<64x256xf32, #tpu.memory_space<vmem>>, vector<64x256xf32>
    %cst_103 = arith.constant dense<0.000000e+00> : vector<2x256xf32>
    %535 = tpu.matmul %533, %534, %cst_103 {dimension_numbers = #tpu.dot_dimension_numbers<[1], [0], [0], [1], [0, 0, 1, 1], [], []>} : vector<2x64xf32>, vector<64x256xf32>, vector<2x256xf32> -> vector<2x256xf32>
    %536 = vector.extract_strided_slice %526 {offsets = [2, 0], sizes = [2, 64], strides = [1, 1]} : vector<4x64xf32> to vector<2x64xf32>
    %c0_104 = arith.constant 0 : index
    %c0_105 = arith.constant 0 : index
    %537 = vector.load %arg8[%c0_104, %c0_105] : memref<64x256xf32, #tpu.memory_space<vmem>>, vector<64x256xf32>
    %cst_106 = arith.constant dense<0.000000e+00> : vector<2x256xf32>
    %538 = tpu.matmul %536, %537, %cst_106 {dimension_numbers = #tpu.dot_dimension_numbers<[1], [0], [0], [1], [0, 0, 1, 1], [], []>} : vector<2x64xf32>, vector<64x256xf32>, vector<2x256xf32> -> vector<2x256xf32>
    %539 = arith.addf %531, %535 : vector<2x256xf32>
    %540 = arith.addf %532, %538 : vector<2x256xf32>
    %541 = tpu.concatenate %539, %540 in 0 : vector<2x256xf32>, vector<2x256xf32> -> vector<4x256xf32>
    %542 = arith.negf %541 : vector<4x256xf32>
    %543 = math.exp %542 : vector<4x256xf32>
    %cst_107 = arith.constant 1.000000e+00 : f32
    %544 = vector.broadcast %cst_107 : f32 to vector<4x256xf32>
    %545 = arith.addf %544, %543 : vector<4x256xf32>
    %546 = arith.divf %544, %545 : vector<4x256xf32>
    %547 = math.tanh %541 : vector<4x256xf32>
    %548 = vector.extract_strided_slice %546 {offsets = [0, 0], sizes = [4, 64], strides = [1, 1]} : vector<4x256xf32> to vector<4x64xf32>
    %549 = vector.extract_strided_slice %546 {offsets = [0, 64], sizes = [4, 64], strides = [1, 1]} : vector<4x256xf32> to vector<4x64xf32>
    %550 = vector.extract_strided_slice %547 {offsets = [0, 128], sizes = [4, 64], strides = [1, 1]} : vector<4x256xf32> to vector<4x64xf32>
    %551 = vector.extract_strided_slice %546 {offsets = [0, 192], sizes = [4, 64], strides = [1, 1]} : vector<4x256xf32> to vector<4x64xf32>
    %552 = arith.mulf %549, %524 : vector<4x64xf32>
    %553 = arith.mulf %548, %550 : vector<4x64xf32>
    %554 = arith.addf %552, %553 : vector<4x64xf32>
    %555 = math.tanh %554 : vector<4x64xf32>
    %556 = arith.mulf %551, %555 : vector<4x64xf32>
    %557 = vector.extract_strided_slice %556 {offsets = [0, 0], sizes = [2, 64], strides = [1, 1]} : vector<4x64xf32> to vector<2x64xf32>
    %c12_108 = arith.constant 12 : index
    %c0_109 = arith.constant 0 : index
    %558 = vector.load %arg13[%c12_108, %c0_109] : memref<16x128xf32, #tpu.memory_space<vmem>>, vector<2x64xf32>
    tpu.vector_store %arg13[%c12_108, %c0_109], %557 {strides = array<i32>} : memref<16x128xf32, #tpu.memory_space<vmem>>, vector<2x64xf32>,
    %559 = vector.extract_strided_slice %556 {offsets = [2, 0], sizes = [2, 64], strides = [1, 1]} : vector<4x64xf32> to vector<2x64xf32>
    %c2_110 = arith.constant 2 : index
    %c64_111 = arith.constant 64 : index
    %560 = vector.load %arg13[%c2_110, %c64_111] : memref<16x128xf32, #tpu.memory_space<vmem>>, vector<2x64xf32>
    tpu.vector_store %arg13[%c2_110, %c64_111], %559 {strides = array<i32>} : memref<16x128xf32, #tpu.memory_space<vmem>>, vector<2x64xf32>,
    %c14_112 = arith.constant 14 : index
    %c0_113 = arith.constant 0 : index
    %561 = vector.load %arg12[%c14_112, %c0_113] : memref<16x512xf32, #tpu.memory_space<vmem>>, vector<2x256xf32>
    %c0_114 = arith.constant 0 : index
    %c256_115 = arith.constant 256 : index
    %562 = vector.load %arg12[%c0_114, %c256_115] : memref<16x512xf32, #tpu.memory_space<vmem>>, vector<2x256xf32>
    %563 = vector.extract_strided_slice %556 {offsets = [0, 0], sizes = [2, 64], strides = [1, 1]} : vector<4x64xf32> to vector<2x64xf32>
    %c0_116 = arith.constant 0 : index
    %c0_117 = arith.constant 0 : index
    %564 = vector.load %arg7[%c0_116, %c0_117] : memref<64x256xf32, #tpu.memory_space<vmem>>, vector<64x256xf32>
    %cst_118 = arith.constant dense<0.000000e+00> : vector<2x256xf32>
    %565 = tpu.matmul %563, %564, %cst_118 {dimension_numbers = #tpu.dot_dimension_numbers<[1], [0], [0], [1], [0, 0, 1, 1], [], []>} : vector<2x64xf32>, vector<64x256xf32>, vector<2x256xf32> -> vector<2x256xf32>
    %566 = vector.extract_strided_slice %556 {offsets = [2, 0], sizes = [2, 64], strides = [1, 1]} : vector<4x64xf32> to vector<2x64xf32>
    %c0_119 = arith.constant 0 : index
    %c0_120 = arith.constant 0 : index
    %567 = vector.load %arg8[%c0_119, %c0_120] : memref<64x256xf32, #tpu.memory_space<vmem>>, vector<64x256xf32>
    %cst_121 = arith.constant dense<0.000000e+00> : vector<2x256xf32>
    %568 = tpu.matmul %566, %567, %cst_121 {dimension_numbers = #tpu.dot_dimension_numbers<[1], [0], [0], [1], [0, 0, 1, 1], [], []>} : vector<2x64xf32>, vector<64x256xf32>, vector<2x256xf32> -> vector<2x256xf32>
    %569 = arith.addf %561, %565 : vector<2x256xf32>
    %570 = arith.addf %562, %568 : vector<2x256xf32>
    %571 = tpu.concatenate %569, %570 in 0 : vector<2x256xf32>, vector<2x256xf32> -> vector<4x256xf32>
    %572 = arith.negf %571 : vector<4x256xf32>
    %573 = math.exp %572 : vector<4x256xf32>
    %cst_122 = arith.constant 1.000000e+00 : f32
    %574 = vector.broadcast %cst_122 : f32 to vector<4x256xf32>
    %575 = arith.addf %574, %573 : vector<4x256xf32>
    %576 = arith.divf %574, %575 : vector<4x256xf32>
    %577 = math.tanh %571 : vector<4x256xf32>
    %578 = vector.extract_strided_slice %576 {offsets = [0, 0], sizes = [4, 64], strides = [1, 1]} : vector<4x256xf32> to vector<4x64xf32>
    %579 = vector.extract_strided_slice %576 {offsets = [0, 64], sizes = [4, 64], strides = [1, 1]} : vector<4x256xf32> to vector<4x64xf32>
    %580 = vector.extract_strided_slice %577 {offsets = [0, 128], sizes = [4, 64], strides = [1, 1]} : vector<4x256xf32> to vector<4x64xf32>
    %581 = vector.extract_strided_slice %576 {offsets = [0, 192], sizes = [4, 64], strides = [1, 1]} : vector<4x256xf32> to vector<4x64xf32>
    %582 = arith.mulf %579, %554 : vector<4x64xf32>
    %583 = arith.mulf %578, %580 : vector<4x64xf32>
    %584 = arith.addf %582, %583 : vector<4x64xf32>
    %585 = math.tanh %584 : vector<4x64xf32>
    %586 = arith.mulf %581, %585 : vector<4x64xf32>
    %587 = vector.extract_strided_slice %586 {offsets = [0, 0], sizes = [2, 64], strides = [1, 1]} : vector<4x64xf32> to vector<2x64xf32>
    %c14_123 = arith.constant 14 : index
    %c0_124 = arith.constant 0 : index
    %588 = vector.load %arg13[%c14_123, %c0_124] : memref<16x128xf32, #tpu.memory_space<vmem>>, vector<2x64xf32>
    tpu.vector_store %arg13[%c14_123, %c0_124], %587 {strides = array<i32>} : memref<16x128xf32, #tpu.memory_space<vmem>>, vector<2x64xf32>,
    %589 = vector.extract_strided_slice %586 {offsets = [2, 0], sizes = [2, 64], strides = [1, 1]} : vector<4x64xf32> to vector<2x64xf32>
    %c0_125 = arith.constant 0 : index
    %c64_126 = arith.constant 64 : index
    %590 = vector.load %arg13[%c0_125, %c64_126] : memref<16x128xf32, #tpu.memory_space<vmem>>, vector<2x64xf32>
    tpu.vector_store %arg13[%c0_125, %c64_126], %589 {strides = array<i32>} : memref<16x128xf32, #tpu.memory_space<vmem>>, vector<2x64xf32>,
    %c0_127 = arith.constant 0 : index
    %c0_128 = arith.constant 0 : index
    %591 = vector.load %arg13[%c0_127, %c0_128] : memref<16x128xf32, #tpu.memory_space<vmem>>, vector<16x128xf32>
    %c0_129 = arith.constant 0 : index
    %c0_130 = arith.constant 0 : index
    %592 = vector.load %arg9[%c0_129, %c0_130] : memref<128x128xf32, #tpu.memory_space<vmem>>, vector<128x128xf32>
    %cst_131 = arith.constant dense<0.000000e+00> : vector<16x128xf32>
    %593 = tpu.matmul %591, %592, %cst_131 {dimension_numbers = #tpu.dot_dimension_numbers<[1], [0], [0], [1], [0, 0, 1, 1], [], []>} : vector<16x128xf32>, vector<128x128xf32>, vector<16x128xf32> -> vector<16x128xf32>
    %c0_132 = arith.constant 0 : index
    %c0_133 = arith.constant 0 : index
    %594 = vector.load %arg10[%c0_132, %c0_133] : memref<1x128xf32, #tpu.memory_space<vmem>>, vector<1x128xf32>
    %595 = vector.broadcast %594 : vector<1x128xf32> to vector<16x128xf32>
    %596 = arith.addf %593, %595 : vector<16x128xf32>
    %c0_134 = arith.constant 0 : index
    %c0_135 = arith.constant 0 : index
    %597 = vector.load %arg11[%c0_134, %c0_135] : memref<16x128xf32, #tpu.memory_space<vmem>>, vector<16x128xf32>
    tpu.vector_store %arg11[%c0_134, %c0_135], %596 {strides = array<i32>} : memref<16x128xf32, #tpu.memory_space<vmem>>, vector<16x128xf32>,
    return
  }
  func.func @transform_0(%arg0: i32) -> (i32, i32) {
    %c0_i32 = arith.constant 0 : i32
    %c0_i32_0 = arith.constant 0 : i32
    %c0_i32_1 = arith.constant 0 : i32
    return %c0_i32, %c0_i32_0 : i32, i32
  }
  func.func @transform_1(%arg0: i32) -> (i32, i32) {
    %c0_i32 = arith.constant 0 : i32
    %c0_i32_0 = arith.constant 0 : i32
    %c0_i32_1 = arith.constant 0 : i32
    return %c0_i32, %c0_i32_0 : i32, i32
  }
  func.func @transform_2(%arg0: i32) -> (i32, i32) {
    %c0_i32 = arith.constant 0 : i32
    %c0_i32_0 = arith.constant 0 : i32
    %c0_i32_1 = arith.constant 0 : i32
    return %c0_i32, %c0_i32_0 : i32, i32
  }
  func.func @transform_3(%arg0: i32) -> (i32, i32) {
    %c0_i32 = arith.constant 0 : i32
    %c0_i32_0 = arith.constant 0 : i32
    %c0_i32_1 = arith.constant 0 : i32
    return %c0_i32, %c0_i32_0 : i32, i32
  }
  func.func @transform_4(%arg0: i32) -> (i32, i32) {
    %c0_i32 = arith.constant 0 : i32
    %c0_i32_0 = arith.constant 0 : i32
    %c0_i32_1 = arith.constant 0 : i32
    return %c0_i32, %c0_i32_0 : i32, i32
  }
  func.func @transform_5(%arg0: i32) -> (i32, i32) {
    %c0_i32 = arith.constant 0 : i32
    %c0_i32_0 = arith.constant 0 : i32
    %c0_i32_1 = arith.constant 0 : i32
    return %c0_i32, %c0_i32_0 : i32, i32
  }
  func.func @transform_6(%arg0: i32) -> (i32, i32) {
    %c0_i32 = arith.constant 0 : i32
    %c0_i32_0 = arith.constant 0 : i32
    %c0_i32_1 = arith.constant 0 : i32
    return %c0_i32, %c0_i32_0 : i32, i32
  }
  func.func @transform_7(%arg0: i32) -> (i32, i32) {
    %c0_i32 = arith.constant 0 : i32
    %c0_i32_0 = arith.constant 0 : i32
    %c0_i32_1 = arith.constant 0 : i32
    return %c0_i32, %c0_i32_0 : i32, i32
  }
  func.func @transform_8(%arg0: i32) -> (i32, i32) {
    %c0_i32 = arith.constant 0 : i32
    %c0_i32_0 = arith.constant 0 : i32
    %c0_i32_1 = arith.constant 0 : i32
    return %c0_i32, %c0_i32_0 : i32, i32
  }
  func.func @transform_9(%arg0: i32) -> (i32, i32) {
    %c0_i32 = arith.constant 0 : i32
    %c0_i32_0 = arith.constant 0 : i32
    %c0_i32_1 = arith.constant 0 : i32
    return %c0_i32, %c0_i32_0 : i32, i32
  }
  func.func @transform_10(%arg0: i32) -> (i32, i32) {
    %c0_i32 = arith.constant 0 : i32
    %c0_i32_0 = arith.constant 0 : i32
    %c0_i32_1 = arith.constant 0 : i32
    return %c0_i32, %c0_i32_0 : i32, i32
  }
}

</mosaic_0001>

<llo_original>
// kernel: model_forward.1
$region0: #{model_forward.1}
  #allocation0 [shape = 'u32[]', space=smem, size = 0x4, offset = 0x4, fixed_abs, tag = 'smem constant byte address 0x4 - core index']
  #allocation1 [shape = 'u32[144,128]{1,0:T(1,128)}', space=vmem, size = 0x12000, scoped, tag = 'internal scratch']
  #allocation2 [shape = 'f32[16,512]{1,0:T(8,128)}', space=vmem, size = 0x8000, scoped, tag = 'scratch operand']
  #allocation3 [shape = 'f32[16,128]{1,0:T(8,128)}', space=vmem, size = 0x2000, scoped, tag = 'scratch operand']
  %s0 = inlined_call_operand.vmem [shape: f32[16,20], index: 0, kind: input, shape index: {}]
  %s1 = inlined_call_operand.vmem [shape: f32[5,64], index: 1, kind: input, shape index: {}]
  %s2 = inlined_call_operand.vmem [shape: f32[1,64], index: 2, kind: input, shape index: {}]
  %s3 = inlined_call_operand.vmem [shape: f32[16,64], index: 3, kind: input, shape index: {}]
  %s4 = inlined_call_operand.hbm [shape: f32[128,512], index: 4, kind: input, shape index: {}]
  %s5 = inlined_call_operand.vmem [shape: f32[1,512], index: 5, kind: input, shape index: {}]
  %s6 = inlined_call_operand.vmem [shape: f32[64,256], index: 6, kind: input, shape index: {}]
  %s7 = inlined_call_operand.hbm [shape: f32[64,256], index: 7, kind: input, shape index: {}]
  %s8 = inlined_call_operand.hbm [shape: f32[128,128], index: 8, kind: input, shape index: {}]
  %s9 = inlined_call_operand.vmem [shape: f32[1,128], index: 9, kind: input, shape index: {}]
  %s10 = inlined_call_operand.hbm [shape: f32[16,128], index: 10, kind: output, shape index: {}]
  %s11 = sld [smem:[#allocation0]]
  $region62: #{model_forward.1} parent=0
    _
  %s13 = ssub.s32 1, %s11
  %s14 = scalar_select 0, %s13, %s11
  $region1: #{model_forward.1} parent=0
    #allocation4 [shape = 'u8[262144]{0}', space=vmem, size = 0x40000, scoped, tag = 'input window, operand 4, single buffered']
    #allocation5 [shape = 's32[1]{0}', space=sflag, size = 0x4, scoped, tag = 'scoped memory for model_forward.1']
    #allocation6 [shape = 's32[1]{0}', space=sflag, size = 0x4, scoped, tag = 'scoped memory for model_forward.1']
    #allocation7 [shape = 'u8[65536]{0}', space=vmem, size = 0x10000, scoped, tag = 'input window, operand 7, single buffered']
    #allocation8 [shape = 's32[1]{0}', space=sflag, size = 0x4, scoped, tag = 'scoped memory for model_forward.1']
    #allocation9 [shape = 'u8[65536]{0}', space=vmem, size = 0x10000, scoped, tag = 'input window, operand 8, single buffered']
    #allocation10 [shape = 'u8[8192]{0}', space=vmem, size = 0x2000, scoped, tag = 'output window, operand 0, single buffered']
    %15 = vsyncpa [#allocation5], 0
    %16 = vsyncpa [#allocation8], 0
    %17 = vsyncpa [#allocation6], 0
    // Predicated region
    $region2: #{model_forward.1} parent=1 // pred_check
      _
    $region3: #{model_forward.1} parent=1 // pred_check_branch
      %19 = sbr.rel (0) target = $region5
    $region4: #{model_forward.1} parent=1 // pred_region
      _
    $region5: #{model_forward.1} parent=1 // pred_fallthru
      _
    // Predicated region
    $region6: #{model_forward.1} parent=1 // pred_check
      _
    $region7: #{model_forward.1} parent=1 // pred_check_branch
      %21 = sbr.rel (0) target = $region9
    $region8: #{model_forward.1} parent=1 // pred_region
      _
    $region9: #{model_forward.1} parent=1 // pred_fallthru
      _
    // Predicated region
    $region10: #{model_forward.1} parent=1 // pred_check
      _
    $region11: #{model_forward.1} parent=1 // pred_check_branch
      %23 = sbr.rel (0) target = $region13
    $region12: #{model_forward.1} parent=1 // pred_region
      _
    $region13: #{model_forward.1} parent=1 // pred_fallthru
      _
    // Predicated region
    $region14: #{model_forward.1} parent=1 // pred_check
      _
    $region15: #{model_forward.1} parent=1 // pred_check_branch
      %25 = sbr.rel (0) target = $region17
    $region16: #{model_forward.1} parent=1 // pred_region
      _
    $region17: #{model_forward.1} parent=1 // pred_fallthru
      _
    // Predicated region
    $region18: #{model_forward.1} parent=1 // pred_check
      _
    $region19: #{model_forward.1} parent=1 // pred_check_branch
      %27 = sbr.rel (0) target = $region21
    $region20: #{model_forward.1} parent=1 // pred_region
      %s29 = ssub.s32 8192, 8192
      %30 = vsyncadd [#allocation5], %s29
      %s31 = sshll.u32 [#allocation4], 4
      %s32 = int_to_ptr.vmem [resolvable:$true] %s31
      %37 = dma.hbm_to_vmem [thread:$0]  %s4, 8192, %s32, [#allocation5], 512, 512, 32
    $region21: #{model_forward.1} parent=1 // pred_fallthru
      _
    // Predicated region
    $region22: #{model_forward.1} parent=1 // pred_check
      _
    $region23: #{model_forward.1} parent=1 // pred_check_branch
      %39 = sbr.rel (0) target = $region25
    $region24: #{model_forward.1} parent=1 // pred_region
      _
    $region25: #{model_forward.1} parent=1 // pred_fallthru
      _
    // Predicated region
    $region26: #{model_forward.1} parent=1 // pred_check
      _
    $region27: #{model_forward.1} parent=1 // pred_check_branch
      %41 = sbr.rel (0) target = $region29
    $region28: #{model_forward.1} parent=1 // pred_region
      _
    $region29: #{model_forward.1} parent=1 // pred_fallthru
      _
    // Predicated region
    $region30: #{model_forward.1} parent=1 // pred_check
      _
    $region31: #{model_forward.1} parent=1 // pred_check_branch
      %43 = sbr.rel (0) target = $region33
    $region32: #{model_forward.1} parent=1 // pred_region
      %s45 = ssub.s32 2048, 2048
      %46 = vsyncadd [#allocation8], %s45
      %s47 = sshll.u32 [#allocation7], 4
      %s48 = int_to_ptr.vmem [resolvable:$true] %s47
      %53 = dma.hbm_to_vmem [thread:$0]  %s7, 2048, %s48, [#allocation8], 256, 256, 16
    $region33: #{model_forward.1} parent=1 // pred_fallthru
      _
    // Predicated region
    $region34: #{model_forward.1} parent=1 // pred_check
      _
    $region35: #{model_forward.1} parent=1 // pred_check_branch
      %55 = sbr.rel (0) target = $region37
    $region36: #{model_forward.1} parent=1 // pred_region
      %s57 = ssub.s32 2048, 2048
      %58 = vsyncadd [#allocation8], %s57
      %s59 = sshll.u32 [#allocation9], 4
      %s60 = int_to_ptr.vmem [resolvable:$true] %s59
      %65 = dma.hbm_to_vmem [thread:$0]  %s8, 2048, %s60, [#allocation8], 128, 128, 8
    $region37: #{model_forward.1} parent=1 // pred_fallthru
      _
    // Predicated region
    $region38: #{model_forward.1} parent=1 // pred_check
      _
    $region39: #{model_forward.1} parent=1 // pred_check_branch
      %67 = sbr.rel (0) target = $region41
    $region40: #{model_forward.1} parent=1 // pred_region
      _
    $region41: #{model_forward.1} parent=1 // pred_fallthru
      _
    // Predicated region
    $region42: #{model_forward.1} parent=1 // pred_check
      _
    $region43: #{model_forward.1} parent=1 // pred_check_branch
      %69 = sbr.rel (0) target = $region45
    $region44: #{model_forward.1} parent=1 // pred_region
      %70 = dma.done [#allocation5], 8192
    $region45: #{model_forward.1} parent=1 // pred_fallthru
      _
    // Predicated region
    $region46: #{model_forward.1} parent=1 // pred_check
      _
    $region47: #{model_forward.1} parent=1 // pred_check_branch
      %72 = sbr.rel (0) target = $region49
    $region48: #{model_forward.1} parent=1 // pred_region
      %73 = dma.done [#allocation8], 2048
    $region49: #{model_forward.1} parent=1 // pred_fallthru
      _
    // Predicated region
    $region50: #{model_forward.1} parent=1 // pred_check
      _
    $region51: #{model_forward.1} parent=1 // pred_check_branch
      %75 = sbr.rel (0) target = $region53
    $region52: #{model_forward.1} parent=1 // pred_region
      %76 = dma.done [#allocation8], 2048
    $region53: #{model_forward.1} parent=1 // pred_fallthru
      _
    %v77 = vld [vmem:[%s0] sm:$0xff]
    %v78 = vld [vmem:[%s0 + $0x8] sm:$0xff]
    %v79 = vld [vmem:[%s1] sm:$0x1f]
    %v80 = vlaneseq
    %v81 = vshrl.u32 %v80, 7
    %v82 = vsub.s32 0, %v81
    %v83 = vrot.slane %v79, %v82
    %v84 = vlaneseq
    %v85 = vshrl.u32 %v84, 7
    %v86 = vsub.s32 1, %v85
    %v87 = vrot.slane %v79, %v86
    %v88 = vlaneseq
    %v89 = vshrl.u32 %v88, 7
    %v90 = vsub.s32 2, %v89
    %v91 = vrot.slane %v79, %v90
    %v92 = vlaneseq
    %v93 = vshrl.u32 %v92, 7
    %v94 = vsub.s32 3, %v93
    %v95 = vrot.slane %v79, %v94
    %v96 = vlaneseq
    %v97 = vshrl.u32 %v96, 7
    %v98 = vsub.s32 4, %v97
    %v99 = vrot.slane %v79, %v98
    %101 = vset.pattern.permute.xlu0 0
    %102 = vperm.xlu0 %101, %v77
    %v103 = vpop.permute.xlu0 %102
    %106 = vset.pattern.permute.xlu0 0
    %107 = vperm.xlu0 %106, %v78
    %v108 = vpop.permute.xlu0 %107
    %v110 = vmul.f32 %v103, %v83
    %v111 = vmul.f32 %v108, %v83
    %112 = vset.pattern.permute.xlu0 1
    %113 = vperm.xlu0 %112, %v77
    %v114 = vpop.permute.xlu0 %113
    %116 = vset.pattern.permute.xlu0 1
    %117 = vperm.xlu0 %116, %v78
    %v118 = vpop.permute.xlu0 %117
    %v120 = vmul.f32 %v114, %v87
    %v121 = vmul.f32 %v118, %v87
    %v122 = vadd.f32 %v110, %v120
    %v123 = vadd.f32 %v111, %v121
    %124 = vset.pattern.permute.xlu0 2
    %125 = vperm.xlu0 %124, %v77
    %v126 = vpop.permute.xlu0 %125
    %128 = vset.pattern.permute.xlu0 2
    %129 = vperm.xlu0 %128, %v78
    %v130 = vpop.permute.xlu0 %129
    %v132 = vmul.f32 %v126, %v91
    %v133 = vmul.f32 %v130, %v91
    %v134 = vadd.f32 %v122, %v132
    %v135 = vadd.f32 %v123, %v133
    %136 = vset.pattern.permute.xlu0 3
    %137 = vperm.xlu0 %136, %v77
    %v138 = vpop.permute.xlu0 %137
    %140 = vset.pattern.permute.xlu0 3
    %141 = vperm.xlu0 %140, %v78
    %v142 = vpop.permute.xlu0 %141
    %v144 = vmul.f32 %v138, %v95
    %v145 = vmul.f32 %v142, %v95
    %v146 = vadd.f32 %v134, %v144
    %v147 = vadd.f32 %v135, %v145
    %148 = vset.pattern.permute.xlu0 4
    %149 = vperm.xlu0 %148, %v77
    %v150 = vpop.permute.xlu0 %149
    %152 = vset.pattern.permute.xlu0 4
    %153 = vperm.xlu0 %152, %v78
    %v154 = vpop.permute.xlu0 %153
    %v156 = vmul.f32 %v150, %v99
    %v157 = vmul.f32 %v154, %v99
    %v158 = vadd.f32 %v146, %v156
    %v159 = vadd.f32 %v147, %v157
    %v160 = vmul.f32 %v114, %v83
    %v161 = vmul.f32 %v118, %v83
    %v162 = vmul.f32 %v126, %v87
    %v163 = vmul.f32 %v130, %v87
    %v164 = vadd.f32 %v160, %v162
    %v165 = vadd.f32 %v161, %v163
    %v166 = vmul.f32 %v138, %v91
    %v167 = vmul.f32 %v142, %v91
    %v168 = vadd.f32 %v164, %v166
    %v169 = vadd.f32 %v165, %v167
    %v170 = vmul.f32 %v150, %v95
    %v171 = vmul.f32 %v154, %v95
    %v172 = vadd.f32 %v168, %v170
    %v173 = vadd.f32 %v169, %v171
    %174 = vset.pattern.permute.xlu0 5
    %175 = vperm.xlu0 %174, %v77
    %v176 = vpop.permute.xlu0 %175
    %178 = vset.pattern.permute.xlu0 5
    %179 = vperm.xlu0 %178, %v78
    %v180 = vpop.permute.xlu0 %179
    %v182 = vmul.f32 %v176, %v99
    %v183 = vmul.f32 %v180, %v99
    %v184 = vadd.f32 %v172, %v182
    %v185 = vadd.f32 %v173, %v183
    %v186 = vmax.f32 %v158, %v184
    %v187 = vmax.f32 %v159, %v185
    %v188 = vmul.f32 %v126, %v83
    %v189 = vmul.f32 %v130, %v83
    %v190 = vmul.f32 %v138, %v87
    %v191 = vmul.f32 %v142, %v87
    %v192 = vadd.f32 %v188, %v190
    %v193 = vadd.f32 %v189, %v191
    %v194 = vmul.f32 %v150, %v91
    %v195 = vmul.f32 %v154, %v91
    %v196 = vadd.f32 %v192, %v194
    %v197 = vadd.f32 %v193, %v195
    %v198 = vmul.f32 %v176, %v95
    %v199 = vmul.f32 %v180, %v95
    %v200 = vadd.f32 %v196, %v198
    %v201 = vadd.f32 %v197, %v199
    %202 = vset.pattern.permute.xlu0 6
    %203 = vperm.xlu0 %202, %v77
    %v204 = vpop.permute.xlu0 %203
    %206 = vset.pattern.permute.xlu0 6
    %207 = vperm.xlu0 %206, %v78
    %v208 = vpop.permute.xlu0 %207
    %v210 = vmul.f32 %v204, %v99
    %v211 = vmul.f32 %v208, %v99
    %v212 = vadd.f32 %v200, %v210
    %v213 = vadd.f32 %v201, %v211
    %v214 = vmax.f32 %v186, %v212
    %v215 = vmax.f32 %v187, %v213
    %v216 = vmul.f32 %v138, %v83
    %v217 = vmul.f32 %v142, %v83
    %v218 = vmul.f32 %v150, %v87
    %v219 = vmul.f32 %v154, %v87
    %v220 = vadd.f32 %v216, %v218
    %v221 = vadd.f32 %v217, %v219
    %v222 = vmul.f32 %v176, %v91
    %v223 = vmul.f32 %v180, %v91
    %v224 = vadd.f32 %v220, %v222
    %v225 = vadd.f32 %v221, %v223
    %v226 = vmul.f32 %v204, %v95
    %v227 = vmul.f32 %v208, %v95
    %v228 = vadd.f32 %v224, %v226
    %v229 = vadd.f32 %v225, %v227
    %230 = vset.pattern.permute.xlu0 7
    %231 = vperm.xlu0 %230, %v77
    %v232 = vpop.permute.xlu0 %231
    %234 = vset.pattern.permute.xlu0 7
    %235 = vperm.xlu0 %234, %v78
    %v236 = vpop.permute.xlu0 %235
    %v238 = vmul.f32 %v232, %v99
    %v239 = vmul.f32 %v236, %v99
    %v240 = vadd.f32 %v228, %v238
    %v241 = vadd.f32 %v229, %v239
    %v242 = vmax.f32 %v214, %v240
    %v243 = vmax.f32 %v215, %v241
    %v244 = vmul.f32 %v150, %v83
    %v245 = vmul.f32 %v154, %v83
    %v246 = vmul.f32 %v176, %v87
    %v247 = vmul.f32 %v180, %v87
    %v248 = vadd.f32 %v244, %v246
    %v249 = vadd.f32 %v245, %v247
    %v250 = vmul.f32 %v204, %v91
    %v251 = vmul.f32 %v208, %v91
    %v252 = vadd.f32 %v248, %v250
    %v253 = vadd.f32 %v249, %v251
    %v254 = vmul.f32 %v232, %v95
    %v255 = vmul.f32 %v236, %v95
    %v256 = vadd.f32 %v252, %v254
    %v257 = vadd.f32 %v253, %v255
    %258 = vset.pattern.permute.xlu0 8
    %259 = vperm.xlu0 %258, %v77
    %v260 = vpop.permute.xlu0 %259
    %262 = vset.pattern.permute.xlu0 8
    %263 = vperm.xlu0 %262, %v78
    %v264 = vpop.permute.xlu0 %263
    %v266 = vmul.f32 %v260, %v99
    %v267 = vmul.f32 %v264, %v99
    %v268 = vadd.f32 %v256, %v266
    %v269 = vadd.f32 %v257, %v267
    %v270 = vmax.f32 %v242, %v268
    %v271 = vmax.f32 %v243, %v269
    %v272 = vmul.f32 %v176, %v83
    %v273 = vmul.f32 %v180, %v83
    %v274 = vmul.f32 %v204, %v87
    %v275 = vmul.f32 %v208, %v87
    %v276 = vadd.f32 %v272, %v274
    %v277 = vadd.f32 %v273, %v275
    %v278 = vmul.f32 %v232, %v91
    %v279 = vmul.f32 %v236, %v91
    %v280 = vadd.f32 %v276, %v278
    %v281 = vadd.f32 %v277, %v279
    %v282 = vmul.f32 %v260, %v95
    %v283 = vmul.f32 %v264, %v95
    %v284 = vadd.f32 %v280, %v282
    %v285 = vadd.f32 %v281, %v283
    %286 = vset.pattern.permute.xlu0 9
    %287 = vperm.xlu0 %286, %v77
    %v288 = vpop.permute.xlu0 %287
    %290 = vset.pattern.permute.xlu0 9
    %291 = vperm.xlu0 %290, %v78
    %v292 = vpop.permute.xlu0 %291
    %v294 = vmul.f32 %v288, %v99
    %v295 = vmul.f32 %v292, %v99
    %v296 = vadd.f32 %v284, %v294
    %v297 = vadd.f32 %v285, %v295
    %v298 = vmax.f32 %v270, %v296
    %v299 = vmax.f32 %v271, %v297
    %v300 = vmul.f32 %v204, %v83
    %v301 = vmul.f32 %v208, %v83
    %v302 = vmul.f32 %v232, %v87
    %v303 = vmul.f32 %v236, %v87
    %v304 = vadd.f32 %v300, %v302
    %v305 = vadd.f32 %v301, %v303
    %v306 = vmul.f32 %v260, %v91
    %v307 = vmul.f32 %v264, %v91
    %v308 = vadd.f32 %v304, %v306
    %v309 = vadd.f32 %v305, %v307
    %v310 = vmul.f32 %v288, %v95
    %v311 = vmul.f32 %v292, %v95
    %v312 = vadd.f32 %v308, %v310
    %v313 = vadd.f32 %v309, %v311
    %314 = vset.pattern.permute.xlu0 10
    %315 = vperm.xlu0 %314, %v77
    %v316 = vpop.permute.xlu0 %315
    %318 = vset.pattern.permute.xlu0 10
    %319 = vperm.xlu0 %318, %v78
    %v320 = vpop.permute.xlu0 %319
    %v322 = vmul.f32 %v316, %v99
    %v323 = vmul.f32 %v320, %v99
    %v324 = vadd.f32 %v312, %v322
    %v325 = vadd.f32 %v313, %v323
    %v326 = vmax.f32 %v298, %v324
    %v327 = vmax.f32 %v299, %v325
    %v328 = vmul.f32 %v232, %v83
    %v329 = vmul.f32 %v236, %v83
    %v330 = vmul.f32 %v260, %v87
    %v331 = vmul.f32 %v264, %v87
    %v332 = vadd.f32 %v328, %v330
    %v333 = vadd.f32 %v329, %v331
    %v334 = vmul.f32 %v288, %v91
    %v335 = vmul.f32 %v292, %v91
    %v336 = vadd.f32 %v332, %v334
    %v337 = vadd.f32 %v333, %v335
    %v338 = vmul.f32 %v316, %v95
    %v339 = vmul.f32 %v320, %v95
    %v340 = vadd.f32 %v336, %v338
    %v341 = vadd.f32 %v337, %v339
    %342 = vset.pattern.permute.xlu0 11
    %343 = vperm.xlu0 %342, %v77
    %v344 = vpop.permute.xlu0 %343
    %346 = vset.pattern.permute.xlu0 11
    %347 = vperm.xlu0 %346, %v78
    %v348 = vpop.permute.xlu0 %347
    %v350 = vmul.f32 %v344, %v99
    %v351 = vmul.f32 %v348, %v99
    %v352 = vadd.f32 %v340, %v350
    %v353 = vadd.f32 %v341, %v351
    %v354 = vmax.f32 %v326, %v352
    %v355 = vmax.f32 %v327, %v353
    %v356 = vmul.f32 %v260, %v83
    %v357 = vmul.f32 %v264, %v83
    %v358 = vmul.f32 %v288, %v87
    %v359 = vmul.f32 %v292, %v87
    %v360 = vadd.f32 %v356, %v358
    %v361 = vadd.f32 %v357, %v359
    %v362 = vmul.f32 %v316, %v91
    %v363 = vmul.f32 %v320, %v91
    %v364 = vadd.f32 %v360, %v362
    %v365 = vadd.f32 %v361, %v363
    %v366 = vmul.f32 %v344, %v95
    %v367 = vmul.f32 %v348, %v95
    %v368 = vadd.f32 %v364, %v366
    %v369 = vadd.f32 %v365, %v367
    %370 = vset.pattern.permute.xlu0 12
    %371 = vperm.xlu0 %370, %v77
    %v372 = vpop.permute.xlu0 %371
    %374 = vset.pattern.permute.xlu0 12
    %375 = vperm.xlu0 %374, %v78
    %v376 = vpop.permute.xlu0 %375
    %v378 = vmul.f32 %v372, %v99
    %v379 = vmul.f32 %v376, %v99
    %v380 = vadd.f32 %v368, %v378
    %v381 = vadd.f32 %v369, %v379
    %v382 = vmax.f32 %v354, %v380
    %v383 = vmax.f32 %v355, %v381
    %v384 = vmul.f32 %v288, %v83
    %v385 = vmul.f32 %v292, %v83
    %v386 = vmul.f32 %v316, %v87
    %v387 = vmul.f32 %v320, %v87
    %v388 = vadd.f32 %v384, %v386
    %v389 = vadd.f32 %v385, %v387
    %v390 = vmul.f32 %v344, %v91
    %v391 = vmul.f32 %v348, %v91
    %v392 = vadd.f32 %v388, %v390
    %v393 = vadd.f32 %v389, %v391
    %v394 = vmul.f32 %v372, %v95
    %v395 = vmul.f32 %v376, %v95
    %v396 = vadd.f32 %v392, %v394
    %v397 = vadd.f32 %v393, %v395
    %398 = vset.pattern.permute.xlu0 13
    %399 = vperm.xlu0 %398, %v77
    %v400 = vpop.permute.xlu0 %399
    %402 = vset.pattern.permute.xlu0 13
    %403 = vperm.xlu0 %402, %v78
    %v404 = vpop.permute.xlu0 %403
    %v406 = vmul.f32 %v400, %v99
    %v407 = vmul.f32 %v404, %v99
    %v408 = vadd.f32 %v396, %v406
    %v409 = vadd.f32 %v397, %v407
    %v410 = vmax.f32 %v382, %v408
    %v411 = vmax.f32 %v383, %v409
    %v412 = vmul.f32 %v316, %v83
    %v413 = vmul.f32 %v320, %v83
    %v414 = vmul.f32 %v344, %v87
    %v415 = vmul.f32 %v348, %v87
    %v416 = vadd.f32 %v412, %v414
    %v417 = vadd.f32 %v413, %v415
    %v418 = vmul.f32 %v372, %v91
    %v419 = vmul.f32 %v376, %v91
    %v420 = vadd.f32 %v416, %v418
    %v421 = vadd.f32 %v417, %v419
    %v422 = vmul.f32 %v400, %v95
    %v423 = vmul.f32 %v404, %v95
    %v424 = vadd.f32 %v420, %v422
    %v425 = vadd.f32 %v421, %v423
    %426 = vset.pattern.permute.xlu0 14
    %427 = vperm.xlu0 %426, %v77
    %v428 = vpop.permute.xlu0 %427
    %430 = vset.pattern.permute.xlu0 14
    %431 = vperm.xlu0 %430, %v78
    %v432 = vpop.permute.xlu0 %431
    %v434 = vmul.f32 %v428, %v99
    %v435 = vmul.f32 %v432, %v99
    %v436 = vadd.f32 %v424, %v434
    %v437 = vadd.f32 %v425, %v435
    %v438 = vmax.f32 %v410, %v436
    %v439 = vmax.f32 %v411, %v437
    %v440 = vmul.f32 %v344, %v83
    %v441 = vmul.f32 %v348, %v83
    %v442 = vmul.f32 %v372, %v87
    %v443 = vmul.f32 %v376, %v87
    %v444 = vadd.f32 %v440, %v442
    %v445 = vadd.f32 %v441, %v443
    %v446 = vmul.f32 %v400, %v91
    %v447 = vmul.f32 %v404, %v91
    %v448 = vadd.f32 %v444, %v446
    %v449 = vadd.f32 %v445, %v447
    %v450 = vmul.f32 %v428, %v95
    %v451 = vmul.f32 %v432, %v95
    %v452 = vadd.f32 %v448, %v450
    %v453 = vadd.f32 %v449, %v451
    %454 = vset.pattern.permute.xlu0 15
    %455 = vperm.xlu0 %454, %v77
    %v456 = vpop.permute.xlu0 %455
    %458 = vset.pattern.permute.xlu0 15
    %459 = vperm.xlu0 %458, %v78
    %v460 = vpop.permute.xlu0 %459
    %v462 = vmul.f32 %v456, %v99
    %v463 = vmul.f32 %v460, %v99
    %v464 = vadd.f32 %v452, %v462
    %v465 = vadd.f32 %v453, %v463
    %v466 = vmax.f32 %v438, %v464
    %v467 = vmax.f32 %v439, %v465
    %v468 = vmul.f32 %v372, %v83
    %v469 = vmul.f32 %v376, %v83
    %v470 = vmul.f32 %v400, %v87
    %v471 = vmul.f32 %v404, %v87
    %v472 = vadd.f32 %v468, %v470
    %v473 = vadd.f32 %v469, %v471
    %v474 = vmul.f32 %v428, %v91
    %v475 = vmul.f32 %v432, %v91
    %v476 = vadd.f32 %v472, %v474
    %v477 = vadd.f32 %v473, %v475
    %v478 = vmul.f32 %v456, %v95
    %v479 = vmul.f32 %v460, %v95
    %v480 = vadd.f32 %v476, %v478
    %v481 = vadd.f32 %v477, %v479
    %482 = vset.pattern.permute.xlu0 16
    %483 = vperm.xlu0 %482, %v77
    %v484 = vpop.permute.xlu0 %483
    %486 = vset.pattern.permute.xlu0 16
    %487 = vperm.xlu0 %486, %v78
    %v488 = vpop.permute.xlu0 %487
    %v490 = vmul.f32 %v484, %v99
    %v491 = vmul.f32 %v488, %v99
    %v492 = vadd.f32 %v480, %v490
    %v493 = vadd.f32 %v481, %v491
    %v494 = vmax.f32 %v466, %v492
    %v495 = vmax.f32 %v467, %v493
    %v496 = vmul.f32 %v400, %v83
    %v497 = vmul.f32 %v404, %v83
    %v498 = vmul.f32 %v428, %v87
    %v499 = vmul.f32 %v432, %v87
    %v500 = vadd.f32 %v496, %v498
    %v501 = vadd.f32 %v497, %v499
    %v502 = vmul.f32 %v456, %v91
    %v503 = vmul.f32 %v460, %v91
    %v504 = vadd.f32 %v500, %v502
    %v505 = vadd.f32 %v501, %v503
    %v506 = vmul.f32 %v484, %v95
    %v507 = vmul.f32 %v488, %v95
    %v508 = vadd.f32 %v504, %v506
    %v509 = vadd.f32 %v505, %v507
    %510 = vset.pattern.permute.xlu0 17
    %511 = vperm.xlu0 %510, %v77
    %v512 = vpop.permute.xlu0 %511
    %514 = vset.pattern.permute.xlu0 17
    %515 = vperm.xlu0 %514, %v78
    %v516 = vpop.permute.xlu0 %515
    %v518 = vmul.f32 %v512, %v99
    %v519 = vmul.f32 %v516, %v99
    %v520 = vadd.f32 %v508, %v518
    %v521 = vadd.f32 %v509, %v519
    %v522 = vmax.f32 %v494, %v520
    %v523 = vmax.f32 %v495, %v521
    %v524 = vmul.f32 %v428, %v83
    %v525 = vmul.f32 %v432, %v83
    %v526 = vmul.f32 %v456, %v87
    %v527 = vmul.f32 %v460, %v87
    %v528 = vadd.f32 %v524, %v526
    %v529 = vadd.f32 %v525, %v527
    %v530 = vmul.f32 %v484, %v91
    %v531 = vmul.f32 %v488, %v91
    %v532 = vadd.f32 %v528, %v530
    %v533 = vadd.f32 %v529, %v531
    %v534 = vmul.f32 %v512, %v95
    %v535 = vmul.f32 %v516, %v95
    %v536 = vadd.f32 %v532, %v534
    %v537 = vadd.f32 %v533, %v535
    %538 = vset.pattern.permute.xlu0 18
    %539 = vperm.xlu0 %538, %v77
    %v540 = vpop.permute.xlu0 %539
    %542 = vset.pattern.permute.xlu0 18
    %543 = vperm.xlu0 %542, %v78
    %v544 = vpop.permute.xlu0 %543
    %v546 = vmul.f32 %v540, %v99
    %v547 = vmul.f32 %v544, %v99
    %v548 = vadd.f32 %v536, %v546
    %v549 = vadd.f32 %v537, %v547
    %v550 = vmax.f32 %v522, %v548
    %v551 = vmax.f32 %v523, %v549
    %v552 = vmul.f32 %v456, %v83
    %v553 = vmul.f32 %v460, %v83
    %v554 = vmul.f32 %v484, %v87
    %v555 = vmul.f32 %v488, %v87
    %v556 = vadd.f32 %v552, %v554
    %v557 = vadd.f32 %v553, %v555
    %v558 = vmul.f32 %v512, %v91
    %v559 = vmul.f32 %v516, %v91
    %v560 = vadd.f32 %v556, %v558
    %v561 = vadd.f32 %v557, %v559
    %v562 = vmul.f32 %v540, %v95
    %v563 = vmul.f32 %v544, %v95
    %v564 = vadd.f32 %v560, %v562
    %v565 = vadd.f32 %v561, %v563
    %566 = vset.pattern.permute.xlu0 19
    %567 = vperm.xlu0 %566, %v77
    %v568 = vpop.permute.xlu0 %567
    %570 = vset.pattern.permute.xlu0 19
    %571 = vperm.xlu0 %570, %v78
    %v572 = vpop.permute.xlu0 %571
    %v574 = vmul.f32 %v568, %v99
    %v575 = vmul.f32 %v572, %v99
    %v576 = vadd.f32 %v564, %v574
    %v577 = vadd.f32 %v565, %v575
    %v578 = vmax.f32 %v550, %v576
    %v579 = vmax.f32 %v551, %v577
    %v580 = vld [vmem:[%s2] sm:$0x1]
    %v582 = vlaneseq
    %v583 = vshrl.u32 %v582, 7
    %v584 = vsub.s32 0, %v583
    %v585 = vrot.slane %v580, %v584
    %v587 = vadd.f32 %v578, %v585
    %v588 = vadd.f32 %v579, %v585
    %v589 = vmax.f32 %v587, 0.0
    %v590 = vmax.f32 %v588, 0.0
    %v591 = vld [vmem:[%s3] sm:$0xff]
    %v592 = vld [vmem:[%s3 + $0x8] sm:$0xff]
    %595 = vrot.lane.b32.xlu0 %v591, 64
    %v596 = vpop.permute.xlu0 %595
    %597 = vrot.lane.b32.xlu0 %v592, 64
    %v598 = vpop.permute.xlu0 %597
    %vm601 = vcmask 523264
    %v602 = vsel %vm601, %v589, %v596
    %v603 = vsel %vm601, %v590, %v598
    %v604 = vld [vmem:[#allocation4] sm:$0xff]
    %v605 = vld [vmem:[#allocation4 + $0x8] sm:$0xff]
    %v606 = vld [vmem:[#allocation4 + $0x10] sm:$0xff]
    %v607 = vld [vmem:[#allocation4 + $0x18] sm:$0xff]
    %v608 = vld [vmem:[#allocation4 + $0x20] sm:$0xff]
    %v609 = vld [vmem:[#allocation4 + $0x28] sm:$0xff]
    %v610 = vld [vmem:[#allocation4 + $0x30] sm:$0xff]
    %v611 = vld [vmem:[#allocation4 + $0x38] sm:$0xff]
    %v612 = vld [vmem:[#allocation4 + $0x40] sm:$0xff]
    %v613 = vld [vmem:[#allocation4 + $0x48] sm:$0xff]
    %v614 = vld [vmem:[#allocation4 + $0x50] sm:$0xff]
    %v615 = vld [vmem:[#allocation4 + $0x58] sm:$0xff]
    %v616 = vld [vmem:[#allocation4 + $0x60] sm:$0xff]
    %v617 = vld [vmem:[#allocation4 + $0x68] sm:$0xff]
    %v618 = vld [vmem:[#allocation4 + $0x70] sm:$0xff]
    %v619 = vld [vmem:[#allocation4 + $0x78] sm:$0xff]
    %v620 = vld [vmem:[#allocation4 + $0x80] sm:$0xff]
    %v621 = vld [vmem:[#allocation4 + $0x88] sm:$0xff]
    %v622 = vld [vmem:[#allocation4 + $0x90] sm:$0xff]
    %v623 = vld [vmem:[#allocation4 + $0x98] sm:$0xff]
    %v624 = vld [vmem:[#allocation4 + $0xa0] sm:$0xff]
    %v625 = vld [vmem:[#allocation4 + $0xa8] sm:$0xff]
    %v626 = vld [vmem:[#allocation4 + $0xb0] sm:$0xff]
    %v627 = vld [vmem:[#allocation4 + $0xb8] sm:$0xff]
    %v628 = vld [vmem:[#allocation4 + $0xc0] sm:$0xff]
    %v629 = vld [vmem:[#allocation4 + $0xc8] sm:$0xff]
    %v630 = vld [vmem:[#allocation4 + $0xd0] sm:$0xff]
    %v631 = vld [vmem:[#allocation4 + $0xd8] sm:$0xff]
    %v632 = vld [vmem:[#allocation4 + $0xe0] sm:$0xff]
    %v633 = vld [vmem:[#allocation4 + $0xe8] sm:$0xff]
    %v634 = vld [vmem:[#allocation4 + $0xf0] sm:$0xff]
    %v635 = vld [vmem:[#allocation4 + $0xf8] sm:$0xff]
    %v636 = vld [vmem:[#allocation4 + $0x100] sm:$0xff]
    %v637 = vld [vmem:[#allocation4 + $0x108] sm:$0xff]
    %v638 = vld [vmem:[#allocation4 + $0x110] sm:$0xff]
    %v639 = vld [vmem:[#allocation4 + $0x118] sm:$0xff]
    %v640 = vld [vmem:[#allocation4 + $0x120] sm:$0xff]
    %v641 = vld [vmem:[#allocation4 + $0x128] sm:$0xff]
    %v642 = vld [vmem:[#allocation4 + $0x130] sm:$0xff]
    %v643 = vld [vmem:[#allocation4 + $0x138] sm:$0xff]
    %v644 = vld [vmem:[#allocation4 + $0x140] sm:$0xff]
    %v645 = vld [vmem:[#allocation4 + $0x148] sm:$0xff]
    %v646 = vld [vmem:[#allocation4 + $0x150] sm:$0xff]
    %v647 = vld [vmem:[#allocation4 + $0x158] sm:$0xff]
    %v648 = vld [vmem:[#allocation4 + $0x160] sm:$0xff]
    %v649 = vld [vmem:[#allocation4 + $0x168] sm:$0xff]
    %v650 = vld [vmem:[#allocation4 + $0x170] sm:$0xff]
    %v651 = vld [vmem:[#allocation4 + $0x178] sm:$0xff]
    %v652 = vld [vmem:[#allocation4 + $0x180] sm:$0xff]
    %v653 = vld [vmem:[#allocation4 + $0x188] sm:$0xff]
    %v654 = vld [vmem:[#allocation4 + $0x190] sm:$0xff]
    %v655 = vld [vmem:[#allocation4 + $0x198] sm:$0xff]
    %v656 = vld [vmem:[#allocation4 + $0x1a0] sm:$0xff]
    %v657 = vld [vmem:[#allocation4 + $0x1a8] sm:$0xff]
    %v658 = vld [vmem:[#allocation4 + $0x1b0] sm:$0xff]
    %v659 = vld [vmem:[#allocation4 + $0x1b8] sm:$0xff]
    %v660 = vld [vmem:[#allocation4 + $0x1c0] sm:$0xff]
    %v661 = vld [vmem:[#allocation4 + $0x1c8] sm:$0xff]
    %v662 = vld [vmem:[#allocation4 + $0x1d0] sm:$0xff]
    %v663 = vld [vmem:[#allocation4 + $0x1d8] sm:$0xff]
    %v664 = vld [vmem:[#allocation4 + $0x1e0] sm:$0xff]
    %v665 = vld [vmem:[#allocation4 + $0x1e8] sm:$0xff]
    %v666 = vld [vmem:[#allocation4 + $0x1f0] sm:$0xff]
    %v667 = vld [vmem:[#allocation4 + $0x1f8] sm:$0xff]
    %v668 = vld [vmem:[%s5] sm:$0xf]
    %v670 = vlaneseq
    %v671 = vshrl.u32 %v670, 7
    %v672 = vsub.s32 0, %v671
    %v673 = vrot.slane %v668, %v672
    %v674 = vlaneseq
    %v675 = vshrl.u32 %v674, 7
    %v676 = vsub.s32 1, %v675
    %v677 = vrot.slane %v668, %v676
    %v678 = vlaneseq
    %v679 = vshrl.u32 %v678, 7
    %v680 = vsub.s32 2, %v679
    %v681 = vrot.slane %v668, %v680
    %v682 = vlaneseq
    %v683 = vshrl.u32 %v682, 7
    %v684 = vsub.s32 3, %v683
    %v685 = vrot.slane %v668, %v684
    %690 = vmatprep.subr.mxu0 %v605
    %691 = vmatpush1.msra.mxu0 %v604
    %692 = vmatprep.subr.mxu0 %v609
    %693 = vmatpush1.msra.mxu0 %v608
    %694 = vmatprep.subr.mxu0 %v613
    %695 = vmatpush1.msra.mxu0 %v612
    %696 = vmatprep.subr.mxu0 %v617
    %697 = vmatpush1.msra.mxu0 %v616
    %698 = vmatprep.subr.mxu0 %v621
    %699 = vmatpush1.msra.mxu0 %v620
    %700 = vmatprep.subr.mxu0 %v625
    %701 = vmatpush1.msra.mxu0 %v624
    %702 = vmatprep.subr.mxu0 %v629
    %703 = vmatpush1.msra.mxu0 %v628
    %704 = vmatprep.subr.mxu0 %v633
    %705 = vmatpush1.msra.mxu0 %v632
    %706 = vmatprep.subr.mxu0 %v637
    %707 = vmatpush1.msra.mxu0 %v636
    %708 = vmatprep.subr.mxu0 %v641
    %709 = vmatpush1.msra.mxu0 %v640
    %710 = vmatprep.subr.mxu0 %v645
    %711 = vmatpush1.msra.mxu0 %v644
    %712 = vmatprep.subr.mxu0 %v649
    %713 = vmatpush1.msra.mxu0 %v648
    %714 = vmatprep.subr.mxu0 %v653
    %715 = vmatpush1.msra.mxu0 %v652
    %716 = vmatprep.subr.mxu0 %v657
    %717 = vmatpush1.msra.mxu0 %v656
    %718 = vmatprep.subr.mxu0 %v661
    %719 = vmatpush1.msra.mxu0 %v660
    %720 = vmatprep.subr.mxu0 %v665
    %721 = vmatpush1.msra.mxu0 %v664
    %722 = vmatprep.subr.mxu0 0.0
    %723 = vmatpush1.msra.mxu0 0.0
    %724 = vmatprep.subr.mxu0 0.0
    %725 = vmatpush1.msra.mxu0 0.0
    %726 = vmatprep.subr.mxu0 0.0
    %727 = vmatpush1.msra.mxu0 0.0
    %728 = vmatprep.subr.mxu0 0.0
    %729 = vmatpush1.msra.mxu0 0.0
    %730 = vmatprep.subr.mxu0 0.0
    %731 = vmatpush1.msra.mxu0 0.0
    %732 = vmatprep.subr.mxu0 0.0
    %733 = vmatpush1.msra.mxu0 0.0
    %734 = vmatprep.subr.mxu0 0.0
    %735 = vmatpush1.msra.mxu0 0.0
    %736 = vmatprep.subr.mxu0 0.0
    %737 = vmatpush1.msra.mxu0 0.0
    %738 = vmatprep.subr.mxu0 0.0
    %739 = vmatpush1.msra.mxu0 0.0
    %740 = vmatprep.subr.mxu0 0.0
    %741 = vmatpush1.msra.mxu0 0.0
    %742 = vmatprep.subr.mxu0 0.0
    %743 = vmatpush1.msra.mxu0 0.0
    %744 = vmatprep.subr.mxu0 0.0
    %745 = vmatpush1.msra.mxu0 0.0
    %746 = vmatprep.subr.mxu0 0.0
    %747 = vmatpush1.msra.mxu0 0.0
    %748 = vmatprep.subr.mxu0 0.0
    %749 = vmatpush1.msra.mxu0 0.0
    %750 = vmatprep.subr.mxu0 0.0
    %751 = vmatpush1.msra.mxu0 0.0
    %752 = vmatprep.subr.mxu0 0.0
    %753 = vmatpush1.msra.mxu0 0.0
    %754 = vmatprep.mubr.f32.mxu0 0.0
    %755 = vmatmul.mubr.f32.gmra.mrb[0].mxu0 %v602
    %v756 = vpop.f32.mrb[0].mxu0
    %v757 = vadd.f32 %v673, %v756
    %v758 = vpop.f32.mrb[0].mxu0
    %v759 = vadd.f32 %v677, %v758
    %760 = vmatprep.mubr.f32.mxu0 0.0
    %761 = vmatmul.mubr.f32.gmra.mrb[0].mxu0 %v603
    %v762 = vpop.f32.mrb[0].mxu0
    %v763 = vadd.f32 %v673, %v762
    %v764 = vpop.f32.mrb[0].mxu0
    %v765 = vadd.f32 %v677, %v764
    %766 = vdwg.mxu0
    %767 = vmatprep.subr.mxu0 %v607
    %768 = vmatpush1.msra.mxu0 %v606
    %769 = vmatprep.subr.mxu0 %v611
    %770 = vmatpush1.msra.mxu0 %v610
    %771 = vmatprep.subr.mxu0 %v615
    %772 = vmatpush1.msra.mxu0 %v614
    %773 = vmatprep.subr.mxu0 %v619
    %774 = vmatpush1.msra.mxu0 %v618
    %775 = vmatprep.subr.mxu0 %v623
    %776 = vmatpush1.msra.mxu0 %v622
    %777 = vmatprep.subr.mxu0 %v627
    %778 = vmatpush1.msra.mxu0 %v626
    %779 = vmatprep.subr.mxu0 %v631
    %780 = vmatpush1.msra.mxu0 %v630
    %781 = vmatprep.subr.mxu0 %v635
    %782 = vmatpush1.msra.mxu0 %v634
    %783 = vmatprep.subr.mxu0 %v639
    %784 = vmatpush1.msra.mxu0 %v638
    %785 = vmatprep.subr.mxu0 %v643
    %786 = vmatpush1.msra.mxu0 %v642
    %787 = vmatprep.subr.mxu0 %v647
    %788 = vmatpush1.msra.mxu0 %v646
    %789 = vmatprep.subr.mxu0 %v651
    %790 = vmatpush1.msra.mxu0 %v650
    %791 = vmatprep.subr.mxu0 %v655
    %792 = vmatpush1.msra.mxu0 %v654
    %793 = vmatprep.subr.mxu0 %v659
    %794 = vmatpush1.msra.mxu0 %v658
    %795 = vmatprep.subr.mxu0 %v663
    %796 = vmatpush1.msra.mxu0 %v662
    %797 = vmatprep.subr.mxu0 %v667
    %798 = vmatpush1.msra.mxu0 %v666
    %799 = vmatprep.subr.mxu0 0.0
    %800 = vmatpush1.msra.mxu0 0.0
    %801 = vmatprep.subr.mxu0 0.0
    %802 = vmatpush1.msra.mxu0 0.0
    %803 = vmatprep.subr.mxu0 0.0
    %804 = vmatpush1.msra.mxu0 0.0
    %805 = vmatprep.subr.mxu0 0.0
    %806 = vmatpush1.msra.mxu0 0.0
    %807 = vmatprep.subr.mxu0 0.0
    %808 = vmatpush1.msra.mxu0 0.0
    %809 = vmatprep.subr.mxu0 0.0
    %810 = vmatpush1.msra.mxu0 0.0
    %811 = vmatprep.subr.mxu0 0.0
    %812 = vmatpush1.msra.mxu0 0.0
    %813 = vmatprep.subr.mxu0 0.0
    %814 = vmatpush1.msra.mxu0 0.0
    %815 = vmatprep.subr.mxu0 0.0
    %816 = vmatpush1.msra.mxu0 0.0
    %817 = vmatprep.subr.mxu0 0.0
    %818 = vmatpush1.msra.mxu0 0.0
    %819 = vmatprep.subr.mxu0 0.0
    %820 = vmatpush1.msra.mxu0 0.0
    %821 = vmatprep.subr.mxu0 0.0
    %822 = vmatpush1.msra.mxu0 0.0
    %823 = vmatprep.subr.mxu0 0.0
    %824 = vmatpush1.msra.mxu0 0.0
    %825 = vmatprep.subr.mxu0 0.0
    %826 = vmatpush1.msra.mxu0 0.0
    %827 = vmatprep.subr.mxu0 0.0
    %828 = vmatpush1.msra.mxu0 0.0
    %829 = vmatprep.subr.mxu0 0.0
    %830 = vmatpush1.msra.mxu0 0.0
    %831 = vmatprep.mubr.f32.mxu0 0.0
    %832 = vmatmul.mubr.f32.gmra.mrb[0].mxu0 %v602
    %v833 = vpop.f32.mrb[0].mxu0
    %v834 = vadd.f32 %v681, %v833
    %v835 = vpop.f32.mrb[0].mxu0
    %v836 = vadd.f32 %v685, %v835
    %837 = vmatprep.mubr.f32.mxu0 0.0
    %838 = vmatmul.mubr.f32.gmra.mrb[0].mxu0 %v603
    %v839 = vpop.f32.mrb[0].mxu0
    %v840 = vadd.f32 %v681, %v839
    %v841 = vpop.f32.mrb[0].mxu0
    %v842 = vadd.f32 %v685, %v841
    %843 = vdwg.mxu0
    %844 = vst [vmem:[#allocation2] sm:$0xff] %v757
    %845 = vst [vmem:[#allocation2 + $0x8] sm:$0xff] %v759
    %846 = vst [vmem:[#allocation2 + $0x10] sm:$0xff] %v834
    %847 = vst [vmem:[#allocation2 + $0x18] sm:$0xff] %v836
    %848 = vst [vmem:[#allocation2 + $0x20] sm:$0xff] %v763
    %849 = vst [vmem:[#allocation2 + $0x28] sm:$0xff] %v765
    %850 = vst [vmem:[#allocation2 + $0x30] sm:$0xff] %v840
    %851 = vst [vmem:[#allocation2 + $0x38] sm:$0xff] %v842
    %v852 = vld [vmem:[#allocation2] sm:$0x3]
    %v853 = vld [vmem:[#allocation2 + $0x8] sm:$0x3]
    %v854 = vld [vmem:[#allocation2 + $0x30] sm:$0xc0]
    %v855 = vld [vmem:[#allocation2 + $0x38] sm:$0xc0]
    %v856 = vld [vmem:[%s6] sm:$0xff]
    %v857 = vld [vmem:[%s6 + $0x8] sm:$0xff]
    %v858 = vld [vmem:[%s6 + $0x10] sm:$0xff]
    %v859 = vld [vmem:[%s6 + $0x18] sm:$0xff]
    %v860 = vld [vmem:[%s6 + $0x20] sm:$0xff]
    %v861 = vld [vmem:[%s6 + $0x28] sm:$0xff]
    %v862 = vld [vmem:[%s6 + $0x30] sm:$0xff]
    %v863 = vld [vmem:[%s6 + $0x38] sm:$0xff]
    %v864 = vld [vmem:[%s6 + $0x40] sm:$0xff]
    %v865 = vld [vmem:[%s6 + $0x48] sm:$0xff]
    %v866 = vld [vmem:[%s6 + $0x50] sm:$0xff]
    %v867 = vld [vmem:[%s6 + $0x58] sm:$0xff]
    %v868 = vld [vmem:[%s6 + $0x60] sm:$0xff]
    %v869 = vld [vmem:[%s6 + $0x68] sm:$0xff]
    %v870 = vld [vmem:[%s6 + $0x70] sm:$0xff]
    %v871 = vld [vmem:[%s6 + $0x78] sm:$0xff]
    %v873 = vsel %vm601, 0.0, 0
    %875 = vmatprep.subr.mxu0 %v857
    %876 = vmatpush1.msra.mxu0 %v856
    %877 = vmatprep.subr.mxu0 %v859
    %878 = vmatpush1.msra.mxu0 %v858
    %879 = vmatprep.subr.mxu0 %v861
    %880 = vmatpush1.msra.mxu0 %v860
    %881 = vmatprep.subr.mxu0 %v863
    %882 = vmatpush1.msra.mxu0 %v862
    %883 = vmatprep.subr.mxu0 %v865
    %884 = vmatpush1.msra.mxu0 %v864
    %885 = vmatprep.subr.mxu0 %v867
    %886 = vmatpush1.msra.mxu0 %v866
    %887 = vmatprep.subr.mxu0 %v869
    %888 = vmatpush1.msra.mxu0 %v868
    %889 = vmatprep.subr.mxu0 %v871
    %890 = vmatpush1.msra.mxu0 %v870
    %891 = vmatprep.subr.mxu0 0.0
    %892 = vmatpush1.msra.mxu0 0.0
    %893 = vmatprep.subr.mxu0 0.0
    %894 = vmatpush1.msra.mxu0 0.0
    %895 = vmatprep.subr.mxu0 0.0
    %896 = vmatpush1.msra.mxu0 0.0
    %897 = vmatprep.subr.mxu0 0.0
    %898 = vmatpush1.msra.mxu0 0.0
    %899 = vmatprep.subr.mxu0 0.0
    %900 = vmatpush1.msra.mxu0 0.0
    %901 = vmatprep.subr.mxu0 0.0
    %902 = vmatpush1.msra.mxu0 0.0
    %903 = vmatprep.subr.mxu0 0.0
    %904 = vmatpush1.msra.mxu0 0.0
    %905 = vmatprep.subr.mxu0 0.0
    %906 = vmatpush1.msra.mxu0 0.0
    %907 = vmatprep.subr.mxu0 0.0
    %908 = vmatpush1.msra.mxu0 0.0
    %909 = vmatprep.subr.mxu0 0.0
    %910 = vmatpush1.msra.mxu0 0.0
    %911 = vmatprep.subr.mxu0 0.0
    %912 = vmatpush1.msra.mxu0 0.0
    %913 = vmatprep.subr.mxu0 0.0
    %914 = vmatpush1.msra.mxu0 0.0
    %915 = vmatprep.subr.mxu0 0.0
    %916 = vmatpush1.msra.mxu0 0.0
    %917 = vmatprep.subr.mxu0 0.0
    %918 = vmatpush1.msra.mxu0 0.0
    %919 = vmatprep.subr.mxu0 0.0
    %920 = vmatpush1.msra.mxu0 0.0
    %921 = vmatprep.subr.mxu0 0.0
    %922 = vmatpush1.msra.mxu0 0.0
    %923 = vmatprep.subr.mxu0 0.0
    %924 = vmatpush1.msra.mxu0 0.0
    %925 = vmatprep.subr.mxu0 0.0
    %926 = vmatpush1.msra.mxu0 0.0
    %927 = vmatprep.subr.mxu0 0.0
    %928 = vmatpush1.msra.mxu0 0.0
    %929 = vmatprep.subr.mxu0 0.0
    %930 = vmatpush1.msra.mxu0 0.0
    %931 = vmatprep.subr.mxu0 0.0
    %932 = vmatpush1.msra.mxu0 0.0
    %933 = vmatprep.subr.mxu0 0.0
    %934 = vmatpush1.msra.mxu0 0.0
    %935 = vmatprep.subr.mxu0 0.0
    %936 = vmatpush1.msra.mxu0 0.0
    %937 = vmatprep.subr.mxu0 0.0
    %938 = vmatpush1.msra.mxu0 0.0
    %939 = vmatprep.mubr.f32.mxu0 0.0
    %940 = vmatmul.mubr.f32.gmra.mrb[0].mxu0 %v873
    %v941 = vpop.f32.mrb[0].mxu0
    %v942 = vadd.f32 0.0, %v941
    %v943 = vpop.f32.mrb[0].mxu0
    %v944 = vadd.f32 0.0, %v943
    %945 = vdwg.mxu0
    %v946 = vld [vmem:[#allocation7] sm:$0xff]
    %v947 = vld [vmem:[#allocation7 + $0x8] sm:$0xff]
    %v948 = vld [vmem:[#allocation7 + $0x10] sm:$0xff]
    %v949 = vld [vmem:[#allocation7 + $0x18] sm:$0xff]
    %v950 = vld [vmem:[#allocation7 + $0x20] sm:$0xff]
    %v951 = vld [vmem:[#allocation7 + $0x28] sm:$0xff]
    %v952 = vld [vmem:[#allocation7 + $0x30] sm:$0xff]
    %v953 = vld [vmem:[#allocation7 + $0x38] sm:$0xff]
    %v954 = vld [vmem:[#allocation7 + $0x40] sm:$0xff]
    %v955 = vld [vmem:[#allocation7 + $0x48] sm:$0xff]
    %v956 = vld [vmem:[#allocation7 + $0x50] sm:$0xff]
    %v957 = vld [vmem:[#allocation7 + $0x58] sm:$0xff]
    %v958 = vld [vmem:[#allocation7 + $0x60] sm:$0xff]
    %v959 = vld [vmem:[#allocation7 + $0x68] sm:$0xff]
    %v960 = vld [vmem:[#allocation7 + $0x70] sm:$0xff]
    %v961 = vld [vmem:[#allocation7 + $0x78] sm:$0xff]
    %962 = vmatprep.subr.mxu0 %v947
    %963 = vmatpush1.msra.mxu0 %v946
    %964 = vmatprep.subr.mxu0 %v949
    %965 = vmatpush1.msra.mxu0 %v948
    %966 = vmatprep.subr.mxu0 %v951
    %967 = vmatpush1.msra.mxu0 %v950
    %968 = vmatprep.subr.mxu0 %v953
    %969 = vmatpush1.msra.mxu0 %v952
    %970 = vmatprep.subr.mxu0 %v955
    %971 = vmatpush1.msra.mxu0 %v954
    %972 = vmatprep.subr.mxu0 %v957
    %973 = vmatpush1.msra.mxu0 %v956
    %974 = vmatprep.subr.mxu0 %v959
    %975 = vmatpush1.msra.mxu0 %v958
    %976 = vmatprep.subr.mxu0 %v961
    %977 = vmatpush1.msra.mxu0 %v960
    %978 = vmatprep.subr.mxu0 0.0
    %979 = vmatpush1.msra.mxu0 0.0
    %980 = vmatprep.subr.mxu0 0.0
    %981 = vmatpush1.msra.mxu0 0.0
    %982 = vmatprep.subr.mxu0 0.0
    %983 = vmatpush1.msra.mxu0 0.0
    %984 = vmatprep.subr.mxu0 0.0
    %985 = vmatpush1.msra.mxu0 0.0
    %986 = vmatprep.subr.mxu0 0.0
    %987 = vmatpush1.msra.mxu0 0.0
    %988 = vmatprep.subr.mxu0 0.0
    %989 = vmatpush1.msra.mxu0 0.0
    %990 = vmatprep.subr.mxu0 0.0
    %991 = vmatpush1.msra.mxu0 0.0
    %992 = vmatprep.subr.mxu0 0.0
    %993 = vmatpush1.msra.mxu0 0.0
    %994 = vmatprep.subr.mxu0 0.0
    %995 = vmatpush1.msra.mxu0 0.0
    %996 = vmatprep.subr.mxu0 0.0
    %997 = vmatpush1.msra.mxu0 0.0
    %998 = vmatprep.subr.mxu0 0.0
    %999 = vmatpush1.msra.mxu0 0.0
    %1000 = vmatprep.subr.mxu0 0.0
    %1001 = vmatpush1.msra.mxu0 0.0
    %1002 = vmatprep.subr.mxu0 0.0
    %1003 = vmatpush1.msra.mxu0 0.0
    %1004 = vmatprep.subr.mxu0 0.0
    %1005 = vmatpush1.msra.mxu0 0.0
    %1006 = vmatprep.subr.mxu0 0.0
    %1007 = vmatpush1.msra.mxu0 0.0
    %1008 = vmatprep.subr.mxu0 0.0
    %1009 = vmatpush1.msra.mxu0 0.0
    %1010 = vmatprep.subr.mxu0 0.0
    %1011 = vmatpush1.msra.mxu0 0.0
    %1012 = vmatprep.subr.mxu0 0.0
    %1013 = vmatpush1.msra.mxu0 0.0
    %1014 = vmatprep.subr.mxu0 0.0
    %1015 = vmatpush1.msra.mxu0 0.0
    %1016 = vmatprep.subr.mxu0 0.0
    %1017 = vmatpush1.msra.mxu0 0.0
    %1018 = vmatprep.subr.mxu0 0.0
    %1019 = vmatpush1.msra.mxu0 0.0
    %1020 = vmatprep.subr.mxu0 0.0
    %1021 = vmatpush1.msra.mxu0 0.0
    %1022 = vmatprep.subr.mxu0 0.0
    %1023 = vmatpush1.msra.mxu0 0.0
    %1024 = vmatprep.subr.mxu0 0.0
    %1025 = vmatpush1.msra.mxu0 0.0
    %1026 = vmatprep.mubr.f32.mxu0 0.0
    %1027 = vmatmul.mubr.f32.gmra.mrb[0].mxu0 %v873
    %v1028 = vpop.f32.mrb[0].mxu0
    %v1029 = vadd.f32 0.0, %v1028
    %v1030 = vpop.f32.mrb[0].mxu0
    %v1031 = vadd.f32 0.0, %v1030
    %1032 = vdwg.mxu0
    %v1033 = vadd.f32 %v852, %v942
    %v1034 = vadd.f32 %v853, %v944
    %v1037 = vrot.slane %v1029, 2
    %v1038 = vrot.slane %v1031, 2
    %v1041 = vadd.f32 %v854, %v1037
    %v1042 = vadd.f32 %v855, %v1038
    %v1045 = vrot.slane %v1041, 4
    %v1046 = vrot.slane %v1042, 4
    %vm1049 = vcmask 1041408
    %v1050 = vsel %vm1049, %v1033, %v1045
    %v1051 = vsel %vm1049, %v1034, %v1046
    %v1052 = vxor.u32 %v1050, 2147483648
    %v1053 = vxor.u32 %v1051, 2147483648
    %v1054 = vmul.f32 %v1052, 1.442695
    %v1055 = vpow.pop %v1054
    %v1056 = vmul.f32 %v1053, 1.442695
    %v1057 = vpow.pop %v1056
    %v1058 = vadd.f32 %v1055, 1.0
    %v1059 = vadd.f32 %v1057, 1.0
    %v1060 = vrcp.pop %v1058
    %v1061 = vmul.f32 1.0, %v1060
    %v1062 = vrcp.pop %v1059
    %v1063 = vmul.f32 1.0, %v1062
    %v1064 = vtanh.pop %v1051
    %v1065 = vmul.f32 %v1061, 0.0
    %v1066 = vmul.f32 %v1061, %v1064
    %1068 = vrot.lane.b32.xlu0 %v1066, 64
    %v1069 = vpop.permute.xlu0 %1068
    %v1071 = vadd.f32 %v1065, %v1069
    %v1072 = vtanh.pop %v1071
    %v1073 = vmul.f32 %v1063, %v1072
    %1075 = vrot.lane.b32.xlu0 %v1073, 64
    %v1076 = vpop.permute.xlu0 %1075
    %vm1078 = vcmask 517120
    %1079 = vst.msk [vmem:[#allocation3] sm:$0x3] %vm1078, %v1076
    %vm1080 = vcmask 1043970
    %1081 = vst.msk [vmem:[#allocation3 + $0xc] sm:$0xc] %vm1080, %v1073
    %v1082 = vld [vmem:[#allocation2] sm:$0xc]
    %v1083 = vld [vmem:[#allocation2 + $0x8] sm:$0xc]
    %v1084 = vld [vmem:[#allocation2 + $0x30] sm:$0x30]
    %v1085 = vld [vmem:[#allocation2 + $0x38] sm:$0x30]
    %v1086 = vld [vmem:[%s6] sm:$0xff]
    %v1087 = vld [vmem:[%s6 + $0x8] sm:$0xff]
    %v1088 = vld [vmem:[%s6 + $0x10] sm:$0xff]
    %v1089 = vld [vmem:[%s6 + $0x18] sm:$0xff]
    %v1090 = vld [vmem:[%s6 + $0x20] sm:$0xff]
    %v1091 = vld [vmem:[%s6 + $0x28] sm:$0xff]
    %v1092 = vld [vmem:[%s6 + $0x30] sm:$0xff]
    %v1093 = vld [vmem:[%s6 + $0x38] sm:$0xff]
    %v1094 = vld [vmem:[%s6 + $0x40] sm:$0xff]
    %v1095 = vld [vmem:[%s6 + $0x48] sm:$0xff]
    %v1096 = vld [vmem:[%s6 + $0x50] sm:$0xff]
    %v1097 = vld [vmem:[%s6 + $0x58] sm:$0xff]
    %v1098 = vld [vmem:[%s6 + $0x60] sm:$0xff]
    %v1099 = vld [vmem:[%s6 + $0x68] sm:$0xff]
    %v1100 = vld [vmem:[%s6 + $0x70] sm:$0xff]
    %v1101 = vld [vmem:[%s6 + $0x78] sm:$0xff]
    %v1102 = vsel %vm601, %v1076, 0
    %1104 = vmatprep.subr.mxu0 %v1087
    %1105 = vmatpush1.msra.mxu0 %v1086
    %1106 = vmatprep.subr.mxu0 %v1089
    %1107 = vmatpush1.msra.mxu0 %v1088
    %1108 = vmatprep.subr.mxu0 %v1091
    %1109 = vmatpush1.msra.mxu0 %v1090
    %1110 = vmatprep.subr.mxu0 %v1093
    %1111 = vmatpush1.msra.mxu0 %v1092
    %1112 = vmatprep.subr.mxu0 %v1095
    %1113 = vmatpush1.msra.mxu0 %v1094
    %1114 = vmatprep.subr.mxu0 %v1097
    %1115 = vmatpush1.msra.mxu0 %v1096
    %1116 = vmatprep.subr.mxu0 %v1099
    %1117 = vmatpush1.msra.mxu0 %v1098
    %1118 = vmatprep.subr.mxu0 %v1101
    %1119 = vmatpush1.msra.mxu0 %v1100
    %1120 = vmatprep.subr.mxu0 0.0
    %1121 = vmatpush1.msra.mxu0 0.0
    %1122 = vmatprep.subr.mxu0 0.0
    %1123 = vmatpush1.msra.mxu0 0.0
    %1124 = vmatprep.subr.mxu0 0.0
    %1125 = vmatpush1.msra.mxu0 0.0
    %1126 = vmatprep.subr.mxu0 0.0
    %1127 = vmatpush1.msra.mxu0 0.0
    %1128 = vmatprep.subr.mxu0 0.0
    %1129 = vmatpush1.msra.mxu0 0.0
    %1130 = vmatprep.subr.mxu0 0.0
    %1131 = vmatpush1.msra.mxu0 0.0
    %1132 = vmatprep.subr.mxu0 0.0
    %1133 = vmatpush1.msra.mxu0 0.0
    %1134 = vmatprep.subr.mxu0 0.0
    %1135 = vmatpush1.msra.mxu0 0.0
    %1136 = vmatprep.subr.mxu0 0.0
    %1137 = vmatpush1.msra.mxu0 0.0
    %1138 = vmatprep.subr.mxu0 0.0
    %1139 = vmatpush1.msra.mxu0 0.0
    %1140 = vmatprep.subr.mxu0 0.0
    %1141 = vmatpush1.msra.mxu0 0.0
    %1142 = vmatprep.subr.mxu0 0.0
    %1143 = vmatpush1.msra.mxu0 0.0
    %1144 = vmatprep.subr.mxu0 0.0
    %1145 = vmatpush1.msra.mxu0 0.0
    %1146 = vmatprep.subr.mxu0 0.0
    %1147 = vmatpush1.msra.mxu0 0.0
    %1148 = vmatprep.subr.mxu0 0.0
    %1149 = vmatpush1.msra.mxu0 0.0
    %1150 = vmatprep.subr.mxu0 0.0
    %1151 = vmatpush1.msra.mxu0 0.0
    %1152 = vmatprep.subr.mxu0 0.0
    %1153 = vmatpush1.msra.mxu0 0.0
    %1154 = vmatprep.subr.mxu0 0.0
    %1155 = vmatpush1.msra.mxu0 0.0
    %1156 = vmatprep.subr.mxu0 0.0
    %1157 = vmatpush1.msra.mxu0 0.0
    %1158 = vmatprep.subr.mxu0 0.0
    %1159 = vmatpush1.msra.mxu0 0.0
    %1160 = vmatprep.subr.mxu0 0.0
    %1161 = vmatpush1.msra.mxu0 0.0
    %1162 = vmatprep.subr.mxu0 0.0
    %1163 = vmatpush1.msra.mxu0 0.0
    %1164 = vmatprep.subr.mxu0 0.0
    %1165 = vmatpush1.msra.mxu0 0.0
    %1166 = vmatprep.subr.mxu0 0.0
    %1167 = vmatpush1.msra.mxu0 0.0
    %1168 = vmatprep.mubr.f32.mxu0 0.0
    %1169 = vmatmul.mubr.f32.gmra.mrb[0].mxu0 %v1102
    %v1170 = vpop.f32.mrb[0].mxu0
    %v1171 = vadd.f32 0.0, %v1170
    %v1172 = vpop.f32.mrb[0].mxu0
    %v1173 = vadd.f32 0.0, %v1172
    %1174 = vdwg.mxu0
    %v1175 = vld [vmem:[#allocation7] sm:$0xff]
    %v1176 = vld [vmem:[#allocation7 + $0x8] sm:$0xff]
    %v1177 = vld [vmem:[#allocation7 + $0x10] sm:$0xff]
    %v1178 = vld [vmem:[#allocation7 + $0x18] sm:$0xff]
    %v1179 = vld [vmem:[#allocation7 + $0x20] sm:$0xff]
    %v1180 = vld [vmem:[#allocation7 + $0x28] sm:$0xff]
    %v1181 = vld [vmem:[#allocation7 + $0x30] sm:$0xff]
    %v1182 = vld [vmem:[#allocation7 + $0x38] sm:$0xff]
    %v1183 = vld [vmem:[#allocation7 + $0x40] sm:$0xff]
    %v1184 = vld [vmem:[#allocation7 + $0x48] sm:$0xff]
    %v1185 = vld [vmem:[#allocation7 + $0x50] sm:$0xff]
    %v1186 = vld [vmem:[#allocation7 + $0x58] sm:$0xff]
    %v1187 = vld [vmem:[#allocation7 + $0x60] sm:$0xff]
    %v1188 = vld [vmem:[#allocation7 + $0x68] sm:$0xff]
    %v1189 = vld [vmem:[#allocation7 + $0x70] sm:$0xff]
    %v1190 = vld [vmem:[#allocation7 + $0x78] sm:$0xff]
    %v1191 = vrot.slane %v1073, 2
    %1192 = vrot.lane.b32.xlu0 %v1191, 64
    %v1193 = vpop.permute.xlu0 %1192
    %v1194 = vsel %vm601, %v1193, 0
    %1196 = vmatprep.subr.mxu0 %v1176
    %1197 = vmatpush1.msra.mxu0 %v1175
    %1198 = vmatprep.subr.mxu0 %v1178
    %1199 = vmatpush1.msra.mxu0 %v1177
    %1200 = vmatprep.subr.mxu0 %v1180
    %1201 = vmatpush1.msra.mxu0 %v1179
    %1202 = vmatprep.subr.mxu0 %v1182
    %1203 = vmatpush1.msra.mxu0 %v1181
    %1204 = vmatprep.subr.mxu0 %v1184
    %1205 = vmatpush1.msra.mxu0 %v1183
    %1206 = vmatprep.subr.mxu0 %v1186
    %1207 = vmatpush1.msra.mxu0 %v1185
    %1208 = vmatprep.subr.mxu0 %v1188
    %1209 = vmatpush1.msra.mxu0 %v1187
    %1210 = vmatprep.subr.mxu0 %v1190
    %1211 = vmatpush1.msra.mxu0 %v1189
    %1212 = vmatprep.subr.mxu0 0.0
    %1213 = vmatpush1.msra.mxu0 0.0
    %1214 = vmatprep.subr.mxu0 0.0
    %1215 = vmatpush1.msra.mxu0 0.0
    %1216 = vmatprep.subr.mxu0 0.0
    %1217 = vmatpush1.msra.mxu0 0.0
    %1218 = vmatprep.subr.mxu0 0.0
    %1219 = vmatpush1.msra.mxu0 0.0
    %1220 = vmatprep.subr.mxu0 0.0
    %1221 = vmatpush1.msra.mxu0 0.0
    %1222 = vmatprep.subr.mxu0 0.0
    %1223 = vmatpush1.msra.mxu0 0.0
    %1224 = vmatprep.subr.mxu0 0.0
    %1225 = vmatpush1.msra.mxu0 0.0
    %1226 = vmatprep.subr.mxu0 0.0
    %1227 = vmatpush1.msra.mxu0 0.0
    %1228 = vmatprep.subr.mxu0 0.0
    %1229 = vmatpush1.msra.mxu0 0.0
    %1230 = vmatprep.subr.mxu0 0.0
    %1231 = vmatpush1.msra.mxu0 0.0
    %1232 = vmatprep.subr.mxu0 0.0
    %1233 = vmatpush1.msra.mxu0 0.0
    %1234 = vmatprep.subr.mxu0 0.0
    %1235 = vmatpush1.msra.mxu0 0.0
    %1236 = vmatprep.subr.mxu0 0.0
    %1237 = vmatpush1.msra.mxu0 0.0
    %1238 = vmatprep.subr.mxu0 0.0
    %1239 = vmatpush1.msra.mxu0 0.0
    %1240 = vmatprep.subr.mxu0 0.0
    %1241 = vmatpush1.msra.mxu0 0.0
    %1242 = vmatprep.subr.mxu0 0.0
    %1243 = vmatpush1.msra.mxu0 0.0
    %1244 = vmatprep.subr.mxu0 0.0
    %1245 = vmatpush1.msra.mxu0 0.0
    %1246 = vmatprep.subr.mxu0 0.0
    %1247 = vmatpush1.msra.mxu0 0.0
    %1248 = vmatprep.subr.mxu0 0.0
    %1249 = vmatpush1.msra.mxu0 0.0
    %1250 = vmatprep.subr.mxu0 0.0
    %1251 = vmatpush1.msra.mxu0 0.0
    %1252 = vmatprep.subr.mxu0 0.0
    %1253 = vmatpush1.msra.mxu0 0.0
    %1254 = vmatprep.subr.mxu0 0.0
    %1255 = vmatpush1.msra.mxu0 0.0
    %1256 = vmatprep.subr.mxu0 0.0
    %1257 = vmatpush1.msra.mxu0 0.0
    %1258 = vmatprep.subr.mxu0 0.0
    %1259 = vmatpush1.msra.mxu0 0.0
    %1260 = vmatprep.mubr.f32.mxu0 0.0
    %1261 = vmatmul.mubr.f32.gmra.mrb[0].mxu0 %v1194
    %v1262 = vpop.f32.mrb[0].mxu0
    %v1263 = vadd.f32 0.0, %v1262
    %v1264 = vpop.f32.mrb[0].mxu0
    %v1265 = vadd.f32 0.0, %v1264
    %1266 = vdwg.mxu0
    %v1269 = vrot.slane %v1171, 6
    %v1270 = vrot.slane %v1173, 6
    %v1273 = vadd.f32 %v1082, %v1269
    %v1274 = vadd.f32 %v1083, %v1270
    %v1277 = vrot.slane %v1263, 4
    %v1278 = vrot.slane %v1265, 4
    %v1281 = vadd.f32 %v1084, %v1277
    %v1282 = vadd.f32 %v1085, %v1278
    %v1285 = vrot.slane %v1273, 2
    %v1286 = vrot.slane %v1274, 2
    %v1291 = vrot.slane %v1281, 2
    %v1292 = vrot.slane %v1282, 2
    %v1295 = vsel %vm1049, %v1285, %v1291
    %v1296 = vsel %vm1049, %v1286, %v1292
    %v1297 = vxor.u32 %v1295, 2147483648
    %v1298 = vxor.u32 %v1296, 2147483648
    %v1299 = vmul.f32 %v1297, 1.442695
    %v1300 = vpow.pop %v1299
    %v1301 = vmul.f32 %v1298, 1.442695
    %v1302 = vpow.pop %v1301
    %v1303 = vadd.f32 %v1300, 1.0
    %v1304 = vadd.f32 %v1302, 1.0
    %v1305 = vrcp.pop %v1303
    %v1306 = vmul.f32 1.0, %v1305
    %v1307 = vrcp.pop %v1304
    %v1308 = vmul.f32 1.0, %v1307
    %v1309 = vtanh.pop %v1296
    %v1310 = vmul.f32 %v1306, %v1071
    %v1311 = vmul.f32 %v1306, %v1309
    %1313 = vrot.lane.b32.xlu0 %v1311, 64
    %v1314 = vpop.permute.xlu0 %1313
    %v1316 = vadd.f32 %v1310, %v1314
    %v1317 = vtanh.pop %v1316
    %v1318 = vmul.f32 %v1308, %v1317
    %1320 = vrot.lane.b32.xlu0 %v1318, 64
    %v1321 = vpop.permute.xlu0 %1320
    %1323 = vst.msk [vmem:[#allocation3 + $0x2] sm:$0x3] %vm1078, %v1321
    %1324 = vst.msk [vmem:[#allocation3 + $0xa] sm:$0xc] %vm1080, %v1318
    %v1325 = vld [vmem:[#allocation2] sm:$0x30]
    %v1326 = vld [vmem:[#allocation2 + $0x8] sm:$0x30]
    %v1327 = vld [vmem:[#allocation2 + $0x30] sm:$0xc]
    %v1328 = vld [vmem:[#allocation2 + $0x38] sm:$0xc]
    %v1329 = vld [vmem:[%s6] sm:$0xff]
    %v1330 = vld [vmem:[%s6 + $0x8] sm:$0xff]
    %v1331 = vld [vmem:[%s6 + $0x10] sm:$0xff]
    %v1332 = vld [vmem:[%s6 + $0x18] sm:$0xff]
    %v1333 = vld [vmem:[%s6 + $0x20] sm:$0xff]
    %v1334 = vld [vmem:[%s6 + $0x28] sm:$0xff]
    %v1335 = vld [vmem:[%s6 + $0x30] sm:$0xff]
    %v1336 = vld [vmem:[%s6 + $0x38] sm:$0xff]
    %v1337 = vld [vmem:[%s6 + $0x40] sm:$0xff]
    %v1338 = vld [vmem:[%s6 + $0x48] sm:$0xff]
    %v1339 = vld [vmem:[%s6 + $0x50] sm:$0xff]
    %v1340 = vld [vmem:[%s6 + $0x58] sm:$0xff]
    %v1341 = vld [vmem:[%s6 + $0x60] sm:$0xff]
    %v1342 = vld [vmem:[%s6 + $0x68] sm:$0xff]
    %v1343 = vld [vmem:[%s6 + $0x70] sm:$0xff]
    %v1344 = vld [vmem:[%s6 + $0x78] sm:$0xff]
    %v1345 = vsel %vm601, %v1321, 0
    %1347 = vmatprep.subr.mxu0 %v1330
    %1348 = vmatpush1.msra.mxu0 %v1329
    %1349 = vmatprep.subr.mxu0 %v1332
    %1350 = vmatpush1.msra.mxu0 %v1331
    %1351 = vmatprep.subr.mxu0 %v1334
    %1352 = vmatpush1.msra.mxu0 %v1333
    %1353 = vmatprep.subr.mxu0 %v1336
    %1354 = vmatpush1.msra.mxu0 %v1335
    %1355 = vmatprep.subr.mxu0 %v1338
    %1356 = vmatpush1.msra.mxu0 %v1337
    %1357 = vmatprep.subr.mxu0 %v1340
    %1358 = vmatpush1.msra.mxu0 %v1339
    %1359 = vmatprep.subr.mxu0 %v1342
    %1360 = vmatpush1.msra.mxu0 %v1341
    %1361 = vmatprep.subr.mxu0 %v1344
    %1362 = vmatpush1.msra.mxu0 %v1343
    %1363 = vmatprep.subr.mxu0 0.0
    %1364 = vmatpush1.msra.mxu0 0.0
    %1365 = vmatprep.subr.mxu0 0.0
    %1366 = vmatpush1.msra.mxu0 0.0
    %1367 = vmatprep.subr.mxu0 0.0
    %1368 = vmatpush1.msra.mxu0 0.0
    %1369 = vmatprep.subr.mxu0 0.0
    %1370 = vmatpush1.msra.mxu0 0.0
    %1371 = vmatprep.subr.mxu0 0.0
    %1372 = vmatpush1.msra.mxu0 0.0
    %1373 = vmatprep.subr.mxu0 0.0
    %1374 = vmatpush1.msra.mxu0 0.0
    %1375 = vmatprep.subr.mxu0 0.0
    %1376 = vmatpush1.msra.mxu0 0.0
    %1377 = vmatprep.subr.mxu0 0.0
    %1378 = vmatpush1.msra.mxu0 0.0
    %1379 = vmatprep.subr.mxu0 0.0
    %1380 = vmatpush1.msra.mxu0 0.0
    %1381 = vmatprep.subr.mxu0 0.0
    %1382 = vmatpush1.msra.mxu0 0.0
    %1383 = vmatprep.subr.mxu0 0.0
    %1384 = vmatpush1.msra.mxu0 0.0
    %1385 = vmatprep.subr.mxu0 0.0
    %1386 = vmatpush1.msra.mxu0 0.0
    %1387 = vmatprep.subr.mxu0 0.0
    %1388 = vmatpush1.msra.mxu0 0.0
    %1389 = vmatprep.subr.mxu0 0.0
    %1390 = vmatpush1.msra.mxu0 0.0
    %1391 = vmatprep.subr.mxu0 0.0
    %1392 = vmatpush1.msra.mxu0 0.0
    %1393 = vmatprep.subr.mxu0 0.0
    %1394 = vmatpush1.msra.mxu0 0.0
    %1395 = vmatprep.subr.mxu0 0.0
    %1396 = vmatpush1.msra.mxu0 0.0
    %1397 = vmatprep.subr.mxu0 0.0
    %1398 = vmatpush1.msra.mxu0 0.0
    %1399 = vmatprep.subr.mxu0 0.0
    %1400 = vmatpush1.msra.mxu0 0.0
    %1401 = vmatprep.subr.mxu0 0.0
    %1402 = vmatpush1.msra.mxu0 0.0
    %1403 = vmatprep.subr.mxu0 0.0
    %1404 = vmatpush1.msra.mxu0 0.0
    %1405 = vmatprep.subr.mxu0 0.0
    %1406 = vmatpush1.msra.mxu0 0.0
    %1407 = vmatprep.subr.mxu0 0.0
    %1408 = vmatpush1.msra.mxu0 0.0
    %1409 = vmatprep.subr.mxu0 0.0
    %1410 = vmatpush1.msra.mxu0 0.0
    %1411 = vmatprep.mubr.f32.mxu0 0.0
    %1412 = vmatmul.mubr.f32.gmra.mrb[0].mxu0 %v1345
    %v1413 = vpop.f32.mrb[0].mxu0
    %v1414 = vadd.f32 0.0, %v1413
    %v1415 = vpop.f32.mrb[0].mxu0
    %v1416 = vadd.f32 0.0, %v1415
    %1417 = vdwg.mxu0
    %v1418 = vld [vmem:[#allocation7] sm:$0xff]
    %v1419 = vld [vmem:[#allocation7 + $0x8] sm:$0xff]
    %v1420 = vld [vmem:[#allocation7 + $0x10] sm:$0xff]
    %v1421 = vld [vmem:[#allocation7 + $0x18] sm:$0xff]
    %v1422 = vld [vmem:[#allocation7 + $0x20] sm:$0xff]
    %v1423 = vld [vmem:[#allocation7 + $0x28] sm:$0xff]
    %v1424 = vld [vmem:[#allocation7 + $0x30] sm:$0xff]
    %v1425 = vld [vmem:[#allocation7 + $0x38] sm:$0xff]
    %v1426 = vld [vmem:[#allocation7 + $0x40] sm:$0xff]
    %v1427 = vld [vmem:[#allocation7 + $0x48] sm:$0xff]
    %v1428 = vld [vmem:[#allocation7 + $0x50] sm:$0xff]
    %v1429 = vld [vmem:[#allocation7 + $0x58] sm:$0xff]
    %v1430 = vld [vmem:[#allocation7 + $0x60] sm:$0xff]
    %v1431 = vld [vmem:[#allocation7 + $0x68] sm:$0xff]
    %v1432 = vld [vmem:[#allocation7 + $0x70] sm:$0xff]
    %v1433 = vld [vmem:[#allocation7 + $0x78] sm:$0xff]
    %v1434 = vrot.slane %v1318, 2
    %1435 = vrot.lane.b32.xlu0 %v1434, 64
    %v1436 = vpop.permute.xlu0 %1435
    %v1437 = vsel %vm601, %v1436, 0
    %1439 = vmatprep.subr.mxu0 %v1419
    %1440 = vmatpush1.msra.mxu0 %v1418
    %1441 = vmatprep.subr.mxu0 %v1421
    %1442 = vmatpush1.msra.mxu0 %v1420
    %1443 = vmatprep.subr.mxu0 %v1423
    %1444 = vmatpush1.msra.mxu0 %v1422
    %1445 = vmatprep.subr.mxu0 %v1425
    %1446 = vmatpush1.msra.mxu0 %v1424
    %1447 = vmatprep.subr.mxu0 %v1427
    %1448 = vmatpush1.msra.mxu0 %v1426
    %1449 = vmatprep.subr.mxu0 %v1429
    %1450 = vmatpush1.msra.mxu0 %v1428
    %1451 = vmatprep.subr.mxu0 %v1431
    %1452 = vmatpush1.msra.mxu0 %v1430
    %1453 = vmatprep.subr.mxu0 %v1433
    %1454 = vmatpush1.msra.mxu0 %v1432
    %1455 = vmatprep.subr.mxu0 0.0
    %1456 = vmatpush1.msra.mxu0 0.0
    %1457 = vmatprep.subr.mxu0 0.0
    %1458 = vmatpush1.msra.mxu0 0.0
    %1459 = vmatprep.subr.mxu0 0.0
    %1460 = vmatpush1.msra.mxu0 0.0
    %1461 = vmatprep.subr.mxu0 0.0
    %1462 = vmatpush1.msra.mxu0 0.0
    %1463 = vmatprep.subr.mxu0 0.0
    %1464 = vmatpush1.msra.mxu0 0.0
    %1465 = vmatprep.subr.mxu0 0.0
    %1466 = vmatpush1.msra.mxu0 0.0
    %1467 = vmatprep.subr.mxu0 0.0
    %1468 = vmatpush1.msra.mxu0 0.0
    %1469 = vmatprep.subr.mxu0 0.0
    %1470 = vmatpush1.msra.mxu0 0.0
    %1471 = vmatprep.subr.mxu0 0.0
    %1472 = vmatpush1.msra.mxu0 0.0
    %1473 = vmatprep.subr.mxu0 0.0
    %1474 = vmatpush1.msra.mxu0 0.0
    %1475 = vmatprep.subr.mxu0 0.0
    %1476 = vmatpush1.msra.mxu0 0.0
    %1477 = vmatprep.subr.mxu0 0.0
    %1478 = vmatpush1.msra.mxu0 0.0
    %1479 = vmatprep.subr.mxu0 0.0
    %1480 = vmatpush1.msra.mxu0 0.0
    %1481 = vmatprep.subr.mxu0 0.0
    %1482 = vmatpush1.msra.mxu0 0.0
    %1483 = vmatprep.subr.mxu0 0.0
    %1484 = vmatpush1.msra.mxu0 0.0
    %1485 = vmatprep.subr.mxu0 0.0
    %1486 = vmatpush1.msra.mxu0 0.0
    %1487 = vmatprep.subr.mxu0 0.0
    %1488 = vmatpush1.msra.mxu0 0.0
    %1489 = vmatprep.subr.mxu0 0.0
    %1490 = vmatpush1.msra.mxu0 0.0
    %1491 = vmatprep.subr.mxu0 0.0
    %1492 = vmatpush1.msra.mxu0 0.0
    %1493 = vmatprep.subr.mxu0 0.0
    %1494 = vmatpush1.msra.mxu0 0.0
    %1495 = vmatprep.subr.mxu0 0.0
    %1496 = vmatpush1.msra.mxu0 0.0
    %1497 = vmatprep.subr.mxu0 0.0
    %1498 = vmatpush1.msra.mxu0 0.0
    %1499 = vmatprep.subr.mxu0 0.0
    %1500 = vmatpush1.msra.mxu0 0.0
    %1501 = vmatprep.subr.mxu0 0.0
    %1502 = vmatpush1.msra.mxu0 0.0
    %1503 = vmatprep.mubr.f32.mxu0 0.0
    %1504 = vmatmul.mubr.f32.gmra.mrb[0].mxu0 %v1437
    %v1505 = vpop.f32.mrb[0].mxu0
    %v1506 = vadd.f32 0.0, %v1505
    %v1507 = vpop.f32.mrb[0].mxu0
    %v1508 = vadd.f32 0.0, %v1507
    %1509 = vdwg.mxu0
    %v1512 = vrot.slane %v1414, 4
    %v1513 = vrot.slane %v1416, 4
    %v1516 = vadd.f32 %v1325, %v1512
    %v1517 = vadd.f32 %v1326, %v1513
    %v1520 = vrot.slane %v1506, 6
    %v1521 = vrot.slane %v1508, 6
    %v1524 = vadd.f32 %v1327, %v1520
    %v1525 = vadd.f32 %v1328, %v1521
    %v1528 = vrot.slane %v1516, 4
    %v1529 = vrot.slane %v1517, 4
    %v1532 = vsel %vm1049, %v1528, %v1524
    %v1533 = vsel %vm1049, %v1529, %v1525
    %v1534 = vxor.u32 %v1532, 2147483648
    %v1535 = vxor.u32 %v1533, 2147483648
    %v1536 = vmul.f32 %v1534, 1.442695
    %v1537 = vpow.pop %v1536
    %v1538 = vmul.f32 %v1535, 1.442695
    %v1539 = vpow.pop %v1538
    %v1540 = vadd.f32 %v1537, 1.0
    %v1541 = vadd.f32 %v1539, 1.0
    %v1542 = vrcp.pop %v1540
    %v1543 = vmul.f32 1.0, %v1542
    %v1544 = vrcp.pop %v1541
    %v1545 = vmul.f32 1.0, %v1544
    %v1546 = vtanh.pop %v1533
    %v1547 = vmul.f32 %v1543, %v1316
    %v1548 = vmul.f32 %v1543, %v1546
    %1550 = vrot.lane.b32.xlu0 %v1548, 64
    %v1551 = vpop.permute.xlu0 %1550
    %v1553 = vadd.f32 %v1547, %v1551
    %v1554 = vtanh.pop %v1553
    %v1555 = vmul.f32 %v1545, %v1554
    %1557 = vrot.lane.b32.xlu0 %v1555, 64
    %v1558 = vpop.permute.xlu0 %1557
    %1560 = vst.msk [vmem:[#allocation3 + $0x4] sm:$0x3] %vm1078, %v1558
    %1561 = vst.msk [vmem:[#allocation3 + $0x8] sm:$0xc] %vm1080, %v1555
    %v1562 = vld [vmem:[#allocation2] sm:$0xc0]
    %v1563 = vld [vmem:[#allocation2 + $0x8] sm:$0xc0]
    %v1564 = vld [vmem:[#allocation2 + $0x30] sm:$0x3]
    %v1565 = vld [vmem:[#allocation2 + $0x38] sm:$0x3]
    %v1566 = vld [vmem:[%s6] sm:$0xff]
    %v1567 = vld [vmem:[%s6 + $0x8] sm:$0xff]
    %v1568 = vld [vmem:[%s6 + $0x10] sm:$0xff]
    %v1569 = vld [vmem:[%s6 + $0x18] sm:$0xff]
    %v1570 = vld [vmem:[%s6 + $0x20] sm:$0xff]
    %v1571 = vld [vmem:[%s6 + $0x28] sm:$0xff]
    %v1572 = vld [vmem:[%s6 + $0x30] sm:$0xff]
    %v1573 = vld [vmem:[%s6 + $0x38] sm:$0xff]
    %v1574 = vld [vmem:[%s6 + $0x40] sm:$0xff]
    %v1575 = vld [vmem:[%s6 + $0x48] sm:$0xff]
    %v1576 = vld [vmem:[%s6 + $0x50] sm:$0xff]
    %v1577 = vld [vmem:[%s6 + $0x58] sm:$0xff]
    %v1578 = vld [vmem:[%s6 + $0x60] sm:$0xff]
    %v1579 = vld [vmem:[%s6 + $0x68] sm:$0xff]
    %v1580 = vld [vmem:[%s6 + $0x70] sm:$0xff]
    %v1581 = vld [vmem:[%s6 + $0x78] sm:$0xff]
    %v1582 = vsel %vm601, %v1558, 0
    %1584 = vmatprep.subr.mxu0 %v1567
    %1585 = vmatpush1.msra.mxu0 %v1566
    %1586 = vmatprep.subr.mxu0 %v1569
    %1587 = vmatpush1.msra.mxu0 %v1568
    %1588 = vmatprep.subr.mxu0 %v1571
    %1589 = vmatpush1.msra.mxu0 %v1570
    %1590 = vmatprep.subr.mxu0 %v1573
    %1591 = vmatpush1.msra.mxu0 %v1572
    %1592 = vmatprep.subr.mxu0 %v1575
    %1593 = vmatpush1.msra.mxu0 %v1574
    %1594 = vmatprep.subr.mxu0 %v1577
    %1595 = vmatpush1.msra.mxu0 %v1576
    %1596 = vmatprep.subr.mxu0 %v1579
    %1597 = vmatpush1.msra.mxu0 %v1578
    %1598 = vmatprep.subr.mxu0 %v1581
    %1599 = vmatpush1.msra.mxu0 %v1580
    %1600 = vmatprep.subr.mxu0 0.0
    %1601 = vmatpush1.msra.mxu0 0.0
    %1602 = vmatprep.subr.mxu0 0.0
    %1603 = vmatpush1.msra.mxu0 0.0
    %1604 = vmatprep.subr.mxu0 0.0
    %1605 = vmatpush1.msra.mxu0 0.0
    %1606 = vmatprep.subr.mxu0 0.0
    %1607 = vmatpush1.msra.mxu0 0.0
    %1608 = vmatprep.subr.mxu0 0.0
    %1609 = vmatpush1.msra.mxu0 0.0
    %1610 = vmatprep.subr.mxu0 0.0
    %1611 = vmatpush1.msra.mxu0 0.0
    %1612 = vmatprep.subr.mxu0 0.0
    %1613 = vmatpush1.msra.mxu0 0.0
    %1614 = vmatprep.subr.mxu0 0.0
    %1615 = vmatpush1.msra.mxu0 0.0
    %1616 = vmatprep.subr.mxu0 0.0
    %1617 = vmatpush1.msra.mxu0 0.0
    %1618 = vmatprep.subr.mxu0 0.0
    %1619 = vmatpush1.msra.mxu0 0.0
    %1620 = vmatprep.subr.mxu0 0.0
    %1621 = vmatpush1.msra.mxu0 0.0
    %1622 = vmatprep.subr.mxu0 0.0
    %1623 = vmatpush1.msra.mxu0 0.0
    %1624 = vmatprep.subr.mxu0 0.0
    %1625 = vmatpush1.msra.mxu0 0.0
    %1626 = vmatprep.subr.mxu0 0.0
    %1627 = vmatpush1.msra.mxu0 0.0
    %1628 = vmatprep.subr.mxu0 0.0
    %1629 = vmatpush1.msra.mxu0 0.0
    %1630 = vmatprep.subr.mxu0 0.0
    %1631 = vmatpush1.msra.mxu0 0.0
    %1632 = vmatprep.subr.mxu0 0.0
    %1633 = vmatpush1.msra.mxu0 0.0
    %1634 = vmatprep.subr.mxu0 0.0
    %1635 = vmatpush1.msra.mxu0 0.0
    %1636 = vmatprep.subr.mxu0 0.0
    %1637 = vmatpush1.msra.mxu0 0.0
    %1638 = vmatprep.subr.mxu0 0.0
    %1639 = vmatpush1.msra.mxu0 0.0
    %1640 = vmatprep.subr.mxu0 0.0
    %1641 = vmatpush1.msra.mxu0 0.0
    %1642 = vmatprep.subr.mxu0 0.0
    %1643 = vmatpush1.msra.mxu0 0.0
    %1644 = vmatprep.subr.mxu0 0.0
    %1645 = vmatpush1.msra.mxu0 0.0
    %1646 = vmatprep.subr.mxu0 0.0
    %1647 = vmatpush1.msra.mxu0 0.0
    %1648 = vmatprep.mubr.f32.mxu0 0.0
    %1649 = vmatmul.mubr.f32.gmra.mrb[0].mxu0 %v1582
    %v1650 = vpop.f32.mrb[0].mxu0
    %v1651 = vadd.f32 0.0, %v1650
    %v1652 = vpop.f32.mrb[0].mxu0
    %v1653 = vadd.f32 0.0, %v1652
    %1654 = vdwg.mxu0
    %v1655 = vld [vmem:[#allocation7] sm:$0xff]
    %v1656 = vld [vmem:[#allocation7 + $0x8] sm:$0xff]
    %v1657 = vld [vmem:[#allocation7 + $0x10] sm:$0xff]
    %v1658 = vld [vmem:[#allocation7 + $0x18] sm:$0xff]
    %v1659 = vld [vmem:[#allocation7 + $0x20] sm:$0xff]
    %v1660 = vld [vmem:[#allocation7 + $0x28] sm:$0xff]
    %v1661 = vld [vmem:[#allocation7 + $0x30] sm:$0xff]
    %v1662 = vld [vmem:[#allocation7 + $0x38] sm:$0xff]
    %v1663 = vld [vmem:[#allocation7 + $0x40] sm:$0xff]
    %v1664 = vld [vmem:[#allocation7 + $0x48] sm:$0xff]
    %v1665 = vld [vmem:[#allocation7 + $0x50] sm:$0xff]
    %v1666 = vld [vmem:[#allocation7 + $0x58] sm:$0xff]
    %v1667 = vld [vmem:[#allocation7 + $0x60] sm:$0xff]
    %v1668 = vld [vmem:[#allocation7 + $0x68] sm:$0xff]
    %v1669 = vld [vmem:[#allocation7 + $0x70] sm:$0xff]
    %v1670 = vld [vmem:[#allocation7 + $0x78] sm:$0xff]
    %v1671 = vrot.slane %v1555, 2
    %1672 = vrot.lane.b32.xlu0 %v1671, 64
    %v1673 = vpop.permute.xlu0 %1672
    %v1674 = vsel %vm601, %v1673, 0
    %1676 = vmatprep.subr.mxu0 %v1656
    %1677 = vmatpush1.msra.mxu0 %v1655
    %1678 = vmatprep.subr.mxu0 %v1658
    %1679 = vmatpush1.msra.mxu0 %v1657
    %1680 = vmatprep.subr.mxu0 %v1660
    %1681 = vmatpush1.msra.mxu0 %v1659
    %1682 = vmatprep.subr.mxu0 %v1662
    %1683 = vmatpush1.msra.mxu0 %v1661
    %1684 = vmatprep.subr.mxu0 %v1664
    %1685 = vmatpush1.msra.mxu0 %v1663
    %1686 = vmatprep.subr.mxu0 %v1666
    %1687 = vmatpush1.msra.mxu0 %v1665
    %1688 = vmatprep.subr.mxu0 %v1668
    %1689 = vmatpush1.msra.mxu0 %v1667
    %1690 = vmatprep.subr.mxu0 %v1670
    %1691 = vmatpush1.msra.mxu0 %v1669
    %1692 = vmatprep.subr.mxu0 0.0
    %1693 = vmatpush1.msra.mxu0 0.0
    %1694 = vmatprep.subr.mxu0 0.0
    %1695 = vmatpush1.msra.mxu0 0.0
    %1696 = vmatprep.subr.mxu0 0.0
    %1697 = vmatpush1.msra.mxu0 0.0
    %1698 = vmatprep.subr.mxu0 0.0
    %1699 = vmatpush1.msra.mxu0 0.0
    %1700 = vmatprep.subr.mxu0 0.0
    %1701 = vmatpush1.msra.mxu0 0.0
    %1702 = vmatprep.subr.mxu0 0.0
    %1703 = vmatpush1.msra.mxu0 0.0
    %1704 = vmatprep.subr.mxu0 0.0
    %1705 = vmatpush1.msra.mxu0 0.0
    %1706 = vmatprep.subr.mxu0 0.0
    %1707 = vmatpush1.msra.mxu0 0.0
    %1708 = vmatprep.subr.mxu0 0.0
    %1709 = vmatpush1.msra.mxu0 0.0
    %1710 = vmatprep.subr.mxu0 0.0
    %1711 = vmatpush1.msra.mxu0 0.0
    %1712 = vmatprep.subr.mxu0 0.0
    %1713 = vmatpush1.msra.mxu0 0.0
    %1714 = vmatprep.subr.mxu0 0.0
    %1715 = vmatpush1.msra.mxu0 0.0
    %1716 = vmatprep.subr.mxu0 0.0
    %1717 = vmatpush1.msra.mxu0 0.0
    %1718 = vmatprep.subr.mxu0 0.0
    %1719 = vmatpush1.msra.mxu0 0.0
    %1720 = vmatprep.subr.mxu0 0.0
    %1721 = vmatpush1.msra.mxu0 0.0
    %1722 = vmatprep.subr.mxu0 0.0
    %1723 = vmatpush1.msra.mxu0 0.0
    %1724 = vmatprep.subr.mxu0 0.0
    %1725 = vmatpush1.msra.mxu0 0.0
    %1726 = vmatprep.subr.mxu0 0.0
    %1727 = vmatpush1.msra.mxu0 0.0
    %1728 = vmatprep.subr.mxu0 0.0
    %1729 = vmatpush1.msra.mxu0 0.0
    %1730 = vmatprep.subr.mxu0 0.0
    %1731 = vmatpush1.msra.mxu0 0.0
    %1732 = vmatprep.subr.mxu0 0.0
    %1733 = vmatpush1.msra.mxu0 0.0
    %1734 = vmatprep.subr.mxu0 0.0
    %1735 = vmatpush1.msra.mxu0 0.0
    %1736 = vmatprep.subr.mxu0 0.0
    %1737 = vmatpush1.msra.mxu0 0.0
    %1738 = vmatprep.subr.mxu0 0.0
    %1739 = vmatpush1.msra.mxu0 0.0
    %1740 = vmatprep.mubr.f32.mxu0 0.0
    %1741 = vmatmul.mubr.f32.gmra.mrb[0].mxu0 %v1674
    %v1742 = vpop.f32.mrb[0].mxu0
    %v1743 = vadd.f32 0.0, %v1742
    %v1744 = vpop.f32.mrb[0].mxu0
    %v1745 = vadd.f32 0.0, %v1744
    %1746 = vdwg.mxu0
    %v1749 = vrot.slane %v1651, 2
    %v1750 = vrot.slane %v1653, 2
    %v1753 = vadd.f32 %v1562, %v1749
    %v1754 = vadd.f32 %v1563, %v1750
    %v1755 = vadd.f32 %v1564, %v1743
    %v1756 = vadd.f32 %v1565, %v1745
    %v1759 = vrot.slane %v1753, 6
    %v1760 = vrot.slane %v1754, 6
    %v1765 = vrot.slane %v1755, 6
    %v1766 = vrot.slane %v1756, 6
    %v1769 = vsel %vm1049, %v1759, %v1765
    %v1770 = vsel %vm1049, %v1760, %v1766
    %v1771 = vxor.u32 %v1769, 2147483648
    %v1772 = vxor.u32 %v1770, 2147483648
    %v1773 = vmul.f32 %v1771, 1.442695
    %v1774 = vpow.pop %v1773
    %v1775 = vmul.f32 %v1772, 1.442695
    %v1776 = vpow.pop %v1775
    %v1777 = vadd.f32 %v1774, 1.0
    %v1778 = vadd.f32 %v1776, 1.0
    %v1779 = vrcp.pop %v1777
    %v1780 = vmul.f32 1.0, %v1779
    %v1781 = vrcp.pop %v1778
    %v1782 = vmul.f32 1.0, %v1781
    %v1783 = vtanh.pop %v1770
    %v1784 = vmul.f32 %v1780, %v1553
    %v1785 = vmul.f32 %v1780, %v1783
    %1787 = vrot.lane.b32.xlu0 %v1785, 64
    %v1788 = vpop.permute.xlu0 %1787
    %v1790 = vadd.f32 %v1784, %v1788
    %v1791 = vtanh.pop %v1790
    %v1792 = vmul.f32 %v1782, %v1791
    %1794 = vrot.lane.b32.xlu0 %v1792, 64
    %v1795 = vpop.permute.xlu0 %1794
    %1797 = vst.msk [vmem:[#allocation3 + $0x6] sm:$0x3] %vm1078, %v1795
    %1798 = vst.msk [vmem:[#allocation3 + $0x6] sm:$0xc] %vm1080, %v1792
    %v1799 = vld [vmem:[#allocation2 + $0x20] sm:$0x3]
    %v1800 = vld [vmem:[#allocation2 + $0x28] sm:$0x3]
    %v1801 = vld [vmem:[#allocation2 + $0x10] sm:$0xc0]
    %v1802 = vld [vmem:[#allocation2 + $0x18] sm:$0xc0]
    %v1803 = vld [vmem:[%s6] sm:$0xff]
    %v1804 = vld [vmem:[%s6 + $0x8] sm:$0xff]
    %v1805 = vld [vmem:[%s6 + $0x10] sm:$0xff]
    %v1806 = vld [vmem:[%s6 + $0x18] sm:$0xff]
    %v1807 = vld [vmem:[%s6 + $0x20] sm:$0xff]
    %v1808 = vld [vmem:[%s6 + $0x28] sm:$0xff]
    %v1809 = vld [vmem:[%s6 + $0x30] sm:$0xff]
    %v1810 = vld [vmem:[%s6 + $0x38] sm:$0xff]
    %v1811 = vld [vmem:[%s6 + $0x40] sm:$0xff]
    %v1812 = vld [vmem:[%s6 + $0x48] sm:$0xff]
    %v1813 = vld [vmem:[%s6 + $0x50] sm:$0xff]
    %v1814 = vld [vmem:[%s6 + $0x58] sm:$0xff]
    %v1815 = vld [vmem:[%s6 + $0x60] sm:$0xff]
    %v1816 = vld [vmem:[%s6 + $0x68] sm:$0xff]
    %v1817 = vld [vmem:[%s6 + $0x70] sm:$0xff]
    %v1818 = vld [vmem:[%s6 + $0x78] sm:$0xff]
    %v1819 = vsel %vm601, %v1795, 0
    %1821 = vmatprep.subr.mxu0 %v1804
    %1822 = vmatpush1.msra.mxu0 %v1803
    %1823 = vmatprep.subr.mxu0 %v1806
    %1824 = vmatpush1.msra.mxu0 %v1805
    %1825 = vmatprep.subr.mxu0 %v1808
    %1826 = vmatpush1.msra.mxu0 %v1807
    %1827 = vmatprep.subr.mxu0 %v1810
    %1828 = vmatpush1.msra.mxu0 %v1809
    %1829 = vmatprep.subr.mxu0 %v1812
    %1830 = vmatpush1.msra.mxu0 %v1811
    %1831 = vmatprep.subr.mxu0 %v1814
    %1832 = vmatpush1.msra.mxu0 %v1813
    %1833 = vmatprep.subr.mxu0 %v1816
    %1834 = vmatpush1.msra.mxu0 %v1815
    %1835 = vmatprep.subr.mxu0 %v1818
    %1836 = vmatpush1.msra.mxu0 %v1817
    %1837 = vmatprep.subr.mxu0 0.0
    %1838 = vmatpush1.msra.mxu0 0.0
    %1839 = vmatprep.subr.mxu0 0.0
    %1840 = vmatpush1.msra.mxu0 0.0
    %1841 = vmatprep.subr.mxu0 0.0
    %1842 = vmatpush1.msra.mxu0 0.0
    %1843 = vmatprep.subr.mxu0 0.0
    %1844 = vmatpush1.msra.mxu0 0.0
    %1845 = vmatprep.subr.mxu0 0.0
    %1846 = vmatpush1.msra.mxu0 0.0
    %1847 = vmatprep.subr.mxu0 0.0
    %1848 = vmatpush1.msra.mxu0 0.0
    %1849 = vmatprep.subr.mxu0 0.0
    %1850 = vmatpush1.msra.mxu0 0.0
    %1851 = vmatprep.subr.mxu0 0.0
    %1852 = vmatpush1.msra.mxu0 0.0
    %1853 = vmatprep.subr.mxu0 0.0
    %1854 = vmatpush1.msra.mxu0 0.0
    %1855 = vmatprep.subr.mxu0 0.0
    %1856 = vmatpush1.msra.mxu0 0.0
    %1857 = vmatprep.subr.mxu0 0.0
    %1858 = vmatpush1.msra.mxu0 0.0
    %1859 = vmatprep.subr.mxu0 0.0
    %1860 = vmatpush1.msra.mxu0 0.0
    %1861 = vmatprep.subr.mxu0 0.0
    %1862 = vmatpush1.msra.mxu0 0.0
    %1863 = vmatprep.subr.mxu0 0.0
    %1864 = vmatpush1.msra.mxu0 0.0
    %1865 = vmatprep.subr.mxu0 0.0
    %1866 = vmatpush1.msra.mxu0 0.0
    %1867 = vmatprep.subr.mxu0 0.0
    %1868 = vmatpush1.msra.mxu0 0.0
    %1869 = vmatprep.subr.mxu0 0.0
    %1870 = vmatpush1.msra.mxu0 0.0
    %1871 = vmatprep.subr.mxu0 0.0
    %1872 = vmatpush1.msra.mxu0 0.0
    %1873 = vmatprep.subr.mxu0 0.0
    %1874 = vmatpush1.msra.mxu0 0.0
    %1875 = vmatprep.subr.mxu0 0.0
    %1876 = vmatpush1.msra.mxu0 0.0
    %1877 = vmatprep.subr.mxu0 0.0
    %1878 = vmatpush1.msra.mxu0 0.0
    %1879 = vmatprep.subr.mxu0 0.0
    %1880 = vmatpush1.msra.mxu0 0.0
    %1881 = vmatprep.subr.mxu0 0.0
    %1882 = vmatpush1.msra.mxu0 0.0
    %1883 = vmatprep.subr.mxu0 0.0
    %1884 = vmatpush1.msra.mxu0 0.0
    %1885 = vmatprep.mubr.f32.mxu0 0.0
    %1886 = vmatmul.mubr.f32.gmra.mrb[0].mxu0 %v1819
    %v1887 = vpop.f32.mrb[0].mxu0
    %v1888 = vadd.f32 0.0, %v1887
    %v1889 = vpop.f32.mrb[0].mxu0
    %v1890 = vadd.f32 0.0, %v1889
    %1891 = vdwg.mxu0
    %v1892 = vld [vmem:[#allocation7] sm:$0xff]
    %v1893 = vld [vmem:[#allocation7 + $0x8] sm:$0xff]
    %v1894 = vld [vmem:[#allocation7 + $0x10] sm:$0xff]
    %v1895 = vld [vmem:[#allocation7 + $0x18] sm:$0xff]
    %v1896 = vld [vmem:[#allocation7 + $0x20] sm:$0xff]
    %v1897 = vld [vmem:[#allocation7 + $0x28] sm:$0xff]
    %v1898 = vld [vmem:[#allocation7 + $0x30] sm:$0xff]
    %v1899 = vld [vmem:[#allocation7 + $0x38] sm:$0xff]
    %v1900 = vld [vmem:[#allocation7 + $0x40] sm:$0xff]
    %v1901 = vld [vmem:[#allocation7 + $0x48] sm:$0xff]
    %v1902 = vld [vmem:[#allocation7 + $0x50] sm:$0xff]
    %v1903 = vld [vmem:[#allocation7 + $0x58] sm:$0xff]
    %v1904 = vld [vmem:[#allocation7 + $0x60] sm:$0xff]
    %v1905 = vld [vmem:[#allocation7 + $0x68] sm:$0xff]
    %v1906 = vld [vmem:[#allocation7 + $0x70] sm:$0xff]
    %v1907 = vld [vmem:[#allocation7 + $0x78] sm:$0xff]
    %v1908 = vrot.slane %v1792, 2
    %1909 = vrot.lane.b32.xlu0 %v1908, 64
    %v1910 = vpop.permute.xlu0 %1909
    %v1911 = vsel %vm601, %v1910, 0
    %1913 = vmatprep.subr.mxu0 %v1893
    %1914 = vmatpush1.msra.mxu0 %v1892
    %1915 = vmatprep.subr.mxu0 %v1895
    %1916 = vmatpush1.msra.mxu0 %v1894
    %1917 = vmatprep.subr.mxu0 %v1897
    %1918 = vmatpush1.msra.mxu0 %v1896
    %1919 = vmatprep.subr.mxu0 %v1899
    %1920 = vmatpush1.msra.mxu0 %v1898
    %1921 = vmatprep.subr.mxu0 %v1901
    %1922 = vmatpush1.msra.mxu0 %v1900
    %1923 = vmatprep.subr.mxu0 %v1903
    %1924 = vmatpush1.msra.mxu0 %v1902
    %1925 = vmatprep.subr.mxu0 %v1905
    %1926 = vmatpush1.msra.mxu0 %v1904
    %1927 = vmatprep.subr.mxu0 %v1907
    %1928 = vmatpush1.msra.mxu0 %v1906
    %1929 = vmatprep.subr.mxu0 0.0
    %1930 = vmatpush1.msra.mxu0 0.0
    %1931 = vmatprep.subr.mxu0 0.0
    %1932 = vmatpush1.msra.mxu0 0.0
    %1933 = vmatprep.subr.mxu0 0.0
    %1934 = vmatpush1.msra.mxu0 0.0
    %1935 = vmatprep.subr.mxu0 0.0
    %1936 = vmatpush1.msra.mxu0 0.0
    %1937 = vmatprep.subr.mxu0 0.0
    %1938 = vmatpush1.msra.mxu0 0.0
    %1939 = vmatprep.subr.mxu0 0.0
    %1940 = vmatpush1.msra.mxu0 0.0
    %1941 = vmatprep.subr.mxu0 0.0
    %1942 = vmatpush1.msra.mxu0 0.0
    %1943 = vmatprep.subr.mxu0 0.0
    %1944 = vmatpush1.msra.mxu0 0.0
    %1945 = vmatprep.subr.mxu0 0.0
    %1946 = vmatpush1.msra.mxu0 0.0
    %1947 = vmatprep.subr.mxu0 0.0
    %1948 = vmatpush1.msra.mxu0 0.0
    %1949 = vmatprep.subr.mxu0 0.0
    %1950 = vmatpush1.msra.mxu0 0.0
    %1951 = vmatprep.subr.mxu0 0.0
    %1952 = vmatpush1.msra.mxu0 0.0
    %1953 = vmatprep.subr.mxu0 0.0
    %1954 = vmatpush1.msra.mxu0 0.0
    %1955 = vmatprep.subr.mxu0 0.0
    %1956 = vmatpush1.msra.mxu0 0.0
    %1957 = vmatprep.subr.mxu0 0.0
    %1958 = vmatpush1.msra.mxu0 0.0
    %1959 = vmatprep.subr.mxu0 0.0
    %1960 = vmatpush1.msra.mxu0 0.0
    %1961 = vmatprep.subr.mxu0 0.0
    %1962 = vmatpush1.msra.mxu0 0.0
    %1963 = vmatprep.subr.mxu0 0.0
    %1964 = vmatpush1.msra.mxu0 0.0
    %1965 = vmatprep.subr.mxu0 0.0
    %1966 = vmatpush1.msra.mxu0 0.0
    %1967 = vmatprep.subr.mxu0 0.0
    %1968 = vmatpush1.msra.mxu0 0.0
    %1969 = vmatprep.subr.mxu0 0.0
    %1970 = vmatpush1.msra.mxu0 0.0
    %1971 = vmatprep.subr.mxu0 0.0
    %1972 = vmatpush1.msra.mxu0 0.0
    %1973 = vmatprep.subr.mxu0 0.0
    %1974 = vmatpush1.msra.mxu0 0.0
    %1975 = vmatprep.subr.mxu0 0.0
    %1976 = vmatpush1.msra.mxu0 0.0
    %1977 = vmatprep.mubr.f32.mxu0 0.0
    %1978 = vmatmul.mubr.f32.gmra.mrb[0].mxu0 %v1911
    %v1979 = vpop.f32.mrb[0].mxu0
    %v1980 = vadd.f32 0.0, %v1979
    %v1981 = vpop.f32.mrb[0].mxu0
    %v1982 = vadd.f32 0.0, %v1981
    %1983 = vdwg.mxu0
    %v1984 = vadd.f32 %v1799, %v1888
    %v1985 = vadd.f32 %v1800, %v1890
    %v1988 = vrot.slane %v1980, 2
    %v1989 = vrot.slane %v1982, 2
    %v1992 = vadd.f32 %v1801, %v1988
    %v1993 = vadd.f32 %v1802, %v1989
    %v1996 = vrot.slane %v1992, 4
    %v1997 = vrot.slane %v1993, 4
    %v2000 = vsel %vm1049, %v1984, %v1996
    %v2001 = vsel %vm1049, %v1985, %v1997
    %v2002 = vxor.u32 %v2000, 2147483648
    %v2003 = vxor.u32 %v2001, 2147483648
    %v2004 = vmul.f32 %v2002, 1.442695
    %v2005 = vpow.pop %v2004
    %v2006 = vmul.f32 %v2003, 1.442695
    %v2007 = vpow.pop %v2006
    %v2008 = vadd.f32 %v2005, 1.0
    %v2009 = vadd.f32 %v2007, 1.0
    %v2010 = vrcp.pop %v2008
    %v2011 = vmul.f32 1.0, %v2010
    %v2012 = vrcp.pop %v2009
    %v2013 = vmul.f32 1.0, %v2012
    %v2014 = vtanh.pop %v2001
    %v2015 = vmul.f32 %v2011, %v1790
    %v2016 = vmul.f32 %v2011, %v2014
    %2018 = vrot.lane.b32.xlu0 %v2016, 64
    %v2019 = vpop.permute.xlu0 %2018
    %v2021 = vadd.f32 %v2015, %v2019
    %v2022 = vtanh.pop %v2021
    %v2023 = vmul.f32 %v2013, %v2022
    %2025 = vrot.lane.b32.xlu0 %v2023, 64
    %v2026 = vpop.permute.xlu0 %2025
    %2028 = vst.msk [vmem:[#allocation3 + $0x8] sm:$0x3] %vm1078, %v2026
    %2029 = vst.msk [vmem:[#allocation3 + $0x4] sm:$0xc] %vm1080, %v2023
    %v2030 = vld [vmem:[#allocation2 + $0x20] sm:$0xc]
    %v2031 = vld [vmem:[#allocation2 + $0x28] sm:$0xc]
    %v2032 = vld [vmem:[#allocation2 + $0x10] sm:$0x30]
    %v2033 = vld [vmem:[#allocation2 + $0x18] sm:$0x30]
    %v2034 = vld [vmem:[%s6] sm:$0xff]
    %v2035 = vld [vmem:[%s6 + $0x8] sm:$0xff]
    %v2036 = vld [vmem:[%s6 + $0x10] sm:$0xff]
    %v2037 = vld [vmem:[%s6 + $0x18] sm:$0xff]
    %v2038 = vld [vmem:[%s6 + $0x20] sm:$0xff]
    %v2039 = vld [vmem:[%s6 + $0x28] sm:$0xff]
    %v2040 = vld [vmem:[%s6 + $0x30] sm:$0xff]
    %v2041 = vld [vmem:[%s6 + $0x38] sm:$0xff]
    %v2042 = vld [vmem:[%s6 + $0x40] sm:$0xff]
    %v2043 = vld [vmem:[%s6 + $0x48] sm:$0xff]
    %v2044 = vld [vmem:[%s6 + $0x50] sm:$0xff]
    %v2045 = vld [vmem:[%s6 + $0x58] sm:$0xff]
    %v2046 = vld [vmem:[%s6 + $0x60] sm:$0xff]
    %v2047 = vld [vmem:[%s6 + $0x68] sm:$0xff]
    %v2048 = vld [vmem:[%s6 + $0x70] sm:$0xff]
    %v2049 = vld [vmem:[%s6 + $0x78] sm:$0xff]
    %v2050 = vsel %vm601, %v2026, 0
    %2052 = vmatprep.subr.mxu0 %v2035
    %2053 = vmatpush1.msra.mxu0 %v2034
    %2054 = vmatprep.subr.mxu0 %v2037
    %2055 = vmatpush1.msra.mxu0 %v2036
    %2056 = vmatprep.subr.mxu0 %v2039
    %2057 = vmatpush1.msra.mxu0 %v2038
    %2058 = vmatprep.subr.mxu0 %v2041
    %2059 = vmatpush1.msra.mxu0 %v2040
    %2060 = vmatprep.subr.mxu0 %v2043
    %2061 = vmatpush1.msra.mxu0 %v2042
    %2062 = vmatprep.subr.mxu0 %v2045
    %2063 = vmatpush1.msra.mxu0 %v2044
    %2064 = vmatprep.subr.mxu0 %v2047
    %2065 = vmatpush1.msra.mxu0 %v2046
    %2066 = vmatprep.subr.mxu0 %v2049
    %2067 = vmatpush1.msra.mxu0 %v2048
    %2068 = vmatprep.subr.mxu0 0.0
    %2069 = vmatpush1.msra.mxu0 0.0
    %2070 = vmatprep.subr.mxu0 0.0
    %2071 = vmatpush1.msra.mxu0 0.0
    %2072 = vmatprep.subr.mxu0 0.0
    %2073 = vmatpush1.msra.mxu0 0.0
    %2074 = vmatprep.subr.mxu0 0.0
    %2075 = vmatpush1.msra.mxu0 0.0
    %2076 = vmatprep.subr.mxu0 0.0
    %2077 = vmatpush1.msra.mxu0 0.0
    %2078 = vmatprep.subr.mxu0 0.0
    %2079 = vmatpush1.msra.mxu0 0.0
    %2080 = vmatprep.subr.mxu0 0.0
    %2081 = vmatpush1.msra.mxu0 0.0
    %2082 = vmatprep.subr.mxu0 0.0
    %2083 = vmatpush1.msra.mxu0 0.0
    %2084 = vmatprep.subr.mxu0 0.0
    %2085 = vmatpush1.msra.mxu0 0.0
    %2086 = vmatprep.subr.mxu0 0.0
    %2087 = vmatpush1.msra.mxu0 0.0
    %2088 = vmatprep.subr.mxu0 0.0
    %2089 = vmatpush1.msra.mxu0 0.0
    %2090 = vmatprep.subr.mxu0 0.0
    %2091 = vmatpush1.msra.mxu0 0.0
    %2092 = vmatprep.subr.mxu0 0.0
    %2093 = vmatpush1.msra.mxu0 0.0
    %2094 = vmatprep.subr.mxu0 0.0
    %2095 = vmatpush1.msra.mxu0 0.0
    %2096 = vmatprep.subr.mxu0 0.0
    %2097 = vmatpush1.msra.mxu0 0.0
    %2098 = vmatprep.subr.mxu0 0.0
    %2099 = vmatpush1.msra.mxu0 0.0
    %2100 = vmatprep.subr.mxu0 0.0
    %2101 = vmatpush1.msra.mxu0 0.0
    %2102 = vmatprep.subr.mxu0 0.0
    %2103 = vmatpush1.msra.mxu0 0.0
    %2104 = vmatprep.subr.mxu0 0.0
    %2105 = vmatpush1.msra.mxu0 0.0
    %2106 = vmatprep.subr.mxu0 0.0
    %2107 = vmatpush1.msra.mxu0 0.0
    %2108 = vmatprep.subr.mxu0 0.0
    %2109 = vmatpush1.msra.mxu0 0.0
    %2110 = vmatprep.subr.mxu0 0.0
    %2111 = vmatpush1.msra.mxu0 0.0
    %2112 = vmatprep.subr.mxu0 0.0
    %2113 = vmatpush1.msra.mxu0 0.0
    %2114 = vmatprep.subr.mxu0 0.0
    %2115 = vmatpush1.msra.mxu0 0.0
    %2116 = vmatprep.mubr.f32.mxu0 0.0
    %2117 = vmatmul.mubr.f32.gmra.mrb[0].mxu0 %v2050
    %v2118 = vpop.f32.mrb[0].mxu0
    %v2119 = vadd.f32 0.0, %v2118
    %v2120 = vpop.f32.mrb[0].mxu0
    %v2121 = vadd.f32 0.0, %v2120
    %2122 = vdwg.mxu0
    %v2123 = vld [vmem:[#allocation7] sm:$0xff]
    %v2124 = vld [vmem:[#allocation7 + $0x8] sm:$0xff]
    %v2125 = vld [vmem:[#allocation7 + $0x10] sm:$0xff]
    %v2126 = vld [vmem:[#allocation7 + $0x18] sm:$0xff]
    %v2127 = vld [vmem:[#allocation7 + $0x20] sm:$0xff]
    %v2128 = vld [vmem:[#allocation7 + $0x28] sm:$0xff]
    %v2129 = vld [vmem:[#allocation7 + $0x30] sm:$0xff]
    %v2130 = vld [vmem:[#allocation7 + $0x38] sm:$0xff]
    %v2131 = vld [vmem:[#allocation7 + $0x40] sm:$0xff]
    %v2132 = vld [vmem:[#allocation7 + $0x48] sm:$0xff]
    %v2133 = vld [vmem:[#allocation7 + $0x50] sm:$0xff]
    %v2134 = vld [vmem:[#allocation7 + $0x58] sm:$0xff]
    %v2135 = vld [vmem:[#allocation7 + $0x60] sm:$0xff]
    %v2136 = vld [vmem:[#allocation7 + $0x68] sm:$0xff]
    %v2137 = vld [vmem:[#allocation7 + $0x70] sm:$0xff]
    %v2138 = vld [vmem:[#allocation7 + $0x78] sm:$0xff]
    %v2139 = vrot.slane %v2023, 2
    %2140 = vrot.lane.b32.xlu0 %v2139, 64
    %v2141 = vpop.permute.xlu0 %2140
    %v2142 = vsel %vm601, %v2141, 0
    %2144 = vmatprep.subr.mxu0 %v2124
    %2145 = vmatpush1.msra.mxu0 %v2123
    %2146 = vmatprep.subr.mxu0 %v2126
    %2147 = vmatpush1.msra.mxu0 %v2125
    %2148 = vmatprep.subr.mxu0 %v2128
    %2149 = vmatpush1.msra.mxu0 %v2127
    %2150 = vmatprep.subr.mxu0 %v2130
    %2151 = vmatpush1.msra.mxu0 %v2129
    %2152 = vmatprep.subr.mxu0 %v2132
    %2153 = vmatpush1.msra.mxu0 %v2131
    %2154 = vmatprep.subr.mxu0 %v2134
    %2155 = vmatpush1.msra.mxu0 %v2133
    %2156 = vmatprep.subr.mxu0 %v2136
    %2157 = vmatpush1.msra.mxu0 %v2135
    %2158 = vmatprep.subr.mxu0 %v2138
    %2159 = vmatpush1.msra.mxu0 %v2137
    %2160 = vmatprep.subr.mxu0 0.0
    %2161 = vmatpush1.msra.mxu0 0.0
    %2162 = vmatprep.subr.mxu0 0.0
    %2163 = vmatpush1.msra.mxu0 0.0
    %2164 = vmatprep.subr.mxu0 0.0
    %2165 = vmatpush1.msra.mxu0 0.0
    %2166 = vmatprep.subr.mxu0 0.0
    %2167 = vmatpush1.msra.mxu0 0.0
    %2168 = vmatprep.subr.mxu0 0.0
    %2169 = vmatpush1.msra.mxu0 0.0
    %2170 = vmatprep.subr.mxu0 0.0
    %2171 = vmatpush1.msra.mxu0 0.0
    %2172 = vmatprep.subr.mxu0 0.0
    %2173 = vmatpush1.msra.mxu0 0.0
    %2174 = vmatprep.subr.mxu0 0.0
    %2175 = vmatpush1.msra.mxu0 0.0
    %2176 = vmatprep.subr.mxu0 0.0
    %2177 = vmatpush1.msra.mxu0 0.0
    %2178 = vmatprep.subr.mxu0 0.0
    %2179 = vmatpush1.msra.mxu0 0.0
    %2180 = vmatprep.subr.mxu0 0.0
    %2181 = vmatpush1.msra.mxu0 0.0
    %2182 = vmatprep.subr.mxu0 0.0
    %2183 = vmatpush1.msra.mxu0 0.0
    %2184 = vmatprep.subr.mxu0 0.0
    %2185 = vmatpush1.msra.mxu0 0.0
    %2186 = vmatprep.subr.mxu0 0.0
    %2187 = vmatpush1.msra.mxu0 0.0
    %2188 = vmatprep.subr.mxu0 0.0
    %2189 = vmatpush1.msra.mxu0 0.0
    %2190 = vmatprep.subr.mxu0 0.0
    %2191 = vmatpush1.msra.mxu0 0.0
    %2192 = vmatprep.subr.mxu0 0.0
    %2193 = vmatpush1.msra.mxu0 0.0
    %2194 = vmatprep.subr.mxu0 0.0
    %2195 = vmatpush1.msra.mxu0 0.0
    %2196 = vmatprep.subr.mxu0 0.0
    %2197 = vmatpush1.msra.mxu0 0.0
    %2198 = vmatprep.subr.mxu0 0.0
    %2199 = vmatpush1.msra.mxu0 0.0
    %2200 = vmatprep.subr.mxu0 0.0
    %2201 = vmatpush1.msra.mxu0 0.0
    %2202 = vmatprep.subr.mxu0 0.0
    %2203 = vmatpush1.msra.mxu0 0.0
    %2204 = vmatprep.subr.mxu0 0.0
    %2205 = vmatpush1.msra.mxu0 0.0
    %2206 = vmatprep.subr.mxu0 0.0
    %2207 = vmatpush1.msra.mxu0 0.0
    %2208 = vmatprep.mubr.f32.mxu0 0.0
    %2209 = vmatmul.mubr.f32.gmra.mrb[0].mxu0 %v2142
    %v2210 = vpop.f32.mrb[0].mxu0
    %v2211 = vadd.f32 0.0, %v2210
    %v2212 = vpop.f32.mrb[0].mxu0
    %v2213 = vadd.f32 0.0, %v2212
    %2214 = vdwg.mxu0
    %v2217 = vrot.slane %v2119, 6
    %v2218 = vrot.slane %v2121, 6
    %v2221 = vadd.f32 %v2030, %v2217
    %v2222 = vadd.f32 %v2031, %v2218
    %v2225 = vrot.slane %v2211, 4
    %v2226 = vrot.slane %v2213, 4
    %v2229 = vadd.f32 %v2032, %v2225
    %v2230 = vadd.f32 %v2033, %v2226
    %v2233 = vrot.slane %v2221, 2
    %v2234 = vrot.slane %v2222, 2
    %v2239 = vrot.slane %v2229, 2
    %v2240 = vrot.slane %v2230, 2
    %v2243 = vsel %vm1049, %v2233, %v2239
    %v2244 = vsel %vm1049, %v2234, %v2240
    %v2245 = vxor.u32 %v2243, 2147483648
    %v2246 = vxor.u32 %v2244, 2147483648
    %v2247 = vmul.f32 %v2245, 1.442695
    %v2248 = vpow.pop %v2247
    %v2249 = vmul.f32 %v2246, 1.442695
    %v2250 = vpow.pop %v2249
    %v2251 = vadd.f32 %v2248, 1.0
    %v2252 = vadd.f32 %v2250, 1.0
    %v2253 = vrcp.pop %v2251
    %v2254 = vmul.f32 1.0, %v2253
    %v2255 = vrcp.pop %v2252
    %v2256 = vmul.f32 1.0, %v2255
    %v2257 = vtanh.pop %v2244
    %v2258 = vmul.f32 %v2254, %v2021
    %v2259 = vmul.f32 %v2254, %v2257
    %2261 = vrot.lane.b32.xlu0 %v2259, 64
    %v2262 = vpop.permute.xlu0 %2261
    %v2264 = vadd.f32 %v2258, %v2262
    %v2265 = vtanh.pop %v2264
    %v2266 = vmul.f32 %v2256, %v2265
    %2268 = vrot.lane.b32.xlu0 %v2266, 64
    %v2269 = vpop.permute.xlu0 %2268
    %2271 = vst.msk [vmem:[#allocation3 + $0xa] sm:$0x3] %vm1078, %v2269
    %2272 = vst.msk [vmem:[#allocation3 + $0x2] sm:$0xc] %vm1080, %v2266
    %v2273 = vld [vmem:[#allocation2 + $0x20] sm:$0x30]
    %v2274 = vld [vmem:[#allocation2 + $0x28] sm:$0x30]
    %v2275 = vld [vmem:[#allocation2 + $0x10] sm:$0xc]
    %v2276 = vld [vmem:[#allocation2 + $0x18] sm:$0xc]
    %v2277 = vld [vmem:[%s6] sm:$0xff]
    %v2278 = vld [vmem:[%s6 + $0x8] sm:$0xff]
    %v2279 = vld [vmem:[%s6 + $0x10] sm:$0xff]
    %v2280 = vld [vmem:[%s6 + $0x18] sm:$0xff]
    %v2281 = vld [vmem:[%s6 + $0x20] sm:$0xff]
    %v2282 = vld [vmem:[%s6 + $0x28] sm:$0xff]
    %v2283 = vld [vmem:[%s6 + $0x30] sm:$0xff]
    %v2284 = vld [vmem:[%s6 + $0x38] sm:$0xff]
    %v2285 = vld [vmem:[%s6 + $0x40] sm:$0xff]
    %v2286 = vld [vmem:[%s6 + $0x48] sm:$0xff]
    %v2287 = vld [vmem:[%s6 + $0x50] sm:$0xff]
    %v2288 = vld [vmem:[%s6 + $0x58] sm:$0xff]
    %v2289 = vld [vmem:[%s6 + $0x60] sm:$0xff]
    %v2290 = vld [vmem:[%s6 + $0x68] sm:$0xff]
    %v2291 = vld [vmem:[%s6 + $0x70] sm:$0xff]
    %v2292 = vld [vmem:[%s6 + $0x78] sm:$0xff]
    %v2293 = vsel %vm601, %v2269, 0
    %2295 = vmatprep.subr.mxu0 %v2278
    %2296 = vmatpush1.msra.mxu0 %v2277
    %2297 = vmatprep.subr.mxu0 %v2280
    %2298 = vmatpush1.msra.mxu0 %v2279
    %2299 = vmatprep.subr.mxu0 %v2282
    %2300 = vmatpush1.msra.mxu0 %v2281
    %2301 = vmatprep.subr.mxu0 %v2284
    %2302 = vmatpush1.msra.mxu0 %v2283
    %2303 = vmatprep.subr.mxu0 %v2286
    %2304 = vmatpush1.msra.mxu0 %v2285
    %2305 = vmatprep.subr.mxu0 %v2288
    %2306 = vmatpush1.msra.mxu0 %v2287
    %2307 = vmatprep.subr.mxu0 %v2290
    %2308 = vmatpush1.msra.mxu0 %v2289
    %2309 = vmatprep.subr.mxu0 %v2292
    %2310 = vmatpush1.msra.mxu0 %v2291
    %2311 = vmatprep.subr.mxu0 0.0
    %2312 = vmatpush1.msra.mxu0 0.0
    %2313 = vmatprep.subr.mxu0 0.0
    %2314 = vmatpush1.msra.mxu0 0.0
    %2315 = vmatprep.subr.mxu0 0.0
    %2316 = vmatpush1.msra.mxu0 0.0
    %2317 = vmatprep.subr.mxu0 0.0
    %2318 = vmatpush1.msra.mxu0 0.0
    %2319 = vmatprep.subr.mxu0 0.0
    %2320 = vmatpush1.msra.mxu0 0.0
    %2321 = vmatprep.subr.mxu0 0.0
    %2322 = vmatpush1.msra.mxu0 0.0
    %2323 = vmatprep.subr.mxu0 0.0
    %2324 = vmatpush1.msra.mxu0 0.0
    %2325 = vmatprep.subr.mxu0 0.0
    %2326 = vmatpush1.msra.mxu0 0.0
    %2327 = vmatprep.subr.mxu0 0.0
    %2328 = vmatpush1.msra.mxu0 0.0
    %2329 = vmatprep.subr.mxu0 0.0
    %2330 = vmatpush1.msra.mxu0 0.0
    %2331 = vmatprep.subr.mxu0 0.0
    %2332 = vmatpush1.msra.mxu0 0.0
    %2333 = vmatprep.subr.mxu0 0.0
    %2334 = vmatpush1.msra.mxu0 0.0
    %2335 = vmatprep.subr.mxu0 0.0
    %2336 = vmatpush1.msra.mxu0 0.0
    %2337 = vmatprep.subr.mxu0 0.0
    %2338 = vmatpush1.msra.mxu0 0.0
    %2339 = vmatprep.subr.mxu0 0.0
    %2340 = vmatpush1.msra.mxu0 0.0
    %2341 = vmatprep.subr.mxu0 0.0
    %2342 = vmatpush1.msra.mxu0 0.0
    %2343 = vmatprep.subr.mxu0 0.0
    %2344 = vmatpush1.msra.mxu0 0.0
    %2345 = vmatprep.subr.mxu0 0.0
    %2346 = vmatpush1.msra.mxu0 0.0
    %2347 = vmatprep.subr.mxu0 0.0
    %2348 = vmatpush1.msra.mxu0 0.0
    %2349 = vmatprep.subr.mxu0 0.0
    %2350 = vmatpush1.msra.mxu0 0.0
    %2351 = vmatprep.subr.mxu0 0.0
    %2352 = vmatpush1.msra.mxu0 0.0
    %2353 = vmatprep.subr.mxu0 0.0
    %2354 = vmatpush1.msra.mxu0 0.0
    %2355 = vmatprep.subr.mxu0 0.0
    %2356 = vmatpush1.msra.mxu0 0.0
    %2357 = vmatprep.subr.mxu0 0.0
    %2358 = vmatpush1.msra.mxu0 0.0
    %2359 = vmatprep.mubr.f32.mxu0 0.0
    %2360 = vmatmul.mubr.f32.gmra.mrb[0].mxu0 %v2293
    %v2361 = vpop.f32.mrb[0].mxu0
    %v2362 = vadd.f32 0.0, %v2361
    %v2363 = vpop.f32.mrb[0].mxu0
    %v2364 = vadd.f32 0.0, %v2363
    %2365 = vdwg.mxu0
    %v2366 = vld [vmem:[#allocation7] sm:$0xff]
    %v2367 = vld [vmem:[#allocation7 + $0x8] sm:$0xff]
    %v2368 = vld [vmem:[#allocation7 + $0x10] sm:$0xff]
    %v2369 = vld [vmem:[#allocation7 + $0x18] sm:$0xff]
    %v2370 = vld [vmem:[#allocation7 + $0x20] sm:$0xff]
    %v2371 = vld [vmem:[#allocation7 + $0x28] sm:$0xff]
    %v2372 = vld [vmem:[#allocation7 + $0x30] sm:$0xff]
    %v2373 = vld [vmem:[#allocation7 + $0x38] sm:$0xff]
    %v2374 = vld [vmem:[#allocation7 + $0x40] sm:$0xff]
    %v2375 = vld [vmem:[#allocation7 + $0x48] sm:$0xff]
    %v2376 = vld [vmem:[#allocation7 + $0x50] sm:$0xff]
    %v2377 = vld [vmem:[#allocation7 + $0x58] sm:$0xff]
    %v2378 = vld [vmem:[#allocation7 + $0x60] sm:$0xff]
    %v2379 = vld [vmem:[#allocation7 + $0x68] sm:$0xff]
    %v2380 = vld [vmem:[#allocation7 + $0x70] sm:$0xff]
    %v2381 = vld [vmem:[#allocation7 + $0x78] sm:$0xff]
    %v2382 = vrot.slane %v2266, 2
    %2383 = vrot.lane.b32.xlu0 %v2382, 64
    %v2384 = vpop.permute.xlu0 %2383
    %v2385 = vsel %vm601, %v2384, 0
    %2387 = vmatprep.subr.mxu0 %v2367
    %2388 = vmatpush1.msra.mxu0 %v2366
    %2389 = vmatprep.subr.mxu0 %v2369
    %2390 = vmatpush1.msra.mxu0 %v2368
    %2391 = vmatprep.subr.mxu0 %v2371
    %2392 = vmatpush1.msra.mxu0 %v2370
    %2393 = vmatprep.subr.mxu0 %v2373
    %2394 = vmatpush1.msra.mxu0 %v2372
    %2395 = vmatprep.subr.mxu0 %v2375
    %2396 = vmatpush1.msra.mxu0 %v2374
    %2397 = vmatprep.subr.mxu0 %v2377
    %2398 = vmatpush1.msra.mxu0 %v2376
    %2399 = vmatprep.subr.mxu0 %v2379
    %2400 = vmatpush1.msra.mxu0 %v2378
    %2401 = vmatprep.subr.mxu0 %v2381
    %2402 = vmatpush1.msra.mxu0 %v2380
    %2403 = vmatprep.subr.mxu0 0.0
    %2404 = vmatpush1.msra.mxu0 0.0
    %2405 = vmatprep.subr.mxu0 0.0
    %2406 = vmatpush1.msra.mxu0 0.0
    %2407 = vmatprep.subr.mxu0 0.0
    %2408 = vmatpush1.msra.mxu0 0.0
    %2409 = vmatprep.subr.mxu0 0.0
    %2410 = vmatpush1.msra.mxu0 0.0
    %2411 = vmatprep.subr.mxu0 0.0
    %2412 = vmatpush1.msra.mxu0 0.0
    %2413 = vmatprep.subr.mxu0 0.0
    %2414 = vmatpush1.msra.mxu0 0.0
    %2415 = vmatprep.subr.mxu0 0.0
    %2416 = vmatpush1.msra.mxu0 0.0
    %2417 = vmatprep.subr.mxu0 0.0
    %2418 = vmatpush1.msra.mxu0 0.0
    %2419 = vmatprep.subr.mxu0 0.0
    %2420 = vmatpush1.msra.mxu0 0.0
    %2421 = vmatprep.subr.mxu0 0.0
    %2422 = vmatpush1.msra.mxu0 0.0
    %2423 = vmatprep.subr.mxu0 0.0
    %2424 = vmatpush1.msra.mxu0 0.0
    %2425 = vmatprep.subr.mxu0 0.0
    %2426 = vmatpush1.msra.mxu0 0.0
    %2427 = vmatprep.subr.mxu0 0.0
    %2428 = vmatpush1.msra.mxu0 0.0
    %2429 = vmatprep.subr.mxu0 0.0
    %2430 = vmatpush1.msra.mxu0 0.0
    %2431 = vmatprep.subr.mxu0 0.0
    %2432 = vmatpush1.msra.mxu0 0.0
    %2433 = vmatprep.subr.mxu0 0.0
    %2434 = vmatpush1.msra.mxu0 0.0
    %2435 = vmatprep.subr.mxu0 0.0
    %2436 = vmatpush1.msra.mxu0 0.0
    %2437 = vmatprep.subr.mxu0 0.0
    %2438 = vmatpush1.msra.mxu0 0.0
    %2439 = vmatprep.subr.mxu0 0.0
    %2440 = vmatpush1.msra.mxu0 0.0
    %2441 = vmatprep.subr.mxu0 0.0
    %2442 = vmatpush1.msra.mxu0 0.0
    %2443 = vmatprep.subr.mxu0 0.0
    %2444 = vmatpush1.msra.mxu0 0.0
    %2445 = vmatprep.subr.mxu0 0.0
    %2446 = vmatpush1.msra.mxu0 0.0
    %2447 = vmatprep.subr.mxu0 0.0
    %2448 = vmatpush1.msra.mxu0 0.0
    %2449 = vmatprep.subr.mxu0 0.0
    %2450 = vmatpush1.msra.mxu0 0.0
    %2451 = vmatprep.mubr.f32.mxu0 0.0
    %2452 = vmatmul.mubr.f32.gmra.mrb[0].mxu0 %v2385
    %v2453 = vpop.f32.mrb[0].mxu0
    %v2454 = vadd.f32 0.0, %v2453
    %v2455 = vpop.f32.mrb[0].mxu0
    %v2456 = vadd.f32 0.0, %v2455
    %2457 = vdwg.mxu0
    %v2460 = vrot.slane %v2362, 4
    %v2461 = vrot.slane %v2364, 4
    %v2464 = vadd.f32 %v2273, %v2460
    %v2465 = vadd.f32 %v2274, %v2461
    %v2468 = vrot.slane %v2454, 6
    %v2469 = vrot.slane %v2456, 6
    %v2472 = vadd.f32 %v2275, %v2468
    %v2473 = vadd.f32 %v2276, %v2469
    %v2476 = vrot.slane %v2464, 4
    %v2477 = vrot.slane %v2465, 4
    %v2480 = vsel %vm1049, %v2476, %v2472
    %v2481 = vsel %vm1049, %v2477, %v2473
    %v2482 = vxor.u32 %v2480, 2147483648
    %v2483 = vxor.u32 %v2481, 2147483648
    %v2484 = vmul.f32 %v2482, 1.442695
    %v2485 = vpow.pop %v2484
    %v2486 = vmul.f32 %v2483, 1.442695
    %v2487 = vpow.pop %v2486
    %v2488 = vadd.f32 %v2485, 1.0
    %v2489 = vadd.f32 %v2487, 1.0
    %v2490 = vrcp.pop %v2488
    %v2491 = vmul.f32 1.0, %v2490
    %v2492 = vrcp.pop %v2489
    %v2493 = vmul.f32 1.0, %v2492
    %v2494 = vtanh.pop %v2481
    %v2495 = vmul.f32 %v2491, %v2264
    %v2496 = vmul.f32 %v2491, %v2494
    %2498 = vrot.lane.b32.xlu0 %v2496, 64
    %v2499 = vpop.permute.xlu0 %2498
    %v2501 = vadd.f32 %v2495, %v2499
    %v2502 = vtanh.pop %v2501
    %v2503 = vmul.f32 %v2493, %v2502
    %2505 = vrot.lane.b32.xlu0 %v2503, 64
    %v2506 = vpop.permute.xlu0 %2505
    %2508 = vst.msk [vmem:[#allocation3 + $0xc] sm:$0x3] %vm1078, %v2506
    %2509 = vst.msk [vmem:[#allocation3] sm:$0xc] %vm1080, %v2503
    %v2510 = vld [vmem:[#allocation2 + $0x20] sm:$0xc0]
    %v2511 = vld [vmem:[#allocation2 + $0x28] sm:$0xc0]
    %v2512 = vld [vmem:[#allocation2 + $0x10] sm:$0x3]
    %v2513 = vld [vmem:[#allocation2 + $0x18] sm:$0x3]
    %v2514 = vld [vmem:[%s6] sm:$0xff]
    %v2515 = vld [vmem:[%s6 + $0x8] sm:$0xff]
    %v2516 = vld [vmem:[%s6 + $0x10] sm:$0xff]
    %v2517 = vld [vmem:[%s6 + $0x18] sm:$0xff]
    %v2518 = vld [vmem:[%s6 + $0x20] sm:$0xff]
    %v2519 = vld [vmem:[%s6 + $0x28] sm:$0xff]
    %v2520 = vld [vmem:[%s6 + $0x30] sm:$0xff]
    %v2521 = vld [vmem:[%s6 + $0x38] sm:$0xff]
    %v2522 = vld [vmem:[%s6 + $0x40] sm:$0xff]
    %v2523 = vld [vmem:[%s6 + $0x48] sm:$0xff]
    %v2524 = vld [vmem:[%s6 + $0x50] sm:$0xff]
    %v2525 = vld [vmem:[%s6 + $0x58] sm:$0xff]
    %v2526 = vld [vmem:[%s6 + $0x60] sm:$0xff]
    %v2527 = vld [vmem:[%s6 + $0x68] sm:$0xff]
    %v2528 = vld [vmem:[%s6 + $0x70] sm:$0xff]
    %v2529 = vld [vmem:[%s6 + $0x78] sm:$0xff]
    %v2530 = vsel %vm601, %v2506, 0
    %2532 = vmatprep.subr.mxu0 %v2515
    %2533 = vmatpush1.msra.mxu0 %v2514
    %2534 = vmatprep.subr.mxu0 %v2517
    %2535 = vmatpush1.msra.mxu0 %v2516
    %2536 = vmatprep.subr.mxu0 %v2519
    %2537 = vmatpush1.msra.mxu0 %v2518
    %2538 = vmatprep.subr.mxu0 %v2521
    %2539 = vmatpush1.msra.mxu0 %v2520
    %2540 = vmatprep.subr.mxu0 %v2523
    %2541 = vmatpush1.msra.mxu0 %v2522
    %2542 = vmatprep.subr.mxu0 %v2525
    %2543 = vmatpush1.msra.mxu0 %v2524
    %2544 = vmatprep.subr.mxu0 %v2527
    %2545 = vmatpush1.msra.mxu0 %v2526
    %2546 = vmatprep.subr.mxu0 %v2529
    %2547 = vmatpush1.msra.mxu0 %v2528
    %2548 = vmatprep.subr.mxu0 0.0
    %2549 = vmatpush1.msra.mxu0 0.0
    %2550 = vmatprep.subr.mxu0 0.0
    %2551 = vmatpush1.msra.mxu0 0.0
    %2552 = vmatprep.subr.mxu0 0.0
    %2553 = vmatpush1.msra.mxu0 0.0
    %2554 = vmatprep.subr.mxu0 0.0
    %2555 = vmatpush1.msra.mxu0 0.0
    %2556 = vmatprep.subr.mxu0 0.0
    %2557 = vmatpush1.msra.mxu0 0.0
    %2558 = vmatprep.subr.mxu0 0.0
    %2559 = vmatpush1.msra.mxu0 0.0
    %2560 = vmatprep.subr.mxu0 0.0
    %2561 = vmatpush1.msra.mxu0 0.0
    %2562 = vmatprep.subr.mxu0 0.0
    %2563 = vmatpush1.msra.mxu0 0.0
    %2564 = vmatprep.subr.mxu0 0.0
    %2565 = vmatpush1.msra.mxu0 0.0
    %2566 = vmatprep.subr.mxu0 0.0
    %2567 = vmatpush1.msra.mxu0 0.0
    %2568 = vmatprep.subr.mxu0 0.0
    %2569 = vmatpush1.msra.mxu0 0.0
    %2570 = vmatprep.subr.mxu0 0.0
    %2571 = vmatpush1.msra.mxu0 0.0
    %2572 = vmatprep.subr.mxu0 0.0
    %2573 = vmatpush1.msra.mxu0 0.0
    %2574 = vmatprep.subr.mxu0 0.0
    %2575 = vmatpush1.msra.mxu0 0.0
    %2576 = vmatprep.subr.mxu0 0.0
    %2577 = vmatpush1.msra.mxu0 0.0
    %2578 = vmatprep.subr.mxu0 0.0
    %2579 = vmatpush1.msra.mxu0 0.0
    %2580 = vmatprep.subr.mxu0 0.0
    %2581 = vmatpush1.msra.mxu0 0.0
    %2582 = vmatprep.subr.mxu0 0.0
    %2583 = vmatpush1.msra.mxu0 0.0
    %2584 = vmatprep.subr.mxu0 0.0
    %2585 = vmatpush1.msra.mxu0 0.0
    %2586 = vmatprep.subr.mxu0 0.0
    %2587 = vmatpush1.msra.mxu0 0.0
    %2588 = vmatprep.subr.mxu0 0.0
    %2589 = vmatpush1.msra.mxu0 0.0
    %2590 = vmatprep.subr.mxu0 0.0
    %2591 = vmatpush1.msra.mxu0 0.0
    %2592 = vmatprep.subr.mxu0 0.0
    %2593 = vmatpush1.msra.mxu0 0.0
    %2594 = vmatprep.subr.mxu0 0.0
    %2595 = vmatpush1.msra.mxu0 0.0
    %2596 = vmatprep.mubr.f32.mxu0 0.0
    %2597 = vmatmul.mubr.f32.gmra.mrb[0].mxu0 %v2530
    %v2598 = vpop.f32.mrb[0].mxu0
    %v2599 = vadd.f32 0.0, %v2598
    %v2600 = vpop.f32.mrb[0].mxu0
    %v2601 = vadd.f32 0.0, %v2600
    %2602 = vdwg.mxu0
    %v2603 = vld [vmem:[#allocation7] sm:$0xff]
    %v2604 = vld [vmem:[#allocation7 + $0x8] sm:$0xff]
    %v2605 = vld [vmem:[#allocation7 + $0x10] sm:$0xff]
    %v2606 = vld [vmem:[#allocation7 + $0x18] sm:$0xff]
    %v2607 = vld [vmem:[#allocation7 + $0x20] sm:$0xff]
    %v2608 = vld [vmem:[#allocation7 + $0x28] sm:$0xff]
    %v2609 = vld [vmem:[#allocation7 + $0x30] sm:$0xff]
    %v2610 = vld [vmem:[#allocation7 + $0x38] sm:$0xff]
    %v2611 = vld [vmem:[#allocation7 + $0x40] sm:$0xff]
    %v2612 = vld [vmem:[#allocation7 + $0x48] sm:$0xff]
    %v2613 = vld [vmem:[#allocation7 + $0x50] sm:$0xff]
    %v2614 = vld [vmem:[#allocation7 + $0x58] sm:$0xff]
    %v2615 = vld [vmem:[#allocation7 + $0x60] sm:$0xff]
    %v2616 = vld [vmem:[#allocation7 + $0x68] sm:$0xff]
    %v2617 = vld [vmem:[#allocation7 + $0x70] sm:$0xff]
    %v2618 = vld [vmem:[#allocation7 + $0x78] sm:$0xff]
    %v2619 = vrot.slane %v2503, 2
    %2620 = vrot.lane.b32.xlu0 %v2619, 64
    %v2621 = vpop.permute.xlu0 %2620
    %v2622 = vsel %vm601, %v2621, 0
    %2624 = vmatprep.subr.mxu0 %v2604
    %2625 = vmatpush1.msra.mxu0 %v2603
    %2626 = vmatprep.subr.mxu0 %v2606
    %2627 = vmatpush1.msra.mxu0 %v2605
    %2628 = vmatprep.subr.mxu0 %v2608
    %2629 = vmatpush1.msra.mxu0 %v2607
    %2630 = vmatprep.subr.mxu0 %v2610
    %2631 = vmatpush1.msra.mxu0 %v2609
    %2632 = vmatprep.subr.mxu0 %v2612
    %2633 = vmatpush1.msra.mxu0 %v2611
    %2634 = vmatprep.subr.mxu0 %v2614
    %2635 = vmatpush1.msra.mxu0 %v2613
    %2636 = vmatprep.subr.mxu0 %v2616
    %2637 = vmatpush1.msra.mxu0 %v2615
    %2638 = vmatprep.subr.mxu0 %v2618
    %2639 = vmatpush1.msra.mxu0 %v2617
    %2640 = vmatprep.subr.mxu0 0.0
    %2641 = vmatpush1.msra.mxu0 0.0
    %2642 = vmatprep.subr.mxu0 0.0
    %2643 = vmatpush1.msra.mxu0 0.0
    %2644 = vmatprep.subr.mxu0 0.0
    %2645 = vmatpush1.msra.mxu0 0.0
    %2646 = vmatprep.subr.mxu0 0.0
    %2647 = vmatpush1.msra.mxu0 0.0
    %2648 = vmatprep.subr.mxu0 0.0
    %2649 = vmatpush1.msra.mxu0 0.0
    %2650 = vmatprep.subr.mxu0 0.0
    %2651 = vmatpush1.msra.mxu0 0.0
    %2652 = vmatprep.subr.mxu0 0.0
    %2653 = vmatpush1.msra.mxu0 0.0
    %2654 = vmatprep.subr.mxu0 0.0
    %2655 = vmatpush1.msra.mxu0 0.0
    %2656 = vmatprep.subr.mxu0 0.0
    %2657 = vmatpush1.msra.mxu0 0.0
    %2658 = vmatprep.subr.mxu0 0.0
    %2659 = vmatpush1.msra.mxu0 0.0
    %2660 = vmatprep.subr.mxu0 0.0
    %2661 = vmatpush1.msra.mxu0 0.0
    %2662 = vmatprep.subr.mxu0 0.0
    %2663 = vmatpush1.msra.mxu0 0.0
    %2664 = vmatprep.subr.mxu0 0.0
    %2665 = vmatpush1.msra.mxu0 0.0
    %2666 = vmatprep.subr.mxu0 0.0
    %2667 = vmatpush1.msra.mxu0 0.0
    %2668 = vmatprep.subr.mxu0 0.0
    %2669 = vmatpush1.msra.mxu0 0.0
    %2670 = vmatprep.subr.mxu0 0.0
    %2671 = vmatpush1.msra.mxu0 0.0
    %2672 = vmatprep.subr.mxu0 0.0
    %2673 = vmatpush1.msra.mxu0 0.0
    %2674 = vmatprep.subr.mxu0 0.0
    %2675 = vmatpush1.msra.mxu0 0.0
    %2676 = vmatprep.subr.mxu0 0.0
    %2677 = vmatpush1.msra.mxu0 0.0
    %2678 = vmatprep.subr.mxu0 0.0
    %2679 = vmatpush1.msra.mxu0 0.0
    %2680 = vmatprep.subr.mxu0 0.0
    %2681 = vmatpush1.msra.mxu0 0.0
    %2682 = vmatprep.subr.mxu0 0.0
    %2683 = vmatpush1.msra.mxu0 0.0
    %2684 = vmatprep.subr.mxu0 0.0
    %2685 = vmatpush1.msra.mxu0 0.0
    %2686 = vmatprep.subr.mxu0 0.0
    %2687 = vmatpush1.msra.mxu0 0.0
    %2688 = vmatprep.mubr.f32.mxu0 0.0
    %2689 = vmatmul.mubr.f32.gmra.mrb[0].mxu0 %v2622
    %v2690 = vpop.f32.mrb[0].mxu0
    %v2691 = vadd.f32 0.0, %v2690
    %v2692 = vpop.f32.mrb[0].mxu0
    %v2693 = vadd.f32 0.0, %v2692
    %2694 = vdwg.mxu0
    %v2697 = vrot.slane %v2599, 2
    %v2698 = vrot.slane %v2601, 2
    %v2701 = vadd.f32 %v2510, %v2697
    %v2702 = vadd.f32 %v2511, %v2698
    %v2703 = vadd.f32 %v2512, %v2691
    %v2704 = vadd.f32 %v2513, %v2693
    %v2707 = vrot.slane %v2701, 6
    %v2708 = vrot.slane %v2702, 6
    %v2713 = vrot.slane %v2703, 6
    %v2714 = vrot.slane %v2704, 6
    %v2717 = vsel %vm1049, %v2707, %v2713
    %v2718 = vsel %vm1049, %v2708, %v2714
    %v2719 = vxor.u32 %v2717, 2147483648
    %v2720 = vxor.u32 %v2718, 2147483648
    %v2721 = vmul.f32 %v2719, 1.442695
    %v2722 = vpow.pop %v2721
    %v2723 = vmul.f32 %v2720, 1.442695
    %v2724 = vpow.pop %v2723
    %v2725 = vadd.f32 %v2722, 1.0
    %v2726 = vadd.f32 %v2724, 1.0
    %v2727 = vrcp.pop %v2725
    %v2728 = vmul.f32 1.0, %v2727
    %v2729 = vrcp.pop %v2726
    %v2730 = vmul.f32 1.0, %v2729
    %v2731 = vtanh.pop %v2718
    %v2732 = vmul.f32 %v2728, %v2501
    %v2733 = vmul.f32 %v2728, %v2731
    %2735 = vrot.lane.b32.xlu0 %v2733, 64
    %v2736 = vpop.permute.xlu0 %2735
    %v2738 = vadd.f32 %v2732, %v2736
    %v2739 = vtanh.pop %v2738
    %v2740 = vmul.f32 %v2730, %v2739
    %2742 = vrot.lane.b32.xlu0 %v2740, 64
    %v2743 = vpop.permute.xlu0 %2742
    %2745 = vst.msk [vmem:[#allocation3 + $0xe] sm:$0x3] %vm1078, %v2743
    %2746 = vst.msk [vmem:[#allocation3 - $0x2] sm:$0xc] %vm1080, %v2740
    %v2747 = vld [vmem:[#allocation3] sm:$0xff]
    %v2748 = vld [vmem:[#allocation3 + $0x8] sm:$0xff]
    %v2749 = vld [vmem:[#allocation9] sm:$0xff]
    %v2750 = vld [vmem:[#allocation9 + $0x8] sm:$0xff]
    %v2751 = vld [vmem:[#allocation9 + $0x10] sm:$0xff]
    %v2752 = vld [vmem:[#allocation9 + $0x18] sm:$0xff]
    %v2753 = vld [vmem:[#allocation9 + $0x20] sm:$0xff]
    %v2754 = vld [vmem:[#allocation9 + $0x28] sm:$0xff]
    %v2755 = vld [vmem:[#allocation9 + $0x30] sm:$0xff]
    %v2756 = vld [vmem:[#allocation9 + $0x38] sm:$0xff]
    %v2757 = vld [vmem:[#allocation9 + $0x40] sm:$0xff]
    %v2758 = vld [vmem:[#allocation9 + $0x48] sm:$0xff]
    %v2759 = vld [vmem:[#allocation9 + $0x50] sm:$0xff]
    %v2760 = vld [vmem:[#allocation9 + $0x58] sm:$0xff]
    %v2761 = vld [vmem:[#allocation9 + $0x60] sm:$0xff]
    %v2762 = vld [vmem:[#allocation9 + $0x68] sm:$0xff]
    %v2763 = vld [vmem:[#allocation9 + $0x70] sm:$0xff]
    %v2764 = vld [vmem:[#allocation9 + $0x78] sm:$0xff]
    %v2765 = vld [vmem:[%s9] sm:$0x1]
    %v2767 = vlaneseq
    %v2768 = vshrl.u32 %v2767, 7
    %v2769 = vsub.s32 0, %v2768
    %v2770 = vrot.slane %v2765, %v2769
    %2772 = vmatprep.subr.mxu0 0.0
    %2773 = vmatpush1.msra.mxu0 %v2749
    %2774 = vmatprep.subr.mxu0 0.0
    %2775 = vmatpush1.msra.mxu0 %v2750
    %2776 = vmatprep.subr.mxu0 0.0
    %2777 = vmatpush1.msra.mxu0 %v2751
    %2778 = vmatprep.subr.mxu0 0.0
    %2779 = vmatpush1.msra.mxu0 %v2752
    %2780 = vmatprep.subr.mxu0 0.0
    %2781 = vmatpush1.msra.mxu0 %v2753
    %2782 = vmatprep.subr.mxu0 0.0
    %2783 = vmatpush1.msra.mxu0 %v2754
    %2784 = vmatprep.subr.mxu0 0.0
    %2785 = vmatpush1.msra.mxu0 %v2755
    %2786 = vmatprep.subr.mxu0 0.0
    %2787 = vmatpush1.msra.mxu0 %v2756
    %2788 = vmatprep.subr.mxu0 0.0
    %2789 = vmatpush1.msra.mxu0 %v2757
    %2790 = vmatprep.subr.mxu0 0.0
    %2791 = vmatpush1.msra.mxu0 %v2758
    %2792 = vmatprep.subr.mxu0 0.0
    %2793 = vmatpush1.msra.mxu0 %v2759
    %2794 = vmatprep.subr.mxu0 0.0
    %2795 = vmatpush1.msra.mxu0 %v2760
    %2796 = vmatprep.subr.mxu0 0.0
    %2797 = vmatpush1.msra.mxu0 %v2761
    %2798 = vmatprep.subr.mxu0 0.0
    %2799 = vmatpush1.msra.mxu0 %v2762
    %2800 = vmatprep.subr.mxu0 0.0
    %2801 = vmatpush1.msra.mxu0 %v2763
    %2802 = vmatprep.subr.mxu0 0.0
    %2803 = vmatpush1.msra.mxu0 %v2764
    %2804 = vmatprep.subr.mxu0 0.0
    %2805 = vmatpush1.msra.mxu0 0.0
    %2806 = vmatprep.subr.mxu0 0.0
    %2807 = vmatpush1.msra.mxu0 0.0
    %2808 = vmatprep.subr.mxu0 0.0
    %2809 = vmatpush1.msra.mxu0 0.0
    %2810 = vmatprep.subr.mxu0 0.0
    %2811 = vmatpush1.msra.mxu0 0.0
    %2812 = vmatprep.subr.mxu0 0.0
    %2813 = vmatpush1.msra.mxu0 0.0
    %2814 = vmatprep.subr.mxu0 0.0
    %2815 = vmatpush1.msra.mxu0 0.0
    %2816 = vmatprep.subr.mxu0 0.0
    %2817 = vmatpush1.msra.mxu0 0.0
    %2818 = vmatprep.subr.mxu0 0.0
    %2819 = vmatpush1.msra.mxu0 0.0
    %2820 = vmatprep.subr.mxu0 0.0
    %2821 = vmatpush1.msra.mxu0 0.0
    %2822 = vmatprep.subr.mxu0 0.0
    %2823 = vmatpush1.msra.mxu0 0.0
    %2824 = vmatprep.subr.mxu0 0.0
    %2825 = vmatpush1.msra.mxu0 0.0
    %2826 = vmatprep.subr.mxu0 0.0
    %2827 = vmatpush1.msra.mxu0 0.0
    %2828 = vmatprep.subr.mxu0 0.0
    %2829 = vmatpush1.msra.mxu0 0.0
    %2830 = vmatprep.subr.mxu0 0.0
    %2831 = vmatpush1.msra.mxu0 0.0
    %2832 = vmatprep.subr.mxu0 0.0
    %2833 = vmatpush1.msra.mxu0 0.0
    %2834 = vmatprep.subr.mxu0 0.0
    %2835 = vmatpush1.msra.mxu0 0.0
    %2836 = vmatprep.mubr.f32.mxu0 0.0
    %2837 = vmatmul.mubr.f32.gmra.mrb[0].mxu0 %v2747
    %v2838 = vpop.f32.mrb[0].mxu0
    %v2839 = vadd.f32 %v2770, %v2838
    %v2840 = vpop.f32.mrb[0].mxu0
    %2841 = vmatprep.mubr.f32.mxu0 0.0
    %2842 = vmatmul.mubr.f32.gmra.mrb[0].mxu0 %v2748
    %v2843 = vpop.f32.mrb[0].mxu0
    %v2844 = vadd.f32 %v2770, %v2843
    %v2845 = vpop.f32.mrb[0].mxu0
    %2846 = vdwg.mxu0
    %2847 = vst [vmem:[#allocation10] sm:$0xff] %v2839
    %2848 = vst [vmem:[#allocation10 + $0x8] sm:$0xff] %v2844
    // Predicated region
    $region54: #{model_forward.1} parent=1 // pred_check
      _
    $region55: #{model_forward.1} parent=1 // pred_check_branch
      %2850 = sbr.rel (0) target = $region57
    $region56: #{model_forward.1} parent=1 // pred_region
      %s2852 = ssub.s32 256, 256
      %2853 = vsyncadd [#allocation6], %s2852
      %s2854 = sshll.u32 [#allocation10], 4
      %s2855 = int_to_ptr.vmem [resolvable:$true] %s2854
      %2860 = dma.vmem_to_hbm [thread:$0]  %s2855, 256, %s10, [#allocation6], 128, 128, 8
    $region57: #{model_forward.1} parent=1 // pred_fallthru
      _
    // Predicated region
    $region58: #{model_forward.1} parent=1 // pred_check
      _
    $region59: #{model_forward.1} parent=1 // pred_check_branch
      %2862 = sbr.rel (0) target = $region61
    $region60: #{model_forward.1} parent=1 // pred_region
      %2863 = dma.done [#allocation6], 256
    $region61: #{model_forward.1} parent=1 // pred_fallthru
      _
    %2864 = vsyncpa [#allocation5], 1
    %2865 = vsyncpa [#allocation8], 1
    %2866 = vsyncpa [#allocation6], 1

</llo_original>
